<compile_context>
chip_gen: v7x
topology: tpu7x:2x2x1
jax: 0.10.0
libtpu: 0.0.40
codegen_flags: <defaults>
</compile_context>

<pallas_src>
import functools
import math

import numpy as np
import jax
import jax.numpy as jnp
from jax.experimental import pallas as pl
from jax.experimental.pallas import tpu as pltpu

# ----------------------- small config (ViT-B/16 analog) -----------------------
IMG_SIZE = 32          # original: 224
PATCH = 4              # original: 16
IN_CH = 3
HIDDEN = 32            # original: 768
MLP_DIM = 64           # original: 3072
NUM_HEADS = 4          # original: 12
HEAD_DIM = HIDDEN // NUM_HEADS
NUM_LAYERS = 2         # original: 12
N_CLASSES = 3          # original config['n_classes'] (e.g. 9)
GRID_HW = IMG_SIZE // PATCH
N_PATCH = GRID_HW * GRID_HW
OUT_SIZE = 224         # Decoder_None hardcodes UpsamplingBilinear2d(size=(224, 224))
PATCH_DIM = IN_CH * PATCH * PATCH
LN_EPS = 1e-6
BN_EPS = 1e-5

# NOTE: at real ViT-B scale (HIDDEN=768, MLP_DIM=3072) the per-layer f32 weights
# (~28 MB) must be blocked over HIDDEN/MLP_DIM (or stored bf16) and
# vmem_limit_bytes raised; at this toy size whole-layer blocks are fine.


# ------------------------------ Pallas kernel ----------------------------------
def _layernorm(x, g, b, eps=LN_EPS):
    mu = jnp.mean(x, axis=-1, keepdims=True)
    xc = x - mu
    var = jnp.mean(xc * xc, axis=-1, keepdims=True)
    return xc * jax.lax.rsqrt(var + eps) * g + b


def _vit_none_kernel(xp_ref, pw_ref, pb_ref, pos_ref,
                     ln1g_ref, ln1b_ref, wqkv_ref, bqkv_ref, wo_ref, bo_ref,
                     ln2g_ref, ln2b_ref, w1_ref, b1_ref, w2_ref, b2_ref,
                     elng_ref, elnb_ref, dwt_ref, bng_ref, bnb_ref,
                     ahx_ref, awx_ref,
                     logits_ref, carry_ref,
                     *, num_heads, head_dim, n_classes):
    """grid = (batch, layer). Per-batch activation carried in VMEM across the layer axis.

    Last layer additionally runs: encoder_norm -> 1x1 conv (no bias) -> folded BN ->
    ReLU -> bilinear upsample to (224, 224), writing the (1, n_classes, 224, 224) block.
    """
    layer = pl.program_id(1)
    n_layers = pl.num_programs(1)
    hidden = num_heads * head_dim

    # ---- layer 0: fused patch embedding (conv k=stride=P == matmul) + pos-emb ----
    @pl.when(layer == 0)
    def _():
        emb = jnp.dot(xp_ref[0], pw_ref[...], preferred_element_type=jnp.float32)
        carry_ref[...] = emb + pb_ref[...] + pos_ref[...]

    h = carry_ref[...]                                              # (N, hidden) f32

    # ---- MHSA: LN -> fused QKV -> per-head softmax(QK^T/sqrt(dh)) V -> out-proj + res
    y = _layernorm(h, ln1g_ref[0], ln1b_ref[0])
    qkv = jnp.dot(y, wqkv_ref[0], preferred_element_type=jnp.float32) + bqkv_ref[0]
    scale = 1.0 / math.sqrt(head_dim)
    ctxs = []
    for hd in range(num_heads):
        q = qkv[:, hd * head_dim:(hd + 1) * head_dim]
        k = qkv[:, hidden + hd * head_dim: hidden + (hd + 1) * head_dim]
        v = qkv[:, 2 * hidden + hd * head_dim: 2 * hidden + (hd + 1) * head_dim]
        s = jax.lax.dot_general(q, k, (((1,), (1,)), ((), ())),
                                preferred_element_type=jnp.float32) * scale   # (N, N)
        s = s - jnp.max(s, axis=-1, keepdims=True)
        p = jnp.exp(s)
        # EUP approximate reciprocal for the softmax denominator (separate issue slot)
        p = p * pl.reciprocal(jnp.sum(p, axis=-1, keepdims=True), approx=True)
        ctxs.append(jnp.dot(p, v, preferred_element_type=jnp.float32))       # (N, dh)
    ctx_all = jnp.concatenate(ctxs, axis=-1)                        # (N, hidden), head-major
    attn_out = h + bo_ref[0] + jnp.dot(ctx_all, wo_ref[0],
                                       preferred_element_type=jnp.float32)

    # ---- MLP: LN -> fc1 + exact(erf) GELU -> fc2 + residual ----
    y2 = _layernorm(attn_out, ln2g_ref[0], ln2b_ref[0])
    m = jnp.dot(y2, w1_ref[0], preferred_element_type=jnp.float32) + b1_ref[0]
    m = 0.5 * m * (1.0 + jax.lax.erf(m * (1.0 / math.sqrt(2.0))))
    out = jnp.dot(m, w2_ref[0], preferred_element_type=jnp.float32) + b2_ref[0] + attn_out

    carry_ref[...] = out

    # ---- last layer epilogue: encoder_norm + 1x1 conv + BN(eval) + ReLU + bilinear up ----
    @pl.when(layer == n_layers - 1)
    def _():
        z = _layernorm(out, elng_ref[...], elnb_ref[...])           # (N, hidden)
        # decoder 1x1 conv directly in (n_classes, N) orientation: dwt (C, hidden), z (N, hidden)
        pix = jax.lax.dot_general(dwt_ref[...], z, (((1,), (1,)), ((), ())),
                                  preferred_element_type=jnp.float32)         # (C, N)
        pix = jnp.maximum(pix * bng_ref[...] + bnb_ref[...], 0.0)   # folded BN + ReLU

        # bilinear upsample on the flattened token axis (no reshapes needed):
        #   out[c,H,W] = sum_t AhExp[H,t] * pix[c,t] * AwExp[t,W]
        ah_exp = ahx_ref[...]                                       # (Hout, N)
        aw_exp = awx_ref[...]                                       # (N, Wout)
        for c in range(n_classes):
            weighted = ah_exp * pix[c:c + 1, :]                     # (Hout, N) broadcast mul
            logits_ref[0, c] = jnp.dot(
                weighted, aw_exp,
                preferred_element_type=jnp.float32).astype(logits_ref.dtype)


def encoder_decoder_upsample(params, xp, ah_exp, aw_exp):
    """xp: (B, N_PATCH, PATCH_DIM) -> logits (B, n_classes, 224, 224) in one pallas_call."""
    b, n, pd = xp.shape
    layers = params['wqkv'].shape[0]
    hdim, mdim = HIDDEN, MLP_DIM
    ncls = params['dec_w'].shape[1]
    hout, wout = ah_exp.shape[0], aw_exp.shape[1]
    assert ah_exp.shape[1] == n and aw_exp.shape[0] == n

    # 1x1-conv weight pre-transposed to (n_classes, hidden); fold BatchNorm2d (eval)
    dec_wt = jnp.transpose(params['dec_w'])                               # (C, hidden)
    bn_scale = params['bn_gamma'] * jax.lax.rsqrt(params['bn_var'] + BN_EPS)
    bn_g = bn_scale.reshape(ncls, 1)
    bn_b = (params['bn_beta'] - params['bn_mean'] * bn_scale).reshape(ncls, 1)

    full2 = lambda b_, l_: (0, 0)
    per_layer3 = lambda b_, l_: (l_, 0, 0)
    batch3 = lambda b_, l_: (b_, 0, 0)
    batch4 = lambda b_, l_: (b_, 0, 0, 0)

    kernel = functools.partial(_vit_none_kernel, num_heads=NUM_HEADS,
                               head_dim=HEAD_DIM, n_classes=ncls)
    return pl.pallas_call(
        kernel,
        grid=(b, layers),
        in_specs=[
            pl.BlockSpec((1, n, pd), batch3),               # xp (per batch)
            pl.BlockSpec((pd, hdim), full2),                # patch_w
            pl.BlockSpec((1, hdim), full2),                 # patch_b
            pl.BlockSpec((n, hdim), full2),                 # pos_emb
            pl.BlockSpec((1, 1, hdim), per_layer3),         # ln1_g
            pl.BlockSpec((1, 1, hdim), per_layer3),         # ln1_b
            pl.BlockSpec((1, hdim, 3 * hdim), per_layer3),  # wqkv (fused [Wq|Wk|Wv])
            pl.BlockSpec((1, 1, 3 * hdim), per_layer3),     # bqkv
            pl.BlockSpec((1, hdim, hdim), per_layer3),      # wo
            pl.BlockSpec((1, 1, hdim), per_layer3),         # bo
            pl.BlockSpec((1, 1, hdim), per_layer3),         # ln2_g
            pl.BlockSpec((1, 1, hdim), per_layer3),         # ln2_b
            pl.BlockSpec((1, hdim, mdim), per_layer3),      # fc1_w
            pl.BlockSpec((1, 1, mdim), per_layer3),         # fc1_b
            pl.BlockSpec((1, mdim, hdim), per_layer3),      # fc2_w
            pl.BlockSpec((1, 1, hdim), per_layer3),         # fc2_b
            pl.BlockSpec((1, hdim), full2),                 # encoder_norm gamma
            pl.BlockSpec((1, hdim), full2),                 # encoder_norm beta
            pl.BlockSpec((ncls, hdim), full2),              # decoder 1x1 conv weight^T
            pl.BlockSpec((ncls, 1), full2),                 # folded BN scale
            pl.BlockSpec((ncls, 1), full2),                 # folded BN shift
            pl.BlockSpec((hout, n), full2),                 # expanded H-interp matrix
            pl.BlockSpec((n, wout), full2),                 # expanded W-interp matrix
        ],
        out_specs=pl.BlockSpec((1, ncls, hout, wout), batch4),
        out_shape=jax.ShapeDtypeStruct((b, ncls, hout, wout), jnp.float32),
        scratch_shapes=[pltpu.VMEM((n, hdim), jnp.float32)],   # activation carry
        compiler_params=pltpu.CompilerParams(
            dimension_semantics=("parallel", "arbitrary")),
    )(xp, params['patch_w'], params['patch_b'], params['pos_emb'],
      params['ln1_g'], params['ln1_b'], params['wqkv'], params['bqkv'],
      params['wo'], params['bo'], params['ln2_g'], params['ln2_b'],
      params['fc1_w'], params['fc1_b'], params['fc2_w'], params['fc2_b'],
      params['enc_ln_g'], params['enc_ln_b'], dec_wt, bn_g, bn_b, ah_exp, aw_exp)


# ------------------------------ glue / model ----------------------------------
def _bilinear_matrix(out_size, in_size):
    """align_corners=True interpolation matrix (nn.UpsamplingBilinear2d)."""
    a = np.zeros((out_size, in_size), dtype=np.float32)
    if in_size == 1 or out_size == 1:
        a[:, 0] = 1.0
        return a
    scale = (in_size - 1) / (out_size - 1)
    for i in range(out_size):
        src = i * scale
        lo = min(int(np.floor(src)), in_size - 2)
        frac = src - lo
        a[i, lo] += 1.0 - frac
        a[i, lo + 1] += frac
    return a


def init_params(key):
    ks = jax.random.split(key, 8)

    def nrm(k, shape, std=0.02):
        return jax.random.normal(k, shape, dtype=jnp.float32) * std

    L, H, M, C = NUM_LAYERS, HIDDEN, MLP_DIM, N_CLASSES
    return {
        'patch_w': nrm(ks[0], (PATCH_DIM, H)),
        'patch_b': jnp.zeros((1, H), jnp.float32),
        'pos_emb': nrm(ks[1], (N_PATCH, H)),
        # stacked per-layer weights (layer axis first); wqkv = [Wq | Wk | Wv]
        'ln1_g': jnp.ones((L, 1, H), jnp.float32), 'ln1_b': jnp.zeros((L, 1, H), jnp.float32),
        'wqkv': nrm(ks[2], (L, H, 3 * H)), 'bqkv': jnp.zeros((L, 1, 3 * H), jnp.float32),
        'wo': nrm(ks[3], (L, H, H)), 'bo': jnp.zeros((L, 1, H), jnp.float32),
        'ln2_g': jnp.ones((L, 1, H), jnp.float32), 'ln2_b': jnp.zeros((L, 1, H), jnp.float32),
        'fc1_w': nrm(ks[4], (L, H, M)), 'fc1_b': jnp.zeros((L, 1, M), jnp.float32),
        'fc2_w': nrm(ks[5], (L, M, H)), 'fc2_b': jnp.zeros((L, 1, H), jnp.float32),
        'enc_ln_g': jnp.ones((1, H), jnp.float32), 'enc_ln_b': jnp.zeros((1, H), jnp.float32),
        'dec_w': nrm(ks[6], (H, C)),                       # Conv2d(hidden, n_classes, 1, bias=False)
        'bn_gamma': jnp.ones((C,), jnp.float32), 'bn_beta': jnp.zeros((C,), jnp.float32),
        'bn_mean': jnp.zeros((C,), jnp.float32), 'bn_var': jnp.ones((C,), jnp.float32),
    }


def vit_none_forward(params, x):
    """x: NCHW float32 (B, C, H, W). Returns logits (B, n_classes, 224, 224)."""
    b, c, h, w = x.shape
    if c == 1:                                            # x.repeat(1, 3, 1, 1)
        x = jnp.tile(x, (1, 3, 1, 1))
        c = 3
    gh, gw = h // PATCH, w // PATCH
    n_patch = gh * gw
    assert n_patch == params['pos_emb'].shape[0]

    # patch extraction (tiny XLA reshape/transpose); per-patch order is (in_ch, pi, pj)
    xp = x.reshape(b, c, gh, PATCH, gw, PATCH)
    xp = jnp.transpose(xp, (0, 2, 4, 1, 3, 5)).reshape(b, n_patch, c * PATCH * PATCH)

    # align_corners bilinear interpolation matrices, expanded to the flat token axis:
    #   AhExp[H, t] = Ah[H, t // gw],  AwExp[t, W] = Aw[W, t % gw]
    ah = _bilinear_matrix(OUT_SIZE, gh)                   # (224, gh)
    aw = _bilinear_matrix(OUT_SIZE, gw)                   # (224, gw)
    ah_exp = jnp.asarray(np.repeat(ah, gw, axis=1))       # (224, gh*gw)
    aw_exp = jnp.asarray(np.tile(aw.T, (gh, 1)))          # (gh*gw, 224)

    # single fused pallas_call: embeddings + encoder + encoder_norm + 1x1conv/BN/ReLU + upsample
    return encoder_decoder_upsample(params, xp, ah_exp, aw_exp)


# -------------------------- pure-JAX reference (check) -------------------------
def _reference_forward(params, x):
    hp = jax.lax.Precision.HIGHEST
    b, c, h, w = x.shape
    if c == 1:
        x = jnp.tile(x, (1, 3, 1, 1))
        c = 3
    gh, gw = h // PATCH, w // PATCH
    xp = x.reshape(b, c, gh, PATCH, gw, PATCH)
    xp = jnp.transpose(xp, (0, 2, 4, 1, 3, 5)).reshape(b, gh * gw, c * PATCH * PATCH)
    hs = jnp.einsum('bnk,kh->bnh', xp, params['patch_w'], precision=hp) \
        + params['patch_b'] + params['pos_emb']

    def ln(z, g, b_):
        mu = jnp.mean(z, -1, keepdims=True)
        v = jnp.mean((z - mu) ** 2, -1, keepdims=True)
        return (z - mu) * jax.lax.rsqrt(v + LN_EPS) * g + b_

    for l in range(NUM_LAYERS):
        res = hs
        y = ln(hs, params['ln1_g'][l], params['ln1_b'][l])
        qkv = jnp.einsum('bnh,hk->bnk', y, params['wqkv'][l], precision=hp) + params['bqkv'][l]
        q, k, v = jnp.split(qkv, 3, axis=-1)
        heads = lambda t: t.reshape(b, -1, NUM_HEADS, HEAD_DIM).transpose(0, 2, 1, 3)
        qh, kh, vh = heads(q), heads(k), heads(v)
        s = jnp.einsum('bhqd,bhkd->bhqk', qh, kh, precision=hp) / math.sqrt(HEAD_DIM)
        p = jax.nn.softmax(s, axis=-1)
        ctx = jnp.einsum('bhqk,bhkd->bhqd', p, vh, precision=hp)
        ctx = ctx.transpose(0, 2, 1, 3).reshape(b, -1, HIDDEN)
        hs = jnp.einsum('bnh,hk->bnk', ctx, params['wo'][l], precision=hp) + params['bo'][l] + res
        res = hs
        y = ln(hs, params['ln2_g'][l], params['ln2_b'][l])
        y = jnp.einsum('bnh,hm->bnm', y, params['fc1_w'][l], precision=hp) + params['fc1_b'][l]
        y = 0.5 * y * (1.0 + jax.lax.erf(y / math.sqrt(2.0)))
        y = jnp.einsum('bnm,mh->bnh', y, params['fc2_w'][l], precision=hp) + params['fc2_b'][l]
        hs = y + res

    hs = ln(hs, params['enc_ln_g'], params['enc_ln_b'])
    bn_g = params['bn_gamma'] * jax.lax.rsqrt(params['bn_var'] + BN_EPS)
    bn_b = params['bn_beta'] - params['bn_mean'] * bn_g
    pix = jnp.maximum(
        jnp.einsum('bnh,hc->bnc', hs, params['dec_w'], precision=hp) * bn_g + bn_b, 0.0)
    feat = jnp.transpose(pix.reshape(b, gh, gw, N_CLASSES), (0, 3, 1, 2))
    ah = jnp.asarray(_bilinear_matrix(OUT_SIZE, gh))
    aw = jnp.asarray(_bilinear_matrix(OUT_SIZE, gw))
    return jnp.einsum('Hi,bcij,Wj->bcHW', ah, feat, aw, precision=hp)


if __name__ == "__main__":
    key = jax.random.PRNGKey(0)
    pkey, xkey = jax.random.split(key)
    params = init_params(pkey)
    x = jax.random.normal(xkey, (2, IN_CH, IMG_SIZE, IMG_SIZE), dtype=jnp.float32)

    logits = jax.block_until_ready(jax.jit(vit_none_forward)(params, x))
    assert logits.shape == (2, N_CLASSES, OUT_SIZE, OUT_SIZE)
    assert bool(jnp.all(jnp.isfinite(logits)))

    ref = jax.block_until_ready(jax.jit(_reference_forward)(params, x))
    max_err = float(jnp.max(jnp.abs(logits - ref)))
    assert max_err < 1e-3, f"mismatch vs pure-JAX reference: {max_err}"
    print("KERNEL_OK")
</pallas_src>

<mosaic_0001>
module attributes {stable_mosaic.version = 11 : i64} {
  func.func @_vit_none_kernel(%arg0: i32, %arg1: i32, %arg2: memref<1x64x48xf32, #tpu.memory_space<vmem>>, %arg3: memref<48x32xf32, #tpu.memory_space<vmem>>, %arg4: memref<1x32xf32, #tpu.memory_space<vmem>>, %arg5: memref<64x32xf32, #tpu.memory_space<vmem>>, %arg6: memref<1x1x32xf32, #tpu.memory_space<vmem>>, %arg7: memref<1x1x32xf32, #tpu.memory_space<vmem>>, %arg8: memref<1x32x96xf32, #tpu.memory_space<vmem>>, %arg9: memref<1x1x96xf32, #tpu.memory_space<vmem>>, %arg10: memref<1x32x32xf32, #tpu.memory_space<vmem>>, %arg11: memref<1x1x32xf32, #tpu.memory_space<vmem>>, %arg12: memref<1x1x32xf32, #tpu.memory_space<vmem>>, %arg13: memref<1x1x32xf32, #tpu.memory_space<vmem>>, %arg14: memref<1x32x64xf32, #tpu.memory_space<vmem>>, %arg15: memref<1x1x64xf32, #tpu.memory_space<vmem>>, %arg16: memref<1x64x32xf32, #tpu.memory_space<vmem>>, %arg17: memref<1x1x32xf32, #tpu.memory_space<vmem>>, %arg18: memref<1x32xf32, #tpu.memory_space<vmem>>, %arg19: memref<1x32xf32, #tpu.memory_space<vmem>>, %arg20: memref<3x32xf32, #tpu.memory_space<vmem>>, %arg21: memref<3x1xf32, #tpu.memory_space<vmem>>, %arg22: memref<3x1xf32, #tpu.memory_space<vmem>>, %arg23: memref<224x64xf32, #tpu.memory_space<vmem>>, %arg24: memref<64x224xf32, #tpu.memory_space<vmem>>, %arg25: memref<1x3x224x224xf32, #tpu.memory_space<vmem>>, %arg26: memref<64x32xf32, #tpu.memory_space<vmem>>) attributes {dimension_semantics = [#tpu.dimension_semantics<parallel>, #tpu.dimension_semantics<arbitrary>], iteration_bounds = array<i64: 2, 2>, scalar_prefetch = 0 : i64, scratch_operands = 1 : i64, tpu.core_type = #tpu.core_type<tc>, window_params = [{transform_indices = @transform_0, window_bounds = array<i64: 1, 64, 48>}, {pipeline_mode = #tpu.pipeline_mode<synchronous>, transform_indices = @transform_1, window_bounds = array<i64: 48, 32>}, {pipeline_mode = #tpu.pipeline_mode<synchronous>, transform_indices = @transform_2, window_bounds = array<i64: 1, 32>}, {pipeline_mode = #tpu.pipeline_mode<synchronous>, transform_indices = @transform_3, window_bounds = array<i64: 64, 32>}, {transform_indices = @transform_4, window_bounds = array<i64: 1, 1, 32>}, {transform_indices = @transform_5, window_bounds = array<i64: 1, 1, 32>}, {transform_indices = @transform_6, window_bounds = array<i64: 1, 32, 96>}, {transform_indices = @transform_7, window_bounds = array<i64: 1, 1, 96>}, {transform_indices = @transform_8, window_bounds = array<i64: 1, 32, 32>}, {transform_indices = @transform_9, window_bounds = array<i64: 1, 1, 32>}, {transform_indices = @transform_10, window_bounds = array<i64: 1, 1, 32>}, {transform_indices = @transform_11, window_bounds = array<i64: 1, 1, 32>}, {transform_indices = @transform_12, window_bounds = array<i64: 1, 32, 64>}, {transform_indices = @transform_13, window_bounds = array<i64: 1, 1, 64>}, {transform_indices = @transform_14, window_bounds = array<i64: 1, 64, 32>}, {transform_indices = @transform_15, window_bounds = array<i64: 1, 1, 32>}, {pipeline_mode = #tpu.pipeline_mode<synchronous>, transform_indices = @transform_16, window_bounds = array<i64: 1, 32>}, {pipeline_mode = #tpu.pipeline_mode<synchronous>, transform_indices = @transform_17, window_bounds = array<i64: 1, 32>}, {pipeline_mode = #tpu.pipeline_mode<synchronous>, transform_indices = @transform_18, window_bounds = array<i64: 3, 32>}, {pipeline_mode = #tpu.pipeline_mode<synchronous>, transform_indices = @transform_19, window_bounds = array<i64: 3, 1>}, {pipeline_mode = #tpu.pipeline_mode<synchronous>, transform_indices = @transform_20, window_bounds = array<i64: 3, 1>}, {pipeline_mode = #tpu.pipeline_mode<synchronous>, transform_indices = @transform_21, window_bounds = array<i64: 224, 64>}, {pipeline_mode = #tpu.pipeline_mode<synchronous>, transform_indices = @transform_22, window_bounds = array<i64: 64, 224>}, {transform_indices = @transform_23, window_bounds = array<i64: 1, 3, 224, 224>}]} {
    %c0_i32 = arith.constant 0 : i32
    %0 = arith.cmpi eq, %arg1, %c0_i32 : i32
    %1 = arith.extui %0 : i1 to i32
    %c0_i32_0 = arith.constant 0 : i32
    %2 = arith.cmpi ne, %1, %c0_i32_0 : i32
    scf.if %2 {
      %c0_77 = arith.constant 0 : index
      %c0_78 = arith.constant 0 : index
      %c0_79 = arith.constant 0 : index
      %163 = vector.load %arg2[%c0_77, %c0_78, %c0_79] : memref<1x64x48xf32, #tpu.memory_space<vmem>>, vector<1x64x48xf32>
      %164 = vector.shape_cast %163 : vector<1x64x48xf32> to vector<64x48xf32>
      %c0_80 = arith.constant 0 : index
      %c0_81 = arith.constant 0 : index
      %165 = vector.load %arg3[%c0_80, %c0_81] : memref<48x32xf32, #tpu.memory_space<vmem>>, vector<48x32xf32>
      %cst_82 = arith.constant dense<0.000000e+00> : vector<64x32xf32>
      %166 = tpu.matmul %164, %165, %cst_82 {dimension_numbers = #tpu.dot_dimension_numbers<[1], [0], [0], [1], [0, 0, 1, 1], [], []>} : vector<64x48xf32>, vector<48x32xf32>, vector<64x32xf32> -> vector<64x32xf32>
      %c0_83 = arith.constant 0 : index
      %c0_84 = arith.constant 0 : index
      %167 = vector.load %arg4[%c0_83, %c0_84] : memref<1x32xf32, #tpu.memory_space<vmem>>, vector<1x32xf32>
      %168 = vector.broadcast %167 : vector<1x32xf32> to vector<64x32xf32>
      %169 = arith.addf %166, %168 : vector<64x32xf32>
      %c0_85 = arith.constant 0 : index
      %c0_86 = arith.constant 0 : index
      %170 = vector.load %arg5[%c0_85, %c0_86] : memref<64x32xf32, #tpu.memory_space<vmem>>, vector<64x32xf32>
      %171 = arith.addf %169, %170 : vector<64x32xf32>
      %c0_87 = arith.constant 0 : index
      %c0_88 = arith.constant 0 : index
      %172 = vector.load %arg26[%c0_87, %c0_88] : memref<64x32xf32, #tpu.memory_space<vmem>>, vector<64x32xf32>
      tpu.vector_store %arg26[%c0_87, %c0_88], %171 {strides = array<i32>} : memref<64x32xf32, #tpu.memory_space<vmem>>, vector<64x32xf32>,
    } else {
    }
    %c0 = arith.constant 0 : index
    %c0_1 = arith.constant 0 : index
    %3 = vector.load %arg26[%c0, %c0_1] : memref<64x32xf32, #tpu.memory_space<vmem>>, vector<64x32xf32>
    %c0_2 = arith.constant 0 : index
    %c0_3 = arith.constant 0 : index
    %c0_4 = arith.constant 0 : index
    %4 = vector.load %arg6[%c0_2, %c0_3, %c0_4] : memref<1x1x32xf32, #tpu.memory_space<vmem>>, vector<1x1x32xf32>
    %5 = vector.shape_cast %4 : vector<1x1x32xf32> to vector<1x32xf32>
    %c0_5 = arith.constant 0 : index
    %c0_6 = arith.constant 0 : index
    %c0_7 = arith.constant 0 : index
    %6 = vector.load %arg7[%c0_5, %c0_6, %c0_7] : memref<1x1x32xf32, #tpu.memory_space<vmem>>, vector<1x1x32xf32>
    %7 = vector.shape_cast %6 : vector<1x1x32xf32> to vector<1x32xf32>
    %cst = arith.constant dense<0.000000e+00> : vector<64xf32>
    %8 = vector.multi_reduction <add>, %3, %cst [1] : vector<64x32xf32> to vector<64xf32>
    %9 = vector.shape_cast %8 : vector<64xf32> to vector<64x1xf32>
    %cst_8 = arith.constant 3.200000e+01 : f32
    %10 = vector.broadcast %cst_8 : f32 to vector<64x1xf32>
    %11 = arith.divf %9, %10 : vector<64x1xf32>
    %12 = vector.broadcast %11 : vector<64x1xf32> to vector<64x32xf32>
    %13 = arith.subf %3, %12 : vector<64x32xf32>
    %14 = arith.mulf %13, %13 : vector<64x32xf32>
    %cst_9 = arith.constant dense<0.000000e+00> : vector<64xf32>
    %15 = vector.multi_reduction <add>, %14, %cst_9 [1] : vector<64x32xf32> to vector<64xf32>
    %16 = vector.shape_cast %15 : vector<64xf32> to vector<64x1xf32>
    %cst_10 = arith.constant 3.200000e+01 : f32
    %17 = vector.broadcast %cst_10 : f32 to vector<64x1xf32>
    %18 = arith.divf %16, %17 : vector<64x1xf32>
    %cst_11 = arith.constant 9.99999997E-7 : f32
    %19 = vector.broadcast %cst_11 : f32 to vector<64x1xf32>
    %20 = arith.addf %18, %19 : vector<64x1xf32>
    %21 = math.rsqrt %20 : vector<64x1xf32>
    %22 = vector.broadcast %21 : vector<64x1xf32> to vector<64x32xf32>
    %23 = arith.mulf %13, %22 : vector<64x32xf32>
    %24 = vector.broadcast %5 : vector<1x32xf32> to vector<64x32xf32>
    %25 = arith.mulf %23, %24 : vector<64x32xf32>
    %26 = vector.broadcast %7 : vector<1x32xf32> to vector<64x32xf32>
    %27 = arith.addf %25, %26 : vector<64x32xf32>
    %c0_12 = arith.constant 0 : index
    %c0_13 = arith.constant 0 : index
    %c0_14 = arith.constant 0 : index
    %28 = vector.load %arg8[%c0_12, %c0_13, %c0_14] : memref<1x32x96xf32, #tpu.memory_space<vmem>>, vector<1x32x96xf32>
    %29 = vector.shape_cast %28 : vector<1x32x96xf32> to vector<32x96xf32>
    %cst_15 = arith.constant dense<0.000000e+00> : vector<64x96xf32>
    %30 = tpu.matmul %27, %29, %cst_15 {dimension_numbers = #tpu.dot_dimension_numbers<[1], [0], [0], [1], [0, 0, 1, 1], [], []>} : vector<64x32xf32>, vector<32x96xf32>, vector<64x96xf32> -> vector<64x96xf32>
    %c0_16 = arith.constant 0 : index
    %c0_17 = arith.constant 0 : index
    %c0_18 = arith.constant 0 : index
    %31 = vector.load %arg9[%c0_16, %c0_17, %c0_18] : memref<1x1x96xf32, #tpu.memory_space<vmem>>, vector<1x1x96xf32>
    %32 = vector.shape_cast %31 : vector<1x1x96xf32> to vector<1x96xf32>
    %33 = vector.broadcast %32 : vector<1x96xf32> to vector<64x96xf32>
    %34 = arith.addf %30, %33 : vector<64x96xf32>
    %35 = vector.extract_strided_slice %34 {offsets = [0, 0], sizes = [64, 8], strides = [1, 1]} : vector<64x96xf32> to vector<64x8xf32>
    %36 = vector.extract_strided_slice %34 {offsets = [0, 32], sizes = [64, 8], strides = [1, 1]} : vector<64x96xf32> to vector<64x8xf32>
    %37 = vector.extract_strided_slice %34 {offsets = [0, 64], sizes = [64, 8], strides = [1, 1]} : vector<64x96xf32> to vector<64x8xf32>
    %cst_19 = arith.constant dense<0.000000e+00> : vector<64x64xf32>
    %38 = tpu.matmul %35, %36, %cst_19 {dimension_numbers = #tpu.dot_dimension_numbers<[1], [1], [0], [0], [0, 0, 1, 0], [], []>} : vector<64x8xf32>, vector<64x8xf32>, vector<64x64xf32> -> vector<64x64xf32>
    %cst_20 = arith.constant 0.353553385 : f32
    %39 = vector.broadcast %cst_20 : f32 to vector<64x64xf32>
    %40 = arith.mulf %38, %39 : vector<64x64xf32>
    %cst_21 = arith.constant dense<0xFF800000> : vector<64xf32>
    %41 = vector.multi_reduction <maximumf>, %40, %cst_21 [1] : vector<64x64xf32> to vector<64xf32>
    %42 = vector.shape_cast %41 : vector<64xf32> to vector<64x1xf32>
    %43 = vector.broadcast %42 : vector<64x1xf32> to vector<64x64xf32>
    %44 = arith.subf %40, %43 : vector<64x64xf32>
    %45 = math.exp %44 : vector<64x64xf32>
    %cst_22 = arith.constant dense<0.000000e+00> : vector<64xf32>
    %46 = vector.multi_reduction <add>, %45, %cst_22 [1] : vector<64x64xf32> to vector<64xf32>
    %47 = vector.shape_cast %46 : vector<64xf32> to vector<64x1xf32>
    %48 = tpu.reciprocal %47 {approx = true} : vector<64x1xf32> -> vector<64x1xf32>
    %49 = vector.broadcast %48 : vector<64x1xf32> to vector<64x64xf32>
    %50 = arith.mulf %45, %49 : vector<64x64xf32>
    %cst_23 = arith.constant dense<0.000000e+00> : vector<64x8xf32>
    %51 = tpu.matmul %50, %37, %cst_23 {dimension_numbers = #tpu.dot_dimension_numbers<[1], [0], [0], [1], [0, 0, 1, 1], [], []>} : vector<64x64xf32>, vector<64x8xf32>, vector<64x8xf32> -> vector<64x8xf32>
    %52 = vector.extract_strided_slice %34 {offsets = [0, 8], sizes = [64, 8], strides = [1, 1]} : vector<64x96xf32> to vector<64x8xf32>
    %53 = vector.extract_strided_slice %34 {offsets = [0, 40], sizes = [64, 8], strides = [1, 1]} : vector<64x96xf32> to vector<64x8xf32>
    %54 = vector.extract_strided_slice %34 {offsets = [0, 72], sizes = [64, 8], strides = [1, 1]} : vector<64x96xf32> to vector<64x8xf32>
    %cst_24 = arith.constant dense<0.000000e+00> : vector<64x64xf32>
    %55 = tpu.matmul %52, %53, %cst_24 {dimension_numbers = #tpu.dot_dimension_numbers<[1], [1], [0], [0], [0, 0, 1, 0], [], []>} : vector<64x8xf32>, vector<64x8xf32>, vector<64x64xf32> -> vector<64x64xf32>
    %cst_25 = arith.constant 0.353553385 : f32
    %56 = vector.broadcast %cst_25 : f32 to vector<64x64xf32>
    %57 = arith.mulf %55, %56 : vector<64x64xf32>
    %cst_26 = arith.constant dense<0xFF800000> : vector<64xf32>
    %58 = vector.multi_reduction <maximumf>, %57, %cst_26 [1] : vector<64x64xf32> to vector<64xf32>
    %59 = vector.shape_cast %58 : vector<64xf32> to vector<64x1xf32>
    %60 = vector.broadcast %59 : vector<64x1xf32> to vector<64x64xf32>
    %61 = arith.subf %57, %60 : vector<64x64xf32>
    %62 = math.exp %61 : vector<64x64xf32>
    %cst_27 = arith.constant dense<0.000000e+00> : vector<64xf32>
    %63 = vector.multi_reduction <add>, %62, %cst_27 [1] : vector<64x64xf32> to vector<64xf32>
    %64 = vector.shape_cast %63 : vector<64xf32> to vector<64x1xf32>
    %65 = tpu.reciprocal %64 {approx = true} : vector<64x1xf32> -> vector<64x1xf32>
    %66 = vector.broadcast %65 : vector<64x1xf32> to vector<64x64xf32>
    %67 = arith.mulf %62, %66 : vector<64x64xf32>
    %cst_28 = arith.constant dense<0.000000e+00> : vector<64x8xf32>
    %68 = tpu.matmul %67, %54, %cst_28 {dimension_numbers = #tpu.dot_dimension_numbers<[1], [0], [0], [1], [0, 0, 1, 1], [], []>} : vector<64x64xf32>, vector<64x8xf32>, vector<64x8xf32> -> vector<64x8xf32>
    %69 = vector.extract_strided_slice %34 {offsets = [0, 16], sizes = [64, 8], strides = [1, 1]} : vector<64x96xf32> to vector<64x8xf32>
    %70 = vector.extract_strided_slice %34 {offsets = [0, 48], sizes = [64, 8], strides = [1, 1]} : vector<64x96xf32> to vector<64x8xf32>
    %71 = vector.extract_strided_slice %34 {offsets = [0, 80], sizes = [64, 8], strides = [1, 1]} : vector<64x96xf32> to vector<64x8xf32>
    %cst_29 = arith.constant dense<0.000000e+00> : vector<64x64xf32>
    %72 = tpu.matmul %69, %70, %cst_29 {dimension_numbers = #tpu.dot_dimension_numbers<[1], [1], [0], [0], [0, 0, 1, 0], [], []>} : vector<64x8xf32>, vector<64x8xf32>, vector<64x64xf32> -> vector<64x64xf32>
    %cst_30 = arith.constant 0.353553385 : f32
    %73 = vector.broadcast %cst_30 : f32 to vector<64x64xf32>
    %74 = arith.mulf %72, %73 : vector<64x64xf32>
    %cst_31 = arith.constant dense<0xFF800000> : vector<64xf32>
    %75 = vector.multi_reduction <maximumf>, %74, %cst_31 [1] : vector<64x64xf32> to vector<64xf32>
    %76 = vector.shape_cast %75 : vector<64xf32> to vector<64x1xf32>
    %77 = vector.broadcast %76 : vector<64x1xf32> to vector<64x64xf32>
    %78 = arith.subf %74, %77 : vector<64x64xf32>
    %79 = math.exp %78 : vector<64x64xf32>
    %cst_32 = arith.constant dense<0.000000e+00> : vector<64xf32>
    %80 = vector.multi_reduction <add>, %79, %cst_32 [1] : vector<64x64xf32> to vector<64xf32>
    %81 = vector.shape_cast %80 : vector<64xf32> to vector<64x1xf32>
    %82 = tpu.reciprocal %81 {approx = true} : vector<64x1xf32> -> vector<64x1xf32>
    %83 = vector.broadcast %82 : vector<64x1xf32> to vector<64x64xf32>
    %84 = arith.mulf %79, %83 : vector<64x64xf32>
    %cst_33 = arith.constant dense<0.000000e+00> : vector<64x8xf32>
    %85 = tpu.matmul %84, %71, %cst_33 {dimension_numbers = #tpu.dot_dimension_numbers<[1], [0], [0], [1], [0, 0, 1, 1], [], []>} : vector<64x64xf32>, vector<64x8xf32>, vector<64x8xf32> -> vector<64x8xf32>
    %86 = vector.extract_strided_slice %34 {offsets = [0, 24], sizes = [64, 8], strides = [1, 1]} : vector<64x96xf32> to vector<64x8xf32>
    %87 = vector.extract_strided_slice %34 {offsets = [0, 56], sizes = [64, 8], strides = [1, 1]} : vector<64x96xf32> to vector<64x8xf32>
    %88 = vector.extract_strided_slice %34 {offsets = [0, 88], sizes = [64, 8], strides = [1, 1]} : vector<64x96xf32> to vector<64x8xf32>
    %cst_34 = arith.constant dense<0.000000e+00> : vector<64x64xf32>
    %89 = tpu.matmul %86, %87, %cst_34 {dimension_numbers = #tpu.dot_dimension_numbers<[1], [1], [0], [0], [0, 0, 1, 0], [], []>} : vector<64x8xf32>, vector<64x8xf32>, vector<64x64xf32> -> vector<64x64xf32>
    %cst_35 = arith.constant 0.353553385 : f32
    %90 = vector.broadcast %cst_35 : f32 to vector<64x64xf32>
    %91 = arith.mulf %89, %90 : vector<64x64xf32>
    %cst_36 = arith.constant dense<0xFF800000> : vector<64xf32>
    %92 = vector.multi_reduction <maximumf>, %91, %cst_36 [1] : vector<64x64xf32> to vector<64xf32>
    %93 = vector.shape_cast %92 : vector<64xf32> to vector<64x1xf32>
    %94 = vector.broadcast %93 : vector<64x1xf32> to vector<64x64xf32>
    %95 = arith.subf %91, %94 : vector<64x64xf32>
    %96 = math.exp %95 : vector<64x64xf32>
    %cst_37 = arith.constant dense<0.000000e+00> : vector<64xf32>
    %97 = vector.multi_reduction <add>, %96, %cst_37 [1] : vector<64x64xf32> to vector<64xf32>
    %98 = vector.shape_cast %97 : vector<64xf32> to vector<64x1xf32>
    %99 = tpu.reciprocal %98 {approx = true} : vector<64x1xf32> -> vector<64x1xf32>
    %100 = vector.broadcast %99 : vector<64x1xf32> to vector<64x64xf32>
    %101 = arith.mulf %96, %100 : vector<64x64xf32>
    %cst_38 = arith.constant dense<0.000000e+00> : vector<64x8xf32>
    %102 = tpu.matmul %101, %88, %cst_38 {dimension_numbers = #tpu.dot_dimension_numbers<[1], [0], [0], [1], [0, 0, 1, 1], [], []>} : vector<64x64xf32>, vector<64x8xf32>, vector<64x8xf32> -> vector<64x8xf32>
    %103 = tpu.concatenate %51, %68, %85, %102 in 1 : vector<64x8xf32>, vector<64x8xf32>, vector<64x8xf32>, vector<64x8xf32> -> vector<64x32xf32>
    %c0_39 = arith.constant 0 : index
    %c0_40 = arith.constant 0 : index
    %c0_41 = arith.constant 0 : index
    %104 = vector.load %arg11[%c0_39, %c0_40, %c0_41] : memref<1x1x32xf32, #tpu.memory_space<vmem>>, vector<1x1x32xf32>
    %105 = vector.shape_cast %104 : vector<1x1x32xf32> to vector<1x32xf32>
    %106 = vector.broadcast %105 : vector<1x32xf32> to vector<64x32xf32>
    %107 = arith.addf %3, %106 : vector<64x32xf32>
    %c0_42 = arith.constant 0 : index
    %c0_43 = arith.constant 0 : index
    %c0_44 = arith.constant 0 : index
    %108 = vector.load %arg10[%c0_42, %c0_43, %c0_44] : memref<1x32x32xf32, #tpu.memory_space<vmem>>, vector<1x32x32xf32>
    %109 = vector.shape_cast %108 : vector<1x32x32xf32> to vector<32x32xf32>
    %cst_45 = arith.constant dense<0.000000e+00> : vector<64x32xf32>
    %110 = tpu.matmul %103, %109, %cst_45 {dimension_numbers = #tpu.dot_dimension_numbers<[1], [0], [0], [1], [0, 0, 1, 1], [], []>} : vector<64x32xf32>, vector<32x32xf32>, vector<64x32xf32> -> vector<64x32xf32>
    %111 = arith.addf %107, %110 : vector<64x32xf32>
    %c0_46 = arith.constant 0 : index
    %c0_47 = arith.constant 0 : index
    %c0_48 = arith.constant 0 : index
    %112 = vector.load %arg12[%c0_46, %c0_47, %c0_48] : memref<1x1x32xf32, #tpu.memory_space<vmem>>, vector<1x1x32xf32>
    %113 = vector.shape_cast %112 : vector<1x1x32xf32> to vector<1x32xf32>
    %c0_49 = arith.constant 0 : index
    %c0_50 = arith.constant 0 : index
    %c0_51 = arith.constant 0 : index
    %114 = vector.load %arg13[%c0_49, %c0_50, %c0_51] : memref<1x1x32xf32, #tpu.memory_space<vmem>>, vector<1x1x32xf32>
    %115 = vector.shape_cast %114 : vector<1x1x32xf32> to vector<1x32xf32>
    %cst_52 = arith.constant dense<0.000000e+00> : vector<64xf32>
    %116 = vector.multi_reduction <add>, %111, %cst_52 [1] : vector<64x32xf32> to vector<64xf32>
    %117 = vector.shape_cast %116 : vector<64xf32> to vector<64x1xf32>
    %cst_53 = arith.constant 3.200000e+01 : f32
    %118 = vector.broadcast %cst_53 : f32 to vector<64x1xf32>
    %119 = arith.divf %117, %118 : vector<64x1xf32>
    %120 = vector.broadcast %119 : vector<64x1xf32> to vector<64x32xf32>
    %121 = arith.subf %111, %120 : vector<64x32xf32>
    %122 = arith.mulf %121, %121 : vector<64x32xf32>
    %cst_54 = arith.constant dense<0.000000e+00> : vector<64xf32>
    %123 = vector.multi_reduction <add>, %122, %cst_54 [1] : vector<64x32xf32> to vector<64xf32>
    %124 = vector.shape_cast %123 : vector<64xf32> to vector<64x1xf32>
    %cst_55 = arith.constant 3.200000e+01 : f32
    %125 = vector.broadcast %cst_55 : f32 to vector<64x1xf32>
    %126 = arith.divf %124, %125 : vector<64x1xf32>
    %cst_56 = arith.constant 9.99999997E-7 : f32
    %127 = vector.broadcast %cst_56 : f32 to vector<64x1xf32>
    %128 = arith.addf %126, %127 : vector<64x1xf32>
    %129 = math.rsqrt %128 : vector<64x1xf32>
    %130 = vector.broadcast %129 : vector<64x1xf32> to vector<64x32xf32>
    %131 = arith.mulf %121, %130 : vector<64x32xf32>
    %132 = vector.broadcast %113 : vector<1x32xf32> to vector<64x32xf32>
    %133 = arith.mulf %131, %132 : vector<64x32xf32>
    %134 = vector.broadcast %115 : vector<1x32xf32> to vector<64x32xf32>
    %135 = arith.addf %133, %134 : vector<64x32xf32>
    %c0_57 = arith.constant 0 : index
    %c0_58 = arith.constant 0 : index
    %c0_59 = arith.constant 0 : index
    %136 = vector.load %arg14[%c0_57, %c0_58, %c0_59] : memref<1x32x64xf32, #tpu.memory_space<vmem>>, vector<1x32x64xf32>
    %137 = vector.shape_cast %136 : vector<1x32x64xf32> to vector<32x64xf32>
    %cst_60 = arith.constant dense<0.000000e+00> : vector<64x64xf32>
    %138 = tpu.matmul %135, %137, %cst_60 {dimension_numbers = #tpu.dot_dimension_numbers<[1], [0], [0], [1], [0, 0, 1, 1], [], []>} : vector<64x32xf32>, vector<32x64xf32>, vector<64x64xf32> -> vector<64x64xf32>
    %c0_61 = arith.constant 0 : index
    %c0_62 = arith.constant 0 : index
    %c0_63 = arith.constant 0 : index
    %139 = vector.load %arg15[%c0_61, %c0_62, %c0_63] : memref<1x1x64xf32, #tpu.memory_space<vmem>>, vector<1x1x64xf32>
    %140 = vector.shape_cast %139 : vector<1x1x64xf32> to vector<1x64xf32>
    %141 = vector.broadcast %140 : vector<1x64xf32> to vector<64x64xf32>
    %142 = arith.addf %138, %141 : vector<64x64xf32>
    %cst_64 = arith.constant 5.000000e-01 : f32
    %143 = vector.broadcast %cst_64 : f32 to vector<64x64xf32>
    %144 = arith.mulf %143, %142 : vector<64x64xf32>
    %cst_65 = arith.constant 0.707106769 : f32
    %145 = vector.broadcast %cst_65 : f32 to vector<64x64xf32>
    %146 = arith.mulf %142, %145 : vector<64x64xf32>
    %147 = math.erf %146 : vector<64x64xf32>
    %cst_66 = arith.constant 1.000000e+00 : f32
    %148 = vector.broadcast %cst_66 : f32 to vector<64x64xf32>
    %149 = arith.addf %148, %147 : vector<64x64xf32>
    %150 = arith.mulf %144, %149 : vector<64x64xf32>
    %c0_67 = arith.constant 0 : index
    %c0_68 = arith.constant 0 : index
    %c0_69 = arith.constant 0 : index
    %151 = vector.load %arg16[%c0_67, %c0_68, %c0_69] : memref<1x64x32xf32, #tpu.memory_space<vmem>>, vector<1x64x32xf32>
    %152 = vector.shape_cast %151 : vector<1x64x32xf32> to vector<64x32xf32>
    %cst_70 = arith.constant dense<0.000000e+00> : vector<64x32xf32>
    %153 = tpu.matmul %150, %152, %cst_70 {dimension_numbers = #tpu.dot_dimension_numbers<[1], [0], [0], [1], [0, 0, 1, 1], [], []>} : vector<64x64xf32>, vector<64x32xf32>, vector<64x32xf32> -> vector<64x32xf32>
    %c0_71 = arith.constant 0 : index
    %c0_72 = arith.constant 0 : index
    %c0_73 = arith.constant 0 : index
    %154 = vector.load %arg17[%c0_71, %c0_72, %c0_73] : memref<1x1x32xf32, #tpu.memory_space<vmem>>, vector<1x1x32xf32>
    %155 = vector.shape_cast %154 : vector<1x1x32xf32> to vector<1x32xf32>
    %156 = vector.broadcast %155 : vector<1x32xf32> to vector<64x32xf32>
    %157 = arith.addf %153, %156 : vector<64x32xf32>
    %158 = arith.addf %157, %111 : vector<64x32xf32>
    %c0_74 = arith.constant 0 : index
    %c0_75 = arith.constant 0 : index
    %159 = vector.load %arg26[%c0_74, %c0_75] : memref<64x32xf32, #tpu.memory_space<vmem>>, vector<64x32xf32>
    tpu.vector_store %arg26[%c0_74, %c0_75], %158 {strides = array<i32>} : memref<64x32xf32, #tpu.memory_space<vmem>>, vector<64x32xf32>,
    %c1_i32 = arith.constant 1 : i32
    %160 = arith.cmpi eq, %arg1, %c1_i32 : i32
    %161 = arith.extui %160 : i1 to i32
    %c0_i32_76 = arith.constant 0 : i32
    %162 = arith.cmpi ne, %161, %c0_i32_76 : i32
    scf.if %162 {
      %c0_77 = arith.constant 0 : index
      %c0_78 = arith.constant 0 : index
      %163 = vector.load %arg18[%c0_77, %c0_78] : memref<1x32xf32, #tpu.memory_space<vmem>>, vector<1x32xf32>
      %c0_79 = arith.constant 0 : index
      %c0_80 = arith.constant 0 : index
      %164 = vector.load %arg19[%c0_79, %c0_80] : memref<1x32xf32, #tpu.memory_space<vmem>>, vector<1x32xf32>
      %cst_81 = arith.constant dense<0.000000e+00> : vector<64xf32>
      %165 = vector.multi_reduction <add>, %158, %cst_81 [1] : vector<64x32xf32> to vector<64xf32>
      %166 = vector.shape_cast %165 : vector<64xf32> to vector<64x1xf32>
      %cst_82 = arith.constant 3.200000e+01 : f32
      %167 = vector.broadcast %cst_82 : f32 to vector<64x1xf32>
      %168 = arith.divf %166, %167 : vector<64x1xf32>
      %169 = vector.broadcast %168 : vector<64x1xf32> to vector<64x32xf32>
      %170 = arith.subf %158, %169 : vector<64x32xf32>
      %171 = arith.mulf %170, %170 : vector<64x32xf32>
      %cst_83 = arith.constant dense<0.000000e+00> : vector<64xf32>
      %172 = vector.multi_reduction <add>, %171, %cst_83 [1] : vector<64x32xf32> to vector<64xf32>
      %173 = vector.shape_cast %172 : vector<64xf32> to vector<64x1xf32>
      %cst_84 = arith.constant 3.200000e+01 : f32
      %174 = vector.broadcast %cst_84 : f32 to vector<64x1xf32>
      %175 = arith.divf %173, %174 : vector<64x1xf32>
      %cst_85 = arith.constant 9.99999997E-7 : f32
      %176 = vector.broadcast %cst_85 : f32 to vector<64x1xf32>
      %177 = arith.addf %175, %176 : vector<64x1xf32>
      %178 = math.rsqrt %177 : vector<64x1xf32>
      %179 = vector.broadcast %178 : vector<64x1xf32> to vector<64x32xf32>
      %180 = arith.mulf %170, %179 : vector<64x32xf32>
      %181 = vector.broadcast %163 : vector<1x32xf32> to vector<64x32xf32>
      %182 = arith.mulf %180, %181 : vector<64x32xf32>
      %183 = vector.broadcast %164 : vector<1x32xf32> to vector<64x32xf32>
      %184 = arith.addf %182, %183 : vector<64x32xf32>
      %c0_86 = arith.constant 0 : index
      %c0_87 = arith.constant 0 : index
      %185 = vector.load %arg20[%c0_86, %c0_87] : memref<3x32xf32, #tpu.memory_space<vmem>>, vector<3x32xf32>
      %cst_88 = arith.constant dense<0.000000e+00> : vector<3x64xf32>
      %186 = tpu.matmul %185, %184, %cst_88 {dimension_numbers = #tpu.dot_dimension_numbers<[1], [1], [0], [0], [0, 0, 1, 0], [], []>} : vector<3x32xf32>, vector<64x32xf32>, vector<3x64xf32> -> vector<3x64xf32>
      %c0_89 = arith.constant 0 : index
      %c0_90 = arith.constant 0 : index
      %187 = vector.load %arg21[%c0_89, %c0_90] : memref<3x1xf32, #tpu.memory_space<vmem>>, vector<3x1xf32>
      %188 = vector.broadcast %187 : vector<3x1xf32> to vector<3x64xf32>
      %189 = arith.mulf %186, %188 : vector<3x64xf32>
      %c0_91 = arith.constant 0 : index
      %c0_92 = arith.constant 0 : index
      %190 = vector.load %arg22[%c0_91, %c0_92] : memref<3x1xf32, #tpu.memory_space<vmem>>, vector<3x1xf32>
      %191 = vector.broadcast %190 : vector<3x1xf32> to vector<3x64xf32>
      %192 = arith.addf %189, %191 : vector<3x64xf32>
      %cst_93 = arith.constant 0.000000e+00 : f32
      %193 = vector.broadcast %cst_93 : f32 to vector<3x64xf32>
      %194 = arith.maximumf %192, %193 : vector<3x64xf32>
      %c0_94 = arith.constant 0 : index
      %c0_95 = arith.constant 0 : index
      %195 = vector.load %arg23[%c0_94, %c0_95] : memref<224x64xf32, #tpu.memory_space<vmem>>, vector<224x64xf32>
      %c0_96 = arith.constant 0 : index
      %c0_97 = arith.constant 0 : index
      %196 = vector.load %arg24[%c0_96, %c0_97] : memref<64x224xf32, #tpu.memory_space<vmem>>, vector<64x224xf32>
      %197 = vector.extract_strided_slice %194 {offsets = [0, 0], sizes = [1, 64], strides = [1, 1]} : vector<3x64xf32> to vector<1x64xf32>
      %198 = vector.broadcast %197 : vector<1x64xf32> to vector<224x64xf32>
      %199 = arith.mulf %195, %198 : vector<224x64xf32>
      %cst_98 = arith.constant dense<0.000000e+00> : vector<224x224xf32>
      %200 = tpu.matmul %199, %196, %cst_98 {dimension_numbers = #tpu.dot_dimension_numbers<[1], [0], [0], [1], [0, 0, 1, 1], [], []>} : vector<224x64xf32>, vector<64x224xf32>, vector<224x224xf32> -> vector<224x224xf32>
      %c0_99 = arith.constant 0 : index
      %c0_100 = arith.constant 0 : index
      %c0_101 = arith.constant 0 : index
      %c0_102 = arith.constant 0 : index
      %201 = vector.load %arg25[%c0_99, %c0_100, %c0_101, %c0_102] : memref<1x3x224x224xf32, #tpu.memory_space<vmem>>, vector<1x1x224x224xf32>
      %202 = vector.shape_cast %201 : vector<1x1x224x224xf32> to vector<224x224xf32>
      %203 = vector.shape_cast %200 : vector<224x224xf32> to vector<1x1x224x224xf32>
      tpu.vector_store %arg25[%c0_99, %c0_100, %c0_101, %c0_102], %203 {strides = array<i32>} : memref<1x3x224x224xf32, #tpu.memory_space<vmem>>, vector<1x1x224x224xf32>,
      %204 = vector.extract_strided_slice %194 {offsets = [1, 0], sizes = [1, 64], strides = [1, 1]} : vector<3x64xf32> to vector<1x64xf32>
      %205 = vector.broadcast %204 : vector<1x64xf32> to vector<224x64xf32>
      %206 = arith.mulf %195, %205 : vector<224x64xf32>
      %cst_103 = arith.constant dense<0.000000e+00> : vector<224x224xf32>
      %207 = tpu.matmul %206, %196, %cst_103 {dimension_numbers = #tpu.dot_dimension_numbers<[1], [0], [0], [1], [0, 0, 1, 1], [], []>} : vector<224x64xf32>, vector<64x224xf32>, vector<224x224xf32> -> vector<224x224xf32>
      %c0_104 = arith.constant 0 : index
      %c1 = arith.constant 1 : index
      %c0_105 = arith.constant 0 : index
      %c0_106 = arith.constant 0 : index
      %208 = vector.load %arg25[%c0_104, %c1, %c0_105, %c0_106] : memref<1x3x224x224xf32, #tpu.memory_space<vmem>>, vector<1x1x224x224xf32>
      %209 = vector.shape_cast %208 : vector<1x1x224x224xf32> to vector<224x224xf32>
      %210 = vector.shape_cast %207 : vector<224x224xf32> to vector<1x1x224x224xf32>
      tpu.vector_store %arg25[%c0_104, %c1, %c0_105, %c0_106], %210 {strides = array<i32>} : memref<1x3x224x224xf32, #tpu.memory_space<vmem>>, vector<1x1x224x224xf32>,
      %211 = vector.extract_strided_slice %194 {offsets = [2, 0], sizes = [1, 64], strides = [1, 1]} : vector<3x64xf32> to vector<1x64xf32>
      %212 = vector.broadcast %211 : vector<1x64xf32> to vector<224x64xf32>
      %213 = arith.mulf %195, %212 : vector<224x64xf32>
      %cst_107 = arith.constant dense<0.000000e+00> : vector<224x224xf32>
      %214 = tpu.matmul %213, %196, %cst_107 {dimension_numbers = #tpu.dot_dimension_numbers<[1], [0], [0], [1], [0, 0, 1, 1], [], []>} : vector<224x64xf32>, vector<64x224xf32>, vector<224x224xf32> -> vector<224x224xf32>
      %c0_108 = arith.constant 0 : index
      %c2 = arith.constant 2 : index
      %c0_109 = arith.constant 0 : index
      %c0_110 = arith.constant 0 : index
      %215 = vector.load %arg25[%c0_108, %c2, %c0_109, %c0_110] : memref<1x3x224x224xf32, #tpu.memory_space<vmem>>, vector<1x1x224x224xf32>
      %216 = vector.shape_cast %215 : vector<1x1x224x224xf32> to vector<224x224xf32>
      %217 = vector.shape_cast %214 : vector<224x224xf32> to vector<1x1x224x224xf32>
      tpu.vector_store %arg25[%c0_108, %c2, %c0_109, %c0_110], %217 {strides = array<i32>} : memref<1x3x224x224xf32, #tpu.memory_space<vmem>>, vector<1x1x224x224xf32>,
    } else {
    }
    return
  }
  func.func @transform_0(%arg0: i32, %arg1: i32) -> (i32, i32, i32) {
    %c0_i32 = arith.constant 0 : i32
    %c0_i32_0 = arith.constant 0 : i32
    %c0_i32_1 = arith.constant 0 : i32
    return %arg0, %c0_i32, %c0_i32_0 : i32, i32, i32
  }
  func.func @transform_1(%arg0: i32, %arg1: i32) -> (i32, i32) {
    %c0_i32 = arith.constant 0 : i32
    %c0_i32_0 = arith.constant 0 : i32
    %c0_i32_1 = arith.constant 0 : i32
    return %c0_i32, %c0_i32_0 : i32, i32
  }
  func.func @transform_2(%arg0: i32, %arg1: i32) -> (i32, i32) {
    %c0_i32 = arith.constant 0 : i32
    %c0_i32_0 = arith.constant 0 : i32
    %c0_i32_1 = arith.constant 0 : i32
    return %c0_i32, %c0_i32_0 : i32, i32
  }
  func.func @transform_3(%arg0: i32, %arg1: i32) -> (i32, i32) {
    %c0_i32 = arith.constant 0 : i32
    %c0_i32_0 = arith.constant 0 : i32
    %c0_i32_1 = arith.constant 0 : i32
    return %c0_i32, %c0_i32_0 : i32, i32
  }
  func.func @transform_4(%arg0: i32, %arg1: i32) -> (i32, i32, i32) {
    %c0_i32 = arith.constant 0 : i32
    %c0_i32_0 = arith.constant 0 : i32
    %c0_i32_1 = arith.constant 0 : i32
    return %arg1, %c0_i32, %c0_i32_0 : i32, i32, i32
  }
  func.func @transform_5(%arg0: i32, %arg1: i32) -> (i32, i32, i32) {
    %c0_i32 = arith.constant 0 : i32
    %c0_i32_0 = arith.constant 0 : i32
    %c0_i32_1 = arith.constant 0 : i32
    return %arg1, %c0_i32, %c0_i32_0 : i32, i32, i32
  }
  func.func @transform_6(%arg0: i32, %arg1: i32) -> (i32, i32, i32) {
    %c0_i32 = arith.constant 0 : i32
    %c0_i32_0 = arith.constant 0 : i32
    %c0_i32_1 = arith.constant 0 : i32
    return %arg1, %c0_i32, %c0_i32_0 : i32, i32, i32
  }
  func.func @transform_7(%arg0: i32, %arg1: i32) -> (i32, i32, i32) {
    %c0_i32 = arith.constant 0 : i32
    %c0_i32_0 = arith.constant 0 : i32
    %c0_i32_1 = arith.constant 0 : i32
    return %arg1, %c0_i32, %c0_i32_0 : i32, i32, i32
  }
  func.func @transform_8(%arg0: i32, %arg1: i32) -> (i32, i32, i32) {
    %c0_i32 = arith.constant 0 : i32
    %c0_i32_0 = arith.constant 0 : i32
    %c0_i32_1 = arith.constant 0 : i32
    return %arg1, %c0_i32, %c0_i32_0 : i32, i32, i32
  }
  func.func @transform_9(%arg0: i32, %arg1: i32) -> (i32, i32, i32) {
    %c0_i32 = arith.constant 0 : i32
    %c0_i32_0 = arith.constant 0 : i32
    %c0_i32_1 = arith.constant 0 : i32
    return %arg1, %c0_i32, %c0_i32_0 : i32, i32, i32
  }
  func.func @transform_10(%arg0: i32, %arg1: i32) -> (i32, i32, i32) {
    %c0_i32 = arith.constant 0 : i32
    %c0_i32_0 = arith.constant 0 : i32
    %c0_i32_1 = arith.constant 0 : i32
    return %arg1, %c0_i32, %c0_i32_0 : i32, i32, i32
  }
  func.func @transform_11(%arg0: i32, %arg1: i32) -> (i32, i32, i32) {
    %c0_i32 = arith.constant 0 : i32
    %c0_i32_0 = arith.constant 0 : i32
    %c0_i32_1 = arith.constant 0 : i32
    return %arg1, %c0_i32, %c0_i32_0 : i32, i32, i32
  }
  func.func @transform_12(%arg0: i32, %arg1: i32) -> (i32, i32, i32) {
    %c0_i32 = arith.constant 0 : i32
    %c0_i32_0 = arith.constant 0 : i32
    %c0_i32_1 = arith.constant 0 : i32
    return %arg1, %c0_i32, %c0_i32_0 : i32, i32, i32
  }
  func.func @transform_13(%arg0: i32, %arg1: i32) -> (i32, i32, i32) {
    %c0_i32 = arith.constant 0 : i32
    %c0_i32_0 = arith.constant 0 : i32
    %c0_i32_1 = arith.constant 0 : i32
    return %arg1, %c0_i32, %c0_i32_0 : i32, i32, i32
  }
  func.func @transform_14(%arg0: i32, %arg1: i32) -> (i32, i32, i32) {
    %c0_i32 = arith.constant 0 : i32
    %c0_i32_0 = arith.constant 0 : i32
    %c0_i32_1 = arith.constant 0 : i32
    return %arg1, %c0_i32, %c0_i32_0 : i32, i32, i32
  }
  func.func @transform_15(%arg0: i32, %arg1: i32) -> (i32, i32, i32) {
    %c0_i32 = arith.constant 0 : i32
    %c0_i32_0 = arith.constant 0 : i32
    %c0_i32_1 = arith.constant 0 : i32
    return %arg1, %c0_i32, %c0_i32_0 : i32, i32, i32
  }
  func.func @transform_16(%arg0: i32, %arg1: i32) -> (i32, i32) {
    %c0_i32 = arith.constant 0 : i32
    %c0_i32_0 = arith.constant 0 : i32
    %c0_i32_1 = arith.constant 0 : i32
    return %c0_i32, %c0_i32_0 : i32, i32
  }
  func.func @transform_17(%arg0: i32, %arg1: i32) -> (i32, i32) {
    %c0_i32 = arith.constant 0 : i32
    %c0_i32_0 = arith.constant 0 : i32
    %c0_i32_1 = arith.constant 0 : i32
    return %c0_i32, %c0_i32_0 : i32, i32
  }
  func.func @transform_18(%arg0: i32, %arg1: i32) -> (i32, i32) {
    %c0_i32 = arith.constant 0 : i32
    %c0_i32_0 = arith.constant 0 : i32
    %c0_i32_1 = arith.constant 0 : i32
    return %c0_i32, %c0_i32_0 : i32, i32
  }
  func.func @transform_19(%arg0: i32, %arg1: i32) -> (i32, i32) {
    %c0_i32 = arith.constant 0 : i32
    %c0_i32_0 = arith.constant 0 : i32
    %c0_i32_1 = arith.constant 0 : i32
    return %c0_i32, %c0_i32_0 : i32, i32
  }
  func.func @transform_20(%arg0: i32, %arg1: i32) -> (i32, i32) {
    %c0_i32 = arith.constant 0 : i32
    %c0_i32_0 = arith.constant 0 : i32
    %c0_i32_1 = arith.constant 0 : i32
    return %c0_i32, %c0_i32_0 : i32, i32
  }
  func.func @transform_21(%arg0: i32, %arg1: i32) -> (i32, i32) {
    %c0_i32 = arith.constant 0 : i32
    %c0_i32_0 = arith.constant 0 : i32
    %c0_i32_1 = arith.constant 0 : i32
    return %c0_i32, %c0_i32_0 : i32, i32
  }
  func.func @transform_22(%arg0: i32, %arg1: i32) -> (i32, i32) {
    %c0_i32 = arith.constant 0 : i32
    %c0_i32_0 = arith.constant 0 : i32
    %c0_i32_1 = arith.constant 0 : i32
    return %c0_i32, %c0_i32_0 : i32, i32
  }
  func.func @transform_23(%arg0: i32, %arg1: i32) -> (i32, i32, i32, i32) {
    %c0_i32 = arith.constant 0 : i32
    %c0_i32_0 = arith.constant 0 : i32
    %c0_i32_1 = arith.constant 0 : i32
    %c0_i32_2 = arith.constant 0 : i32
    return %arg0, %c0_i32, %c0_i32_0, %c0_i32_1 : i32, i32, i32, i32
  }
}

</mosaic_0001>

<llo_original>
// kernel: vit_none_forward.1
$region0: #{vit_none_forward.1}
  #allocation0 [shape = 'u32[]', space=smem, size = 0x4, offset = 0x4, fixed_abs, tag = 'smem constant byte address 0x4 - core index']
  #allocation1 [shape = 'u32[144,128]{1,0:T(1,128)}', space=vmem, size = 0x12000, scoped, tag = 'internal scratch']
  #allocation2 [shape = 'f32[64,32]{1,0:T(8,128)}', space=vmem, size = 0x8000, scoped, tag = 'scratch operand']
  %s0 = inlined_call_operand.vmem [shape: f32[2,64,48], index: 0, kind: input, shape index: {}]
  %s1 = inlined_call_operand.vmem [shape: f32[48,32], index: 1, kind: input, shape index: {}]
  %s2 = inlined_call_operand.vmem [shape: f32[1,32], index: 2, kind: input, shape index: {}]
  %s3 = inlined_call_operand.vmem [shape: f32[64,32], index: 3, kind: input, shape index: {}]
  %s4 = inlined_call_operand.vmem [shape: f32[2,1,32], index: 4, kind: input, shape index: {}]
  %s5 = inlined_call_operand.vmem [shape: f32[2,1,32], index: 5, kind: input, shape index: {}]
  %s6 = inlined_call_operand.vmem [shape: f32[2,32,96], index: 6, kind: input, shape index: {}]
  %s7 = inlined_call_operand.vmem [shape: f32[2,1,96], index: 7, kind: input, shape index: {}]
  %s8 = inlined_call_operand.vmem [shape: f32[2,32,32], index: 8, kind: input, shape index: {}]
  %s9 = inlined_call_operand.vmem [shape: f32[2,1,32], index: 9, kind: input, shape index: {}]
  %s10 = inlined_call_operand.vmem [shape: f32[2,1,32], index: 10, kind: input, shape index: {}]
  %s11 = inlined_call_operand.vmem [shape: f32[2,1,32], index: 11, kind: input, shape index: {}]
  %s12 = inlined_call_operand.vmem [shape: f32[2,32,64], index: 12, kind: input, shape index: {}]
  %s13 = inlined_call_operand.vmem [shape: f32[2,1,64], index: 13, kind: input, shape index: {}]
  %s14 = inlined_call_operand.vmem [shape: f32[2,64,32], index: 14, kind: input, shape index: {}]
  %s15 = inlined_call_operand.vmem [shape: f32[2,1,32], index: 15, kind: input, shape index: {}]
  %s16 = inlined_call_operand.vmem [shape: f32[1,32], index: 16, kind: input, shape index: {}]
  %s17 = inlined_call_operand.vmem [shape: f32[1,32], index: 17, kind: input, shape index: {}]
  %s18 = inlined_call_operand.vmem [shape: f32[3,32], index: 18, kind: input, shape index: {}]
  %s19 = inlined_call_operand.vmem [shape: f32[3,1], index: 19, kind: input, shape index: {}]
  %s20 = inlined_call_operand.vmem [shape: f32[3,1], index: 20, kind: input, shape index: {}]
  %s21 = inlined_call_operand.vmem [shape: f32[224,64], index: 21, kind: input, shape index: {}]
  %s22 = inlined_call_operand.vmem [shape: f32[64,224], index: 22, kind: input, shape index: {}]
  %s23 = inlined_call_operand.hbm [shape: f32[2,3,224,224], index: 23, kind: output, shape index: {}]
  %s24 = sld [smem:[#allocation0]]
  $region133: #{vit_none_forward.1} parent=0
    _
  %s26 = ssub.s32 1, %s24
  %s27 = scalar_select 0, %s26, %s24
  $region1: #{vit_none_forward.1} parent=0
    #allocation3 [shape = 'u8[1376256]{0}', space=vmem, size = 0x150000, scoped, tag = 'output window, operand 0']
    #allocation4 [shape = 's32[2]{0}', space=sflag, size = 0x8, scoped, tag = 'scoped memory for vit_none_forward.1']
    %28 = vsyncpa [#allocation4], 0
    %s29 = scalar_lea.sflag [#allocation4], 1
    %30 = vsyncpa %s29, 0
    loop: start=0, step=1, limit=6
    $region2: #{vit_none_forward.1} parent=1 // loop_pre_header
      _
    $region3: #{vit_none_forward.1} parent=1 // loop_header
      %s32 = sphi 0, %s36
      %p33 = scmp.ge.s32.totalorder %s32, 6
      %s39 = sphi 0, %s51
      %s40 = sphi 0, %s47
      %s41 = sphi 0, %s39
      %s42 = sphi 0, %s40
      %s43 = sphi 0, %s41
      %s44 = sphi 0, %s42
      %s54 = sphi 0, %s56
      %s57 = sphi 0, %s54
      %s58 = sphi 0, %s57
      %s74 = sphi 0, %s58
      %s78 = sphi 0, %s78
      %s80 = sphi 0, %s78
      %s81 = sphi 0, %s80
      %s95 = sphi 0, %s81
      %s99 = sphi 0, %s99
      %s101 = sphi 0, %s99
      %s102 = sphi 0, %s101
      %s116 = sphi 0, %s102
      %s120 = sphi 0, %s120
      %s122 = sphi 0, %s120
      %s123 = sphi 0, %s122
      %s137 = sphi 0, %s123
      %s143 = sphi 0, %s145
      %s146 = sphi 0, %s143
      %s147 = sphi 0, %s146
      %s163 = sphi 0, %s147
      %s169 = sphi 0, %s171
      %s172 = sphi 0, %s169
      %s173 = sphi 0, %s172
      %s189 = sphi 0, %s173
      %s195 = sphi 0, %s197
      %s198 = sphi 0, %s195
      %s199 = sphi 0, %s198
      %s215 = sphi 0, %s199
      %s221 = sphi 0, %s223
      %s224 = sphi 0, %s221
      %s225 = sphi 0, %s224
      %s241 = sphi 0, %s225
      %s247 = sphi 0, %s249
      %s250 = sphi 0, %s247
      %s251 = sphi 0, %s250
      %s267 = sphi 0, %s251
      %s273 = sphi 0, %s275
      %s276 = sphi 0, %s273
      %s277 = sphi 0, %s276
      %s293 = sphi 0, %s277
      %s299 = sphi 0, %s301
      %s302 = sphi 0, %s299
      %s303 = sphi 0, %s302
      %s319 = sphi 0, %s303
      %s325 = sphi 0, %s327
      %s328 = sphi 0, %s325
      %s329 = sphi 0, %s328
      %s345 = sphi 0, %s329
      %s351 = sphi 0, %s353
      %s354 = sphi 0, %s351
      %s355 = sphi 0, %s354
      %s371 = sphi 0, %s355
      %s377 = sphi 0, %s379
      %s380 = sphi 0, %s377
      %s381 = sphi 0, %s380
      %s397 = sphi 0, %s381
      %s403 = sphi 0, %s405
      %s406 = sphi 0, %s403
      %s407 = sphi 0, %s406
      %s423 = sphi 0, %s407
      %s429 = sphi 0, %s431
      %s432 = sphi 0, %s429
      %s433 = sphi 0, %s432
      %s449 = sphi 0, %s433
      %s453 = sphi 0, %s453
      %s455 = sphi 0, %s453
      %s456 = sphi 0, %s455
      %s470 = sphi 0, %s456
      %s474 = sphi 0, %s474
      %s476 = sphi 0, %s474
      %s477 = sphi 0, %s476
      %s491 = sphi 0, %s477
      %s495 = sphi 0, %s495
      %s497 = sphi 0, %s495
      %s498 = sphi 0, %s497
      %s512 = sphi 0, %s498
      %s516 = sphi 0, %s516
      %s518 = sphi 0, %s516
      %s519 = sphi 0, %s518
      %s533 = sphi 0, %s519
      %s537 = sphi 0, %s537
      %s539 = sphi 0, %s537
      %s540 = sphi 0, %s539
      %s554 = sphi 0, %s540
      %s558 = sphi 0, %s558
      %s560 = sphi 0, %s558
      %s561 = sphi 0, %s560
      %s575 = sphi 0, %s561
      %s579 = sphi 0, %s579
      %s581 = sphi 0, %s579
      %s582 = sphi 0, %s581
      %s596 = sphi 0, %s582
      %s602 = sphi 0, %s604
      %s605 = sphi 0, %s602
      %s606 = sphi 0, %s605
      %s622 = sphi 0, %s606
    $region4: #{vit_none_forward.1} parent=1 // loop_header_branch
      %35 = sbr.rel (%p33) target = $region8
    $region5: #{vit_none_forward.1} parent=1 // loop_body
      %s37 = ssub.s32 %s32, 1
      %s38 = ssub.s32 %s32, 2
      %s45 = sadd.s32 1, %s40
      %p46 = scmp.ge.s32.totalorder %s45, 2
      %s47 = scalar_select %p46, 0, %s45
      %s48 = sadd.s32 1, %s39
      %s49 = scalar_select %p46, %s48, %s39
      %p50 = scmp.ge.s32.totalorder %s49, 2
      %s51 = scalar_select %p50, 0, %s49
      %s52 = ssub.s32 %s39, %s51
      %p53 = scmp.eq.s32.totalorder %s52, 0
      %s55 = sadd.s32 %s54, 1
      %s56 = scalar_select %p53, %s54, %s55
      %p59 = pneg %p53
      %p60 = scmp.eq.s32.totalorder %s32, 3
      %p61 = por %p59, %p60
      %p62 = scmp.ne.s32.totalorder %s54, %s57
      %p63 = scmp.eq.s32.totalorder %s32, 0
      %p64 = por %p62, %p63
      %p65 = scmp.ne.s32.totalorder %s54, %s57
      %p66 = scmp.eq.s32.totalorder %s37, 3
      %p67 = por %p65, %p66
      %p68 = scmp.ne.s32.totalorder %s57, %s58
      %p69 = scmp.eq.s32.totalorder %s37, 0
      %p70 = por %p68, %p69
      %p71 = scmp.ne.s32.totalorder %s57, %s58
      %p72 = scmp.eq.s32.totalorder %s38, 3
      %p73 = por %p71, %p72
      %p75 = scmp.ne.s32.totalorder %s58, %s74
      %p76 = scmp.eq.s32.totalorder %s38, 0
      %p77 = por %p75, %p76
      %s79 = sadd.s32 %s78, 1
      %p82 = scmp.eq.s32.totalorder %s32, 3
      %p83 = scmp.ne.s32.totalorder %s78, %s80
      %p84 = scmp.eq.s32.totalorder %s32, 0
      %p85 = por %p83, %p84
      %p86 = scmp.ne.s32.totalorder %s78, %s80
      %p87 = scmp.eq.s32.totalorder %s37, 3
      %p88 = por %p86, %p87
      %p89 = scmp.ne.s32.totalorder %s80, %s81
      %p90 = scmp.eq.s32.totalorder %s37, 0
      %p91 = por %p89, %p90
      %p92 = scmp.ne.s32.totalorder %s80, %s81
      %p93 = scmp.eq.s32.totalorder %s38, 3
      %p94 = por %p92, %p93
      %p96 = scmp.ne.s32.totalorder %s81, %s95
      %p97 = scmp.eq.s32.totalorder %s38, 0
      %p98 = por %p96, %p97
      %s100 = sadd.s32 %s99, 1
      %p103 = scmp.eq.s32.totalorder %s32, 3
      %p104 = scmp.ne.s32.totalorder %s99, %s101
      %p105 = scmp.eq.s32.totalorder %s32, 0
      %p106 = por %p104, %p105
      %p107 = scmp.ne.s32.totalorder %s99, %s101
      %p108 = scmp.eq.s32.totalorder %s37, 3
      %p109 = por %p107, %p108
      %p110 = scmp.ne.s32.totalorder %s101, %s102
      %p111 = scmp.eq.s32.totalorder %s37, 0
      %p112 = por %p110, %p111
      %p113 = scmp.ne.s32.totalorder %s101, %s102
      %p114 = scmp.eq.s32.totalorder %s38, 3
      %p115 = por %p113, %p114
      %p117 = scmp.ne.s32.totalorder %s102, %s116
      %p118 = scmp.eq.s32.totalorder %s38, 0
      %p119 = por %p117, %p118
      %s121 = sadd.s32 %s120, 1
      %p124 = scmp.eq.s32.totalorder %s32, 3
      %p125 = scmp.ne.s32.totalorder %s120, %s122
      %p126 = scmp.eq.s32.totalorder %s32, 0
      %p127 = por %p125, %p126
      %p128 = scmp.ne.s32.totalorder %s120, %s122
      %p129 = scmp.eq.s32.totalorder %s37, 3
      %p130 = por %p128, %p129
      %p131 = scmp.ne.s32.totalorder %s122, %s123
      %p132 = scmp.eq.s32.totalorder %s37, 0
      %p133 = por %p131, %p132
      %p134 = scmp.ne.s32.totalorder %s122, %s123
      %p135 = scmp.eq.s32.totalorder %s38, 3
      %p136 = por %p134, %p135
      %p138 = scmp.ne.s32.totalorder %s123, %s137
      %p139 = scmp.eq.s32.totalorder %s38, 0
      %p140 = por %p138, %p139
      %s141 = ssub.s32 %s40, %s47
      %p142 = scmp.eq.s32.totalorder %s141, 0
      %s144 = sadd.s32 %s143, 1
      %s145 = scalar_select %p142, %s143, %s144
      %p148 = pneg %p142
      %p149 = scmp.eq.s32.totalorder %s32, 3
      %p150 = por %p148, %p149
      %p151 = scmp.ne.s32.totalorder %s143, %s146
      %p152 = scmp.eq.s32.totalorder %s32, 0
      %p153 = por %p151, %p152
      %p154 = scmp.ne.s32.totalorder %s143, %s146
      %p155 = scmp.eq.s32.totalorder %s37, 3
      %p156 = por %p154, %p155
      %p157 = scmp.ne.s32.totalorder %s146, %s147
      %p158 = scmp.eq.s32.totalorder %s37, 0
      %p159 = por %p157, %p158
      %p160 = scmp.ne.s32.totalorder %s146, %s147
      %p161 = scmp.eq.s32.totalorder %s38, 3
      %p162 = por %p160, %p161
      %p164 = scmp.ne.s32.totalorder %s147, %s163
      %p165 = scmp.eq.s32.totalorder %s38, 0
      %p166 = por %p164, %p165
      %s167 = ssub.s32 %s40, %s47
      %p168 = scmp.eq.s32.totalorder %s167, 0
      %s170 = sadd.s32 %s169, 1
      %s171 = scalar_select %p168, %s169, %s170
      %p174 = pneg %p168
      %p175 = scmp.eq.s32.totalorder %s32, 3
      %p176 = por %p174, %p175
      %p177 = scmp.ne.s32.totalorder %s169, %s172
      %p178 = scmp.eq.s32.totalorder %s32, 0
      %p179 = por %p177, %p178
      %p180 = scmp.ne.s32.totalorder %s169, %s172
      %p181 = scmp.eq.s32.totalorder %s37, 3
      %p182 = por %p180, %p181
      %p183 = scmp.ne.s32.totalorder %s172, %s173
      %p184 = scmp.eq.s32.totalorder %s37, 0
      %p185 = por %p183, %p184
      %p186 = scmp.ne.s32.totalorder %s172, %s173
      %p187 = scmp.eq.s32.totalorder %s38, 3
      %p188 = por %p186, %p187
      %p190 = scmp.ne.s32.totalorder %s173, %s189
      %p191 = scmp.eq.s32.totalorder %s38, 0
      %p192 = por %p190, %p191
      %s193 = ssub.s32 %s40, %s47
      %p194 = scmp.eq.s32.totalorder %s193, 0
      %s196 = sadd.s32 %s195, 1
      %s197 = scalar_select %p194, %s195, %s196
      %p200 = pneg %p194
      %p201 = scmp.eq.s32.totalorder %s32, 3
      %p202 = por %p200, %p201
      %p203 = scmp.ne.s32.totalorder %s195, %s198
      %p204 = scmp.eq.s32.totalorder %s32, 0
      %p205 = por %p203, %p204
      %p206 = scmp.ne.s32.totalorder %s195, %s198
      %p207 = scmp.eq.s32.totalorder %s37, 3
      %p208 = por %p206, %p207
      %p209 = scmp.ne.s32.totalorder %s198, %s199
      %p210 = scmp.eq.s32.totalorder %s37, 0
      %p211 = por %p209, %p210
      %p212 = scmp.ne.s32.totalorder %s198, %s199
      %p213 = scmp.eq.s32.totalorder %s38, 3
      %p214 = por %p212, %p213
      %p216 = scmp.ne.s32.totalorder %s199, %s215
      %p217 = scmp.eq.s32.totalorder %s38, 0
      %p218 = por %p216, %p217
      %s219 = ssub.s32 %s40, %s47
      %p220 = scmp.eq.s32.totalorder %s219, 0
      %s222 = sadd.s32 %s221, 1
      %s223 = scalar_select %p220, %s221, %s222
      %p226 = pneg %p220
      %p227 = scmp.eq.s32.totalorder %s32, 3
      %p228 = por %p226, %p227
      %p229 = scmp.ne.s32.totalorder %s221, %s224
      %p230 = scmp.eq.s32.totalorder %s32, 0
      %p231 = por %p229, %p230
      %p232 = scmp.ne.s32.totalorder %s221, %s224
      %p233 = scmp.eq.s32.totalorder %s37, 3
      %p234 = por %p232, %p233
      %p235 = scmp.ne.s32.totalorder %s224, %s225
      %p236 = scmp.eq.s32.totalorder %s37, 0
      %p237 = por %p235, %p236
      %p238 = scmp.ne.s32.totalorder %s224, %s225
      %p239 = scmp.eq.s32.totalorder %s38, 3
      %p240 = por %p238, %p239
      %p242 = scmp.ne.s32.totalorder %s225, %s241
      %p243 = scmp.eq.s32.totalorder %s38, 0
      %p244 = por %p242, %p243
      %s245 = ssub.s32 %s40, %s47
      %p246 = scmp.eq.s32.totalorder %s245, 0
      %s248 = sadd.s32 %s247, 1
      %s249 = scalar_select %p246, %s247, %s248
      %p252 = pneg %p246
      %p253 = scmp.eq.s32.totalorder %s32, 3
      %p254 = por %p252, %p253
      %p255 = scmp.ne.s32.totalorder %s247, %s250
      %p256 = scmp.eq.s32.totalorder %s32, 0
      %p257 = por %p255, %p256
      %p258 = scmp.ne.s32.totalorder %s247, %s250
      %p259 = scmp.eq.s32.totalorder %s37, 3
      %p260 = por %p258, %p259
      %p261 = scmp.ne.s32.totalorder %s250, %s251
      %p262 = scmp.eq.s32.totalorder %s37, 0
      %p263 = por %p261, %p262
      %p264 = scmp.ne.s32.totalorder %s250, %s251
      %p265 = scmp.eq.s32.totalorder %s38, 3
      %p266 = por %p264, %p265
      %p268 = scmp.ne.s32.totalorder %s251, %s267
      %p269 = scmp.eq.s32.totalorder %s38, 0
      %p270 = por %p268, %p269
      %s271 = ssub.s32 %s40, %s47
      %p272 = scmp.eq.s32.totalorder %s271, 0
      %s274 = sadd.s32 %s273, 1
      %s275 = scalar_select %p272, %s273, %s274
      %p278 = pneg %p272
      %p279 = scmp.eq.s32.totalorder %s32, 3
      %p280 = por %p278, %p279
      %p281 = scmp.ne.s32.totalorder %s273, %s276
      %p282 = scmp.eq.s32.totalorder %s32, 0
      %p283 = por %p281, %p282
      %p284 = scmp.ne.s32.totalorder %s273, %s276
      %p285 = scmp.eq.s32.totalorder %s37, 3
      %p286 = por %p284, %p285
      %p287 = scmp.ne.s32.totalorder %s276, %s277
      %p288 = scmp.eq.s32.totalorder %s37, 0
      %p289 = por %p287, %p288
      %p290 = scmp.ne.s32.totalorder %s276, %s277
      %p291 = scmp.eq.s32.totalorder %s38, 3
      %p292 = por %p290, %p291
      %p294 = scmp.ne.s32.totalorder %s277, %s293
      %p295 = scmp.eq.s32.totalorder %s38, 0
      %p296 = por %p294, %p295
      %s297 = ssub.s32 %s40, %s47
      %p298 = scmp.eq.s32.totalorder %s297, 0
      %s300 = sadd.s32 %s299, 1
      %s301 = scalar_select %p298, %s299, %s300
      %p304 = pneg %p298
      %p305 = scmp.eq.s32.totalorder %s32, 3
      %p306 = por %p304, %p305
      %p307 = scmp.ne.s32.totalorder %s299, %s302
      %p308 = scmp.eq.s32.totalorder %s32, 0
      %p309 = por %p307, %p308
      %p310 = scmp.ne.s32.totalorder %s299, %s302
      %p311 = scmp.eq.s32.totalorder %s37, 3
      %p312 = por %p310, %p311
      %p313 = scmp.ne.s32.totalorder %s302, %s303
      %p314 = scmp.eq.s32.totalorder %s37, 0
      %p315 = por %p313, %p314
      %p316 = scmp.ne.s32.totalorder %s302, %s303
      %p317 = scmp.eq.s32.totalorder %s38, 3
      %p318 = por %p316, %p317
      %p320 = scmp.ne.s32.totalorder %s303, %s319
      %p321 = scmp.eq.s32.totalorder %s38, 0
      %p322 = por %p320, %p321
      %s323 = ssub.s32 %s40, %s47
      %p324 = scmp.eq.s32.totalorder %s323, 0
      %s326 = sadd.s32 %s325, 1
      %s327 = scalar_select %p324, %s325, %s326
      %p330 = pneg %p324
      %p331 = scmp.eq.s32.totalorder %s32, 3
      %p332 = por %p330, %p331
      %p333 = scmp.ne.s32.totalorder %s325, %s328
      %p334 = scmp.eq.s32.totalorder %s32, 0
      %p335 = por %p333, %p334
      %p336 = scmp.ne.s32.totalorder %s325, %s328
      %p337 = scmp.eq.s32.totalorder %s37, 3
      %p338 = por %p336, %p337
      %p339 = scmp.ne.s32.totalorder %s328, %s329
      %p340 = scmp.eq.s32.totalorder %s37, 0
      %p341 = por %p339, %p340
      %p342 = scmp.ne.s32.totalorder %s328, %s329
      %p343 = scmp.eq.s32.totalorder %s38, 3
      %p344 = por %p342, %p343
      %p346 = scmp.ne.s32.totalorder %s329, %s345
      %p347 = scmp.eq.s32.totalorder %s38, 0
      %p348 = por %p346, %p347
      %s349 = ssub.s32 %s40, %s47
      %p350 = scmp.eq.s32.totalorder %s349, 0
      %s352 = sadd.s32 %s351, 1
      %s353 = scalar_select %p350, %s351, %s352
      %p356 = pneg %p350
      %p357 = scmp.eq.s32.totalorder %s32, 3
      %p358 = por %p356, %p357
      %p359 = scmp.ne.s32.totalorder %s351, %s354
      %p360 = scmp.eq.s32.totalorder %s32, 0
      %p361 = por %p359, %p360
      %p362 = scmp.ne.s32.totalorder %s351, %s354
      %p363 = scmp.eq.s32.totalorder %s37, 3
      %p364 = por %p362, %p363
      %p365 = scmp.ne.s32.totalorder %s354, %s355
      %p366 = scmp.eq.s32.totalorder %s37, 0
      %p367 = por %p365, %p366
      %p368 = scmp.ne.s32.totalorder %s354, %s355
      %p369 = scmp.eq.s32.totalorder %s38, 3
      %p370 = por %p368, %p369
      %p372 = scmp.ne.s32.totalorder %s355, %s371
      %p373 = scmp.eq.s32.totalorder %s38, 0
      %p374 = por %p372, %p373
      %s375 = ssub.s32 %s40, %s47
      %p376 = scmp.eq.s32.totalorder %s375, 0
      %s378 = sadd.s32 %s377, 1
      %s379 = scalar_select %p376, %s377, %s378
      %p382 = pneg %p376
      %p383 = scmp.eq.s32.totalorder %s32, 3
      %p384 = por %p382, %p383
      %p385 = scmp.ne.s32.totalorder %s377, %s380
      %p386 = scmp.eq.s32.totalorder %s32, 0
      %p387 = por %p385, %p386
      %p388 = scmp.ne.s32.totalorder %s377, %s380
      %p389 = scmp.eq.s32.totalorder %s37, 3
      %p390 = por %p388, %p389
      %p391 = scmp.ne.s32.totalorder %s380, %s381
      %p392 = scmp.eq.s32.totalorder %s37, 0
      %p393 = por %p391, %p392
      %p394 = scmp.ne.s32.totalorder %s380, %s381
      %p395 = scmp.eq.s32.totalorder %s38, 3
      %p396 = por %p394, %p395
      %p398 = scmp.ne.s32.totalorder %s381, %s397
      %p399 = scmp.eq.s32.totalorder %s38, 0
      %p400 = por %p398, %p399
      %s401 = ssub.s32 %s40, %s47
      %p402 = scmp.eq.s32.totalorder %s401, 0
      %s404 = sadd.s32 %s403, 1
      %s405 = scalar_select %p402, %s403, %s404
      %p408 = pneg %p402
      %p409 = scmp.eq.s32.totalorder %s32, 3
      %p410 = por %p408, %p409
      %p411 = scmp.ne.s32.totalorder %s403, %s406
      %p412 = scmp.eq.s32.totalorder %s32, 0
      %p413 = por %p411, %p412
      %p414 = scmp.ne.s32.totalorder %s403, %s406
      %p415 = scmp.eq.s32.totalorder %s37, 3
      %p416 = por %p414, %p415
      %p417 = scmp.ne.s32.totalorder %s406, %s407
      %p418 = scmp.eq.s32.totalorder %s37, 0
      %p419 = por %p417, %p418
      %p420 = scmp.ne.s32.totalorder %s406, %s407
      %p421 = scmp.eq.s32.totalorder %s38, 3
      %p422 = por %p420, %p421
      %p424 = scmp.ne.s32.totalorder %s407, %s423
      %p425 = scmp.eq.s32.totalorder %s38, 0
      %p426 = por %p424, %p425
      %s427 = ssub.s32 %s40, %s47
      %p428 = scmp.eq.s32.totalorder %s427, 0
      %s430 = sadd.s32 %s429, 1
      %s431 = scalar_select %p428, %s429, %s430
      %p434 = pneg %p428
      %p435 = scmp.eq.s32.totalorder %s32, 3
      %p436 = por %p434, %p435
      %p437 = scmp.ne.s32.totalorder %s429, %s432
      %p438 = scmp.eq.s32.totalorder %s32, 0
      %p439 = por %p437, %p438
      %p440 = scmp.ne.s32.totalorder %s429, %s432
      %p441 = scmp.eq.s32.totalorder %s37, 3
      %p442 = por %p440, %p441
      %p443 = scmp.ne.s32.totalorder %s432, %s433
      %p444 = scmp.eq.s32.totalorder %s37, 0
      %p445 = por %p443, %p444
      %p446 = scmp.ne.s32.totalorder %s432, %s433
      %p447 = scmp.eq.s32.totalorder %s38, 3
      %p448 = por %p446, %p447
      %p450 = scmp.ne.s32.totalorder %s433, %s449
      %p451 = scmp.eq.s32.totalorder %s38, 0
      %p452 = por %p450, %p451
      %s454 = sadd.s32 %s453, 1
      %p457 = scmp.eq.s32.totalorder %s32, 3
      %p458 = scmp.ne.s32.totalorder %s453, %s455
      %p459 = scmp.eq.s32.totalorder %s32, 0
      %p460 = por %p458, %p459
      %p461 = scmp.ne.s32.totalorder %s453, %s455
      %p462 = scmp.eq.s32.totalorder %s37, 3
      %p463 = por %p461, %p462
      %p464 = scmp.ne.s32.totalorder %s455, %s456
      %p465 = scmp.eq.s32.totalorder %s37, 0
      %p466 = por %p464, %p465
      %p467 = scmp.ne.s32.totalorder %s455, %s456
      %p468 = scmp.eq.s32.totalorder %s38, 3
      %p469 = por %p467, %p468
      %p471 = scmp.ne.s32.totalorder %s456, %s470
      %p472 = scmp.eq.s32.totalorder %s38, 0
      %p473 = por %p471, %p472
      %s475 = sadd.s32 %s474, 1
      %p478 = scmp.eq.s32.totalorder %s32, 3
      %p479 = scmp.ne.s32.totalorder %s474, %s476
      %p480 = scmp.eq.s32.totalorder %s32, 0
      %p481 = por %p479, %p480
      %p482 = scmp.ne.s32.totalorder %s474, %s476
      %p483 = scmp.eq.s32.totalorder %s37, 3
      %p484 = por %p482, %p483
      %p485 = scmp.ne.s32.totalorder %s476, %s477
      %p486 = scmp.eq.s32.totalorder %s37, 0
      %p487 = por %p485, %p486
      %p488 = scmp.ne.s32.totalorder %s476, %s477
      %p489 = scmp.eq.s32.totalorder %s38, 3
      %p490 = por %p488, %p489
      %p492 = scmp.ne.s32.totalorder %s477, %s491
      %p493 = scmp.eq.s32.totalorder %s38, 0
      %p494 = por %p492, %p493
      %s496 = sadd.s32 %s495, 1
      %p499 = scmp.eq.s32.totalorder %s32, 3
      %p500 = scmp.ne.s32.totalorder %s495, %s497
      %p501 = scmp.eq.s32.totalorder %s32, 0
      %p502 = por %p500, %p501
      %p503 = scmp.ne.s32.totalorder %s495, %s497
      %p504 = scmp.eq.s32.totalorder %s37, 3
      %p505 = por %p503, %p504
      %p506 = scmp.ne.s32.totalorder %s497, %s498
      %p507 = scmp.eq.s32.totalorder %s37, 0
      %p508 = por %p506, %p507
      %p509 = scmp.ne.s32.totalorder %s497, %s498
      %p510 = scmp.eq.s32.totalorder %s38, 3
      %p511 = por %p509, %p510
      %p513 = scmp.ne.s32.totalorder %s498, %s512
      %p514 = scmp.eq.s32.totalorder %s38, 0
      %p515 = por %p513, %p514
      %s517 = sadd.s32 %s516, 1
      %p520 = scmp.eq.s32.totalorder %s32, 3
      %p521 = scmp.ne.s32.totalorder %s516, %s518
      %p522 = scmp.eq.s32.totalorder %s32, 0
      %p523 = por %p521, %p522
      %p524 = scmp.ne.s32.totalorder %s516, %s518
      %p525 = scmp.eq.s32.totalorder %s37, 3
      %p526 = por %p524, %p525
      %p527 = scmp.ne.s32.totalorder %s518, %s519
      %p528 = scmp.eq.s32.totalorder %s37, 0
      %p529 = por %p527, %p528
      %p530 = scmp.ne.s32.totalorder %s518, %s519
      %p531 = scmp.eq.s32.totalorder %s38, 3
      %p532 = por %p530, %p531
      %p534 = scmp.ne.s32.totalorder %s519, %s533
      %p535 = scmp.eq.s32.totalorder %s38, 0
      %p536 = por %p534, %p535
      %s538 = sadd.s32 %s537, 1
      %p541 = scmp.eq.s32.totalorder %s32, 3
      %p542 = scmp.ne.s32.totalorder %s537, %s539
      %p543 = scmp.eq.s32.totalorder %s32, 0
      %p544 = por %p542, %p543
      %p545 = scmp.ne.s32.totalorder %s537, %s539
      %p546 = scmp.eq.s32.totalorder %s37, 3
      %p547 = por %p545, %p546
      %p548 = scmp.ne.s32.totalorder %s539, %s540
      %p549 = scmp.eq.s32.totalorder %s37, 0
      %p550 = por %p548, %p549
      %p551 = scmp.ne.s32.totalorder %s539, %s540
      %p552 = scmp.eq.s32.totalorder %s38, 3
      %p553 = por %p551, %p552
      %p555 = scmp.ne.s32.totalorder %s540, %s554
      %p556 = scmp.eq.s32.totalorder %s38, 0
      %p557 = por %p555, %p556
      %s559 = sadd.s32 %s558, 1
      %p562 = scmp.eq.s32.totalorder %s32, 3
      %p563 = scmp.ne.s32.totalorder %s558, %s560
      %p564 = scmp.eq.s32.totalorder %s32, 0
      %p565 = por %p563, %p564
      %p566 = scmp.ne.s32.totalorder %s558, %s560
      %p567 = scmp.eq.s32.totalorder %s37, 3
      %p568 = por %p566, %p567
      %p569 = scmp.ne.s32.totalorder %s560, %s561
      %p570 = scmp.eq.s32.totalorder %s37, 0
      %p571 = por %p569, %p570
      %p572 = scmp.ne.s32.totalorder %s560, %s561
      %p573 = scmp.eq.s32.totalorder %s38, 3
      %p574 = por %p572, %p573
      %p576 = scmp.ne.s32.totalorder %s561, %s575
      %p577 = scmp.eq.s32.totalorder %s38, 0
      %p578 = por %p576, %p577
      %s580 = sadd.s32 %s579, 1
      %p583 = scmp.eq.s32.totalorder %s32, 3
      %p584 = scmp.ne.s32.totalorder %s579, %s581
      %p585 = scmp.eq.s32.totalorder %s32, 0
      %p586 = por %p584, %p585
      %p587 = scmp.ne.s32.totalorder %s579, %s581
      %p588 = scmp.eq.s32.totalorder %s37, 3
      %p589 = por %p587, %p588
      %p590 = scmp.ne.s32.totalorder %s581, %s582
      %p591 = scmp.eq.s32.totalorder %s37, 0
      %p592 = por %p590, %p591
      %p593 = scmp.ne.s32.totalorder %s581, %s582
      %p594 = scmp.eq.s32.totalorder %s38, 3
      %p595 = por %p593, %p594
      %p597 = scmp.ne.s32.totalorder %s582, %s596
      %p598 = scmp.eq.s32.totalorder %s38, 0
      %p599 = por %p597, %p598
      %s600 = ssub.s32 %s39, %s51
      %p601 = scmp.eq.s32.totalorder %s600, 0
      %s603 = sadd.s32 %s602, 1
      %s604 = scalar_select %p601, %s602, %s603
      %p607 = pneg %p601
      %p608 = scmp.eq.s32.totalorder %s32, 3
      %p609 = por %p607, %p608
      %p610 = scmp.ne.s32.totalorder %s602, %s605
      %p611 = scmp.eq.s32.totalorder %s32, 0
      %p612 = por %p610, %p611
      %p613 = scmp.ne.s32.totalorder %s602, %s605
      %p614 = scmp.eq.s32.totalorder %s37, 3
      %p615 = por %p613, %p614
      %p616 = scmp.ne.s32.totalorder %s605, %s606
      %p617 = scmp.eq.s32.totalorder %s37, 0
      %p618 = por %p616, %p617
      %p619 = scmp.ne.s32.totalorder %s605, %s606
      %p620 = scmp.eq.s32.totalorder %s38, 3
      %p621 = por %p619, %p620
      %p623 = scmp.ne.s32.totalorder %s606, %s622
      %p624 = scmp.eq.s32.totalorder %s38, 0
      %p625 = por %p623, %p624
      %p626 = scmp.le.s32.totalorder 1, %s32
      %p627 = scmp.lt.s32.totalorder %s32, 5
      %p628 = pnand %p626, %p627
      %p629 = pneg %p628
      // Predicated region
      $region9: #{vit_none_forward.1} parent=5 // pred_check
        _
      $region10: #{vit_none_forward.1} parent=5 // pred_check_branch
        %631 = sbr.rel (%p628) target = $region12
      $region11: #{vit_none_forward.1} parent=5 // pred_region
        %s632 = ssub.s32 %s32, 1
        // Predicated region
        $region13: #{vit_none_forward.1} parent=11 // pred_check
          %p633 = pneg %p91
        $region14: #{vit_none_forward.1} parent=11 // pred_check_branch
          %635 = sbr.rel (%p633) target = $region16
        $region15: #{vit_none_forward.1} parent=11 // pred_region
          _
        $region16: #{vit_none_forward.1} parent=11 // pred_fallthru
          _
        // Predicated region
        $region17: #{vit_none_forward.1} parent=11 // pred_check
          %p636 = pneg %p112
        $region18: #{vit_none_forward.1} parent=11 // pred_check_branch
          %638 = sbr.rel (%p636) target = $region20
        $region19: #{vit_none_forward.1} parent=11 // pred_region
          _
        $region20: #{vit_none_forward.1} parent=11 // pred_fallthru
          _
        // Predicated region
        $region21: #{vit_none_forward.1} parent=11 // pred_check
          %p639 = pneg %p133
        $region22: #{vit_none_forward.1} parent=11 // pred_check_branch
          %641 = sbr.rel (%p639) target = $region24
        $region23: #{vit_none_forward.1} parent=11 // pred_region
          _
        $region24: #{vit_none_forward.1} parent=11 // pred_fallthru
          _
        // Predicated region
        $region25: #{vit_none_forward.1} parent=11 // pred_check
          %p642 = pneg %p466
        $region26: #{vit_none_forward.1} parent=11 // pred_check_branch
          %644 = sbr.rel (%p642) target = $region28
        $region27: #{vit_none_forward.1} parent=11 // pred_region
          _
        $region28: #{vit_none_forward.1} parent=11 // pred_fallthru
          _
        // Predicated region
        $region29: #{vit_none_forward.1} parent=11 // pred_check
          %p645 = pneg %p487
        $region30: #{vit_none_forward.1} parent=11 // pred_check_branch
          %647 = sbr.rel (%p645) target = $region32
        $region31: #{vit_none_forward.1} parent=11 // pred_region
          _
        $region32: #{vit_none_forward.1} parent=11 // pred_fallthru
          _
        // Predicated region
        $region33: #{vit_none_forward.1} parent=11 // pred_check
          %p648 = pneg %p508
        $region34: #{vit_none_forward.1} parent=11 // pred_check_branch
          %650 = sbr.rel (%p648) target = $region36
        $region35: #{vit_none_forward.1} parent=11 // pred_region
          _
        $region36: #{vit_none_forward.1} parent=11 // pred_fallthru
          _
        // Predicated region
        $region37: #{vit_none_forward.1} parent=11 // pred_check
          %p651 = pneg %p529
        $region38: #{vit_none_forward.1} parent=11 // pred_check_branch
          %653 = sbr.rel (%p651) target = $region40
        $region39: #{vit_none_forward.1} parent=11 // pred_region
          _
        $region40: #{vit_none_forward.1} parent=11 // pred_fallthru
          _
        // Predicated region
        $region41: #{vit_none_forward.1} parent=11 // pred_check
          %p654 = pneg %p550
        $region42: #{vit_none_forward.1} parent=11 // pred_check_branch
          %656 = sbr.rel (%p654) target = $region44
        $region43: #{vit_none_forward.1} parent=11 // pred_region
          _
        $region44: #{vit_none_forward.1} parent=11 // pred_fallthru
          _
        // Predicated region
        $region45: #{vit_none_forward.1} parent=11 // pred_check
          %p657 = pneg %p571
        $region46: #{vit_none_forward.1} parent=11 // pred_check_branch
          %659 = sbr.rel (%p657) target = $region48
        $region47: #{vit_none_forward.1} parent=11 // pred_region
          _
        $region48: #{vit_none_forward.1} parent=11 // pred_fallthru
          _
        // Predicated region
        $region49: #{vit_none_forward.1} parent=11 // pred_check
          %p660 = pneg %p592
        $region50: #{vit_none_forward.1} parent=11 // pred_check_branch
          %662 = sbr.rel (%p660) target = $region52
        $region51: #{vit_none_forward.1} parent=11 // pred_region
          _
        $region52: #{vit_none_forward.1} parent=11 // pred_fallthru
          _
      $region12: #{vit_none_forward.1} parent=5 // pred_fallthru
        _
      %p663 = scmp.lt.s32.totalorder %s32, 4
      // Predicated region
      $region53: #{vit_none_forward.1} parent=5 // pred_check
        %p664 = pneg %p663
      $region54: #{vit_none_forward.1} parent=5 // pred_check_branch
        %666 = sbr.rel (%p664) target = $region56
      $region55: #{vit_none_forward.1} parent=5 // pred_region
        // Predicated region
        $region57: #{vit_none_forward.1} parent=55 // pred_check
          %p667 = pneg %p64
        $region58: #{vit_none_forward.1} parent=55 // pred_check_branch
          %669 = sbr.rel (%p667) target = $region60
        $region59: #{vit_none_forward.1} parent=55 // pred_region
          %p670 = scmp.lt.s32.totalorder %s39, 1
          %s671 = scalar_select %p670, %s39, 1
          %s672 = smul.addr %s671, 8
          %s673 = smul.addr %s672, 8
          %s674 = scalar_lea.vmem %s0, %s673
        $region60: #{vit_none_forward.1} parent=55 // pred_fallthru
          _
        // Predicated region
        $region61: #{vit_none_forward.1} parent=55 // pred_check
          %p675 = pneg %p153
        $region62: #{vit_none_forward.1} parent=55 // pred_check_branch
          %677 = sbr.rel (%p675) target = $region64
        $region63: #{vit_none_forward.1} parent=55 // pred_region
          %p678 = scmp.lt.s32.totalorder %s40, 1
          %s679 = scalar_select %p678, %s40, 1
          %s680 = scalar_lea.vmem %s4, %s679
        $region64: #{vit_none_forward.1} parent=55 // pred_fallthru
          _
        // Predicated region
        $region65: #{vit_none_forward.1} parent=55 // pred_check
          %p681 = pneg %p179
        $region66: #{vit_none_forward.1} parent=55 // pred_check_branch
          %683 = sbr.rel (%p681) target = $region68
        $region67: #{vit_none_forward.1} parent=55 // pred_region
          %p684 = scmp.lt.s32.totalorder %s40, 1
          %s685 = scalar_select %p684, %s40, 1
          %s686 = scalar_lea.vmem %s5, %s685
        $region68: #{vit_none_forward.1} parent=55 // pred_fallthru
          _
        // Predicated region
        $region69: #{vit_none_forward.1} parent=55 // pred_check
          %p687 = pneg %p205
        $region70: #{vit_none_forward.1} parent=55 // pred_check_branch
          %689 = sbr.rel (%p687) target = $region72
        $region71: #{vit_none_forward.1} parent=55 // pred_region
          %p690 = scmp.lt.s32.totalorder %s40, 1
          %s691 = scalar_select %p690, %s40, 1
          %s692 = smul.addr %s691, 4
          %s693 = smul.addr %s692, 8
          %s694 = scalar_lea.vmem %s6, %s693
        $region72: #{vit_none_forward.1} parent=55 // pred_fallthru
          _
        // Predicated region
        $region73: #{vit_none_forward.1} parent=55 // pred_check
          %p695 = pneg %p231
        $region74: #{vit_none_forward.1} parent=55 // pred_check_branch
          %697 = sbr.rel (%p695) target = $region76
        $region75: #{vit_none_forward.1} parent=55 // pred_region
          %p698 = scmp.lt.s32.totalorder %s40, 1
          %s699 = scalar_select %p698, %s40, 1
          %s700 = scalar_lea.vmem %s7, %s699
        $region76: #{vit_none_forward.1} parent=55 // pred_fallthru
          _
        // Predicated region
        $region77: #{vit_none_forward.1} parent=55 // pred_check
          %p701 = pneg %p257
        $region78: #{vit_none_forward.1} parent=55 // pred_check_branch
          %703 = sbr.rel (%p701) target = $region80
        $region79: #{vit_none_forward.1} parent=55 // pred_region
          %p704 = scmp.lt.s32.totalorder %s40, 1
          %s705 = scalar_select %p704, %s40, 1
          %s706 = smul.addr %s705, 4
          %s707 = smul.addr %s706, 8
          %s708 = scalar_lea.vmem %s8, %s707
        $region80: #{vit_none_forward.1} parent=55 // pred_fallthru
          _
        // Predicated region
        $region81: #{vit_none_forward.1} parent=55 // pred_check
          %p709 = pneg %p283
        $region82: #{vit_none_forward.1} parent=55 // pred_check_branch
          %711 = sbr.rel (%p709) target = $region84
        $region83: #{vit_none_forward.1} parent=55 // pred_region
          %p712 = scmp.lt.s32.totalorder %s40, 1
          %s713 = scalar_select %p712, %s40, 1
          %s714 = scalar_lea.vmem %s9, %s713
        $region84: #{vit_none_forward.1} parent=55 // pred_fallthru
          _
        // Predicated region
        $region85: #{vit_none_forward.1} parent=55 // pred_check
          %p715 = pneg %p309
        $region86: #{vit_none_forward.1} parent=55 // pred_check_branch
          %717 = sbr.rel (%p715) target = $region88
        $region87: #{vit_none_forward.1} parent=55 // pred_region
          %p718 = scmp.lt.s32.totalorder %s40, 1
          %s719 = scalar_select %p718, %s40, 1
          %s720 = scalar_lea.vmem %s10, %s719
        $region88: #{vit_none_forward.1} parent=55 // pred_fallthru
          _
        // Predicated region
        $region89: #{vit_none_forward.1} parent=55 // pred_check
          %p721 = pneg %p335
        $region90: #{vit_none_forward.1} parent=55 // pred_check_branch
          %723 = sbr.rel (%p721) target = $region92
        $region91: #{vit_none_forward.1} parent=55 // pred_region
          %p724 = scmp.lt.s32.totalorder %s40, 1
          %s725 = scalar_select %p724, %s40, 1
          %s726 = scalar_lea.vmem %s11, %s725
        $region92: #{vit_none_forward.1} parent=55 // pred_fallthru
          _
        // Predicated region
        $region93: #{vit_none_forward.1} parent=55 // pred_check
          %p727 = pneg %p361
        $region94: #{vit_none_forward.1} parent=55 // pred_check_branch
          %729 = sbr.rel (%p727) target = $region96
        $region95: #{vit_none_forward.1} parent=55 // pred_region
          %p730 = scmp.lt.s32.totalorder %s40, 1
          %s731 = scalar_select %p730, %s40, 1
          %s732 = smul.addr %s731, 4
          %s733 = smul.addr %s732, 8
          %s734 = scalar_lea.vmem %s12, %s733
        $region96: #{vit_none_forward.1} parent=55 // pred_fallthru
          _
        // Predicated region
        $region97: #{vit_none_forward.1} parent=55 // pred_check
          %p735 = pneg %p387
        $region98: #{vit_none_forward.1} parent=55 // pred_check_branch
          %737 = sbr.rel (%p735) target = $region100
        $region99: #{vit_none_forward.1} parent=55 // pred_region
          %p738 = scmp.lt.s32.totalorder %s40, 1
          %s739 = scalar_select %p738, %s40, 1
          %s740 = scalar_lea.vmem %s13, %s739
        $region100: #{vit_none_forward.1} parent=55 // pred_fallthru
          _
        // Predicated region
        $region101: #{vit_none_forward.1} parent=55 // pred_check
          %p741 = pneg %p413
        $region102: #{vit_none_forward.1} parent=55 // pred_check_branch
          %743 = sbr.rel (%p741) target = $region104
        $region103: #{vit_none_forward.1} parent=55 // pred_region
          %p744 = scmp.lt.s32.totalorder %s40, 1
          %s745 = scalar_select %p744, %s40, 1
          %s746 = smul.addr %s745, 8
          %s747 = smul.addr %s746, 8
          %s748 = scalar_lea.vmem %s14, %s747
        $region104: #{vit_none_forward.1} parent=55 // pred_fallthru
          _
        // Predicated region
        $region105: #{vit_none_forward.1} parent=55 // pred_check
          %p749 = pneg %p439
        $region106: #{vit_none_forward.1} parent=55 // pred_check_branch
          %751 = sbr.rel (%p749) target = $region108
        $region107: #{vit_none_forward.1} parent=55 // pred_region
          %p752 = scmp.lt.s32.totalorder %s40, 1
          %s753 = scalar_select %p752, %s40, 1
          %s754 = scalar_lea.vmem %s15, %s753
        $region108: #{vit_none_forward.1} parent=55 // pred_fallthru
          _
      $region56: #{vit_none_forward.1} parent=5 // pred_fallthru
        _
      %p755 = scmp.le.s32.totalorder 1, %s32
      %p756 = scmp.lt.s32.totalorder %s32, 5
      %p757 = pnand %p755, %p756
      %p758 = pneg %p757
      // Predicated region
      $region109: #{vit_none_forward.1} parent=5 // pred_check
        _
      $region110: #{vit_none_forward.1} parent=5 // pred_check_branch
        %760 = sbr.rel (%p757) target = $region112
      $region111: #{vit_none_forward.1} parent=5 // pred_region
        %s761 = ssub.s32 %s32, 1
        %p762 = scmp.lt.s32.totalorder %s41, 1
        %s763 = scalar_select %p762, %s41, 1
        %s764 = smul.addr %s763, 8
        %s765 = smul.addr %s764, 8
        %s766 = scalar_lea.vmem %s0, %s765
        %p767 = pneg %p70
        %p768 = pneg %p67
        %p769 = pneg %p91
        %p770 = pneg %p88
        %p771 = pneg %p112
        %p772 = pneg %p109
        %p773 = pneg %p133
        %p774 = pneg %p130
        %p775 = scmp.lt.s32.totalorder %s42, 1
        %s776 = scalar_select %p775, %s42, 1
        %s777 = scalar_lea.vmem %s4, %s776
        %p778 = pneg %p159
        %p779 = pneg %p156
        %p780 = scmp.lt.s32.totalorder %s42, 1
        %s781 = scalar_select %p780, %s42, 1
        %s782 = scalar_lea.vmem %s5, %s781
        %p783 = pneg %p185
        %p784 = pneg %p182
        %p785 = scmp.lt.s32.totalorder %s42, 1
        %s786 = scalar_select %p785, %s42, 1
        %s787 = smul.addr %s786, 4
        %s788 = smul.addr %s787, 8
        %s789 = scalar_lea.vmem %s6, %s788
        %p790 = pneg %p211
        %p791 = pneg %p208
        %p792 = scmp.lt.s32.totalorder %s42, 1
        %s793 = scalar_select %p792, %s42, 1
        %s794 = scalar_lea.vmem %s7, %s793
        %p795 = pneg %p237
        %p796 = pneg %p234
        %p797 = scmp.lt.s32.totalorder %s42, 1
        %s798 = scalar_select %p797, %s42, 1
        %s799 = smul.addr %s798, 4
        %s800 = smul.addr %s799, 8
        %s801 = scalar_lea.vmem %s8, %s800
        %p802 = pneg %p263
        %p803 = pneg %p260
        %p804 = scmp.lt.s32.totalorder %s42, 1
        %s805 = scalar_select %p804, %s42, 1
        %s806 = scalar_lea.vmem %s9, %s805
        %p807 = pneg %p289
        %p808 = pneg %p286
        %p809 = scmp.lt.s32.totalorder %s42, 1
        %s810 = scalar_select %p809, %s42, 1
        %s811 = scalar_lea.vmem %s10, %s810
        %p812 = pneg %p315
        %p813 = pneg %p312
        %p814 = scmp.lt.s32.totalorder %s42, 1
        %s815 = scalar_select %p814, %s42, 1
        %s816 = scalar_lea.vmem %s11, %s815
        %p817 = pneg %p341
        %p818 = pneg %p338
        %p819 = scmp.lt.s32.totalorder %s42, 1
        %s820 = scalar_select %p819, %s42, 1
        %s821 = smul.addr %s820, 4
        %s822 = smul.addr %s821, 8
        %s823 = scalar_lea.vmem %s12, %s822
        %p824 = pneg %p367
        %p825 = pneg %p364
        %p826 = scmp.lt.s32.totalorder %s42, 1
        %s827 = scalar_select %p826, %s42, 1
        %s828 = scalar_lea.vmem %s13, %s827
        %p829 = pneg %p393
        %p830 = pneg %p390
        %p831 = scmp.lt.s32.totalorder %s42, 1
        %s832 = scalar_select %p831, %s42, 1
        %s833 = smul.addr %s832, 8
        %s834 = smul.addr %s833, 8
        %s835 = scalar_lea.vmem %s14, %s834
        %p836 = pneg %p419
        %p837 = pneg %p416
        %p838 = scmp.lt.s32.totalorder %s42, 1
        %s839 = scalar_select %p838, %s42, 1
        %s840 = scalar_lea.vmem %s15, %s839
        %p841 = pneg %p445
        %p842 = pneg %p442
        %p843 = pneg %p466
        %p844 = pneg %p463
        %p845 = pneg %p487
        %p846 = pneg %p484
        %p847 = pneg %p508
        %p848 = pneg %p505
        %p849 = pneg %p529
        %p850 = pneg %p526
        %p851 = pneg %p550
        %p852 = pneg %p547
        %p853 = pneg %p571
        %p854 = pneg %p568
        %p855 = pneg %p592
        %p856 = pneg %p589
        %p857 = pneg %p618
        %p858 = pneg %p615
        %s859 = sand.u32 %s605, 1
        %s860 = scalar_lea.sflag [#allocation4], %s859
        %s861 = sand.u32 %s605, 1
        %s862 = smul.addr %s861, 1344
        %s863 = scalar_lea.vmem [#allocation3], %s862
        %p864 = scmp.lt.s32.totalorder %s41, 1
        %s865 = scalar_select %p864, %s41, 1
        %s866 = smul.addr %s865, 8
        %s867 = smul.addr %s866, 8
        %s868 = scalar_lea.vmem %s0, %s867
        %p869 = scmp.lt.s32.totalorder %s42, 1
        %s870 = scalar_select %p869, %s42, 1
        %s871 = scalar_lea.vmem %s4, %s870
        %p872 = scmp.lt.s32.totalorder %s42, 1
        %s873 = scalar_select %p872, %s42, 1
        %s874 = scalar_lea.vmem %s5, %s873
        %p875 = scmp.lt.s32.totalorder %s42, 1
        %s876 = scalar_select %p875, %s42, 1
        %s877 = smul.addr %s876, 4
        %s878 = smul.addr %s877, 8
        %s879 = scalar_lea.vmem %s6, %s878
        %p880 = scmp.lt.s32.totalorder %s42, 1
        %s881 = scalar_select %p880, %s42, 1
        %s882 = scalar_lea.vmem %s7, %s881
        %p883 = scmp.lt.s32.totalorder %s42, 1
        %s884 = scalar_select %p883, %s42, 1
        %s885 = smul.addr %s884, 4
        %s886 = smul.addr %s885, 8
        %s887 = scalar_lea.vmem %s8, %s886
        %p888 = scmp.lt.s32.totalorder %s42, 1
        %s889 = scalar_select %p888, %s42, 1
        %s890 = scalar_lea.vmem %s9, %s889
        %p891 = scmp.lt.s32.totalorder %s42, 1
        %s892 = scalar_select %p891, %s42, 1
        %s893 = scalar_lea.vmem %s10, %s892
        %p894 = scmp.lt.s32.totalorder %s42, 1
        %s895 = scalar_select %p894, %s42, 1
        %s896 = scalar_lea.vmem %s11, %s895
        %p897 = scmp.lt.s32.totalorder %s42, 1
        %s898 = scalar_select %p897, %s42, 1
        %s899 = smul.addr %s898, 4
        %s900 = smul.addr %s899, 8
        %s901 = scalar_lea.vmem %s12, %s900
        %p902 = scmp.lt.s32.totalorder %s42, 1
        %s903 = scalar_select %p902, %s42, 1
        %s904 = scalar_lea.vmem %s13, %s903
        %p905 = scmp.lt.s32.totalorder %s42, 1
        %s906 = scalar_select %p905, %s42, 1
        %s907 = smul.addr %s906, 8
        %s908 = smul.addr %s907, 8
        %s909 = scalar_lea.vmem %s14, %s908
        %p910 = scmp.lt.s32.totalorder %s42, 1
        %s911 = scalar_select %p910, %s42, 1
        %s912 = scalar_lea.vmem %s15, %s911
        %p913 = scmp.eq.s32.totalorder %s42, 0
        // Predicated region
        $region113: #{vit_none_forward.1} parent=111 // pred_check
          %p914 = pneg %p913
        $region114: #{vit_none_forward.1} parent=111 // pred_check_branch
          %916 = sbr.rel (%p914) target = $region116
        $region115: #{vit_none_forward.1} parent=111 // pred_region
          %v917 = vld [vmem:[%s868] sm:$0xff]
          %v918 = vld [vmem:[%s868 + $0x8] sm:$0xff]
          %v919 = vld [vmem:[%s868 + $0x10] sm:$0xff]
          %v920 = vld [vmem:[%s868 + $0x18] sm:$0xff]
          %v921 = vld [vmem:[%s868 + $0x20] sm:$0xff]
          %v922 = vld [vmem:[%s868 + $0x28] sm:$0xff]
          %v923 = vld [vmem:[%s868 + $0x30] sm:$0xff]
          %v924 = vld [vmem:[%s868 + $0x38] sm:$0xff]
          %v925 = vld [vmem:[%s1] sm:$0xff]
          %v926 = vld [vmem:[%s1 + $0x8] sm:$0xff]
          %v927 = vld [vmem:[%s1 + $0x10] sm:$0xff]
          %v928 = vld [vmem:[%s1 + $0x18] sm:$0xff]
          %v929 = vld [vmem:[%s1 + $0x20] sm:$0xff]
          %v930 = vld [vmem:[%s1 + $0x28] sm:$0xff]
          %v931 = vld [vmem:[%s2] sm:$0x1]
          %v933 = vlaneseq
          %v934 = vshrl.u32 %v933, 7
          %v935 = vsub.s32 0, %v934
          %v936 = vrot.slane %v931, %v935
          %vm938 = vcmask 392192
          %v940 = vsel %vm938, %v917, 0
          %v943 = vsel %vm938, %v918, 0
          %v946 = vsel %vm938, %v919, 0
          %v949 = vsel %vm938, %v920, 0
          %v952 = vsel %vm938, %v921, 0
          %v955 = vsel %vm938, %v922, 0
          %v958 = vsel %vm938, %v923, 0
          %v961 = vsel %vm938, %v924, 0
          %963 = vmatprep.subr.mxu0 0.0
          %964 = vmatpush1.msra.mxu0 %v925
          %965 = vmatprep.subr.mxu0 0.0
          %966 = vmatpush1.msra.mxu0 %v926
          %967 = vmatprep.subr.mxu0 0.0
          %968 = vmatpush1.msra.mxu0 %v927
          %969 = vmatprep.subr.mxu0 0.0
          %970 = vmatpush1.msra.mxu0 %v928
          %971 = vmatprep.subr.mxu0 0.0
          %972 = vmatpush1.msra.mxu0 %v929
          %973 = vmatprep.subr.mxu0 0.0
          %974 = vmatpush1.msra.mxu0 %v930
          %975 = vmatprep.subr.mxu0 0.0
          %976 = vmatpush1.msra.mxu0 0.0
          %977 = vmatprep.subr.mxu0 0.0
          %978 = vmatpush1.msra.mxu0 0.0
          %979 = vmatprep.subr.mxu0 0.0
          %980 = vmatpush1.msra.mxu0 0.0
          %981 = vmatprep.subr.mxu0 0.0
          %982 = vmatpush1.msra.mxu0 0.0
          %983 = vmatprep.subr.mxu0 0.0
          %984 = vmatpush1.msra.mxu0 0.0
          %985 = vmatprep.subr.mxu0 0.0
          %986 = vmatpush1.msra.mxu0 0.0
          %987 = vmatprep.subr.mxu0 0.0
          %988 = vmatpush1.msra.mxu0 0.0
          %989 = vmatprep.subr.mxu0 0.0
          %990 = vmatpush1.msra.mxu0 0.0
          %991 = vmatprep.subr.mxu0 0.0
          %992 = vmatpush1.msra.mxu0 0.0
          %993 = vmatprep.subr.mxu0 0.0
          %994 = vmatpush1.msra.mxu0 0.0
          %995 = vmatprep.subr.mxu0 0.0
          %996 = vmatpush1.msra.mxu0 0.0
          %997 = vmatprep.subr.mxu0 0.0
          %998 = vmatpush1.msra.mxu0 0.0
          %999 = vmatprep.subr.mxu0 0.0
          %1000 = vmatpush1.msra.mxu0 0.0
          %1001 = vmatprep.subr.mxu0 0.0
          %1002 = vmatpush1.msra.mxu0 0.0
          %1003 = vmatprep.subr.mxu0 0.0
          %1004 = vmatpush1.msra.mxu0 0.0
          %1005 = vmatprep.subr.mxu0 0.0
          %1006 = vmatpush1.msra.mxu0 0.0
          %1007 = vmatprep.subr.mxu0 0.0
          %1008 = vmatpush1.msra.mxu0 0.0
          %1009 = vmatprep.subr.mxu0 0.0
          %1010 = vmatpush1.msra.mxu0 0.0
          %1011 = vmatprep.subr.mxu0 0.0
          %1012 = vmatpush1.msra.mxu0 0.0
          %1013 = vmatprep.subr.mxu0 0.0
          %1014 = vmatpush1.msra.mxu0 0.0
          %1015 = vmatprep.subr.mxu0 0.0
          %1016 = vmatpush1.msra.mxu0 0.0
          %1017 = vmatprep.subr.mxu0 0.0
          %1018 = vmatpush1.msra.mxu0 0.0
          %1019 = vmatprep.subr.mxu0 0.0
          %1020 = vmatpush1.msra.mxu0 0.0
          %1021 = vmatprep.subr.mxu0 0.0
          %1022 = vmatpush1.msra.mxu0 0.0
          %1023 = vmatprep.subr.mxu0 0.0
          %1024 = vmatpush1.msra.mxu0 0.0
          %1025 = vmatprep.subr.mxu0 0.0
          %1026 = vmatpush1.msra.mxu0 0.0
          %1027 = vmatprep.mubr.f32.mxu0 0.0
          %1028 = vmatmul.mubr.f32.gmra.mrb[0].mxu0 %v940
          %v1029 = vpop.f32.mrb[0].mxu0
          %v1030 = vadd.f32 %v936, %v1029
          %v1031 = vpop.f32.mrb[0].mxu0
          %1032 = vmatprep.mubr.f32.mxu0 0.0
          %1033 = vmatmul.mubr.f32.gmra.mrb[0].mxu0 %v943
          %v1034 = vpop.f32.mrb[0].mxu0
          %v1035 = vadd.f32 %v936, %v1034
          %v1036 = vpop.f32.mrb[0].mxu0
          %1037 = vmatprep.mubr.f32.mxu0 0.0
          %1038 = vmatmul.mubr.f32.gmra.mrb[0].mxu0 %v946
          %v1039 = vpop.f32.mrb[0].mxu0
          %v1040 = vadd.f32 %v936, %v1039
          %v1041 = vpop.f32.mrb[0].mxu0
          %1042 = vmatprep.mubr.f32.mxu0 0.0
          %1043 = vmatmul.mubr.f32.gmra.mrb[0].mxu0 %v949
          %v1044 = vpop.f32.mrb[0].mxu0
          %v1045 = vadd.f32 %v936, %v1044
          %v1046 = vpop.f32.mrb[0].mxu0
          %1047 = vmatprep.mubr.f32.mxu0 0.0
          %1048 = vmatmul.mubr.f32.gmra.mrb[0].mxu0 %v952
          %v1049 = vpop.f32.mrb[0].mxu0
          %v1050 = vadd.f32 %v936, %v1049
          %v1051 = vpop.f32.mrb[0].mxu0
          %1052 = vmatprep.mubr.f32.mxu0 0.0
          %1053 = vmatmul.mubr.f32.gmra.mrb[0].mxu0 %v955
          %v1054 = vpop.f32.mrb[0].mxu0
          %v1055 = vadd.f32 %v936, %v1054
          %v1056 = vpop.f32.mrb[0].mxu0
          %1057 = vmatprep.mubr.f32.mxu0 0.0
          %1058 = vmatmul.mubr.f32.gmra.mrb[0].mxu0 %v958
          %v1059 = vpop.f32.mrb[0].mxu0
          %v1060 = vadd.f32 %v936, %v1059
          %v1061 = vpop.f32.mrb[0].mxu0
          %1062 = vmatprep.mubr.f32.mxu0 0.0
          %1063 = vmatmul.mubr.f32.gmra.mrb[0].mxu0 %v961
          %v1064 = vpop.f32.mrb[0].mxu0
          %v1065 = vadd.f32 %v936, %v1064
          %v1066 = vpop.f32.mrb[0].mxu0
          %1067 = vdwg.mxu0
          %v1068 = vld [vmem:[%s3] sm:$0xff]
          %v1069 = vld [vmem:[%s3 + $0x8] sm:$0xff]
          %v1070 = vld [vmem:[%s3 + $0x10] sm:$0xff]
          %v1071 = vld [vmem:[%s3 + $0x18] sm:$0xff]
          %v1072 = vld [vmem:[%s3 + $0x20] sm:$0xff]
          %v1073 = vld [vmem:[%s3 + $0x28] sm:$0xff]
          %v1074 = vld [vmem:[%s3 + $0x30] sm:$0xff]
          %v1075 = vld [vmem:[%s3 + $0x38] sm:$0xff]
          %v1076 = vadd.f32 %v1030, %v1068
          %v1077 = vadd.f32 %v1035, %v1069
          %v1078 = vadd.f32 %v1040, %v1070
          %v1079 = vadd.f32 %v1045, %v1071
          %v1080 = vadd.f32 %v1050, %v1072
          %v1081 = vadd.f32 %v1055, %v1073
          %v1082 = vadd.f32 %v1060, %v1074
          %v1083 = vadd.f32 %v1065, %v1075
          %vm1084 = vcmask 261120
          %1085 = vst.msk [vmem:[#allocation2] sm:$0xff] %vm1084, %v1076
          %1086 = vst.msk [vmem:[#allocation2 + $0x8] sm:$0xff] %vm1084, %v1077
          %1087 = vst.msk [vmem:[#allocation2 + $0x10] sm:$0xff] %vm1084, %v1078
          %1088 = vst.msk [vmem:[#allocation2 + $0x18] sm:$0xff] %vm1084, %v1079
          %1089 = vst.msk [vmem:[#allocation2 + $0x20] sm:$0xff] %vm1084, %v1080
          %1090 = vst.msk [vmem:[#allocation2 + $0x28] sm:$0xff] %vm1084, %v1081
          %1091 = vst.msk [vmem:[#allocation2 + $0x30] sm:$0xff] %vm1084, %v1082
          %1092 = vst.msk [vmem:[#allocation2 + $0x38] sm:$0xff] %vm1084, %v1083
        $region116: #{vit_none_forward.1} parent=111 // pred_fallthru
          _
        %v1093 = vld [vmem:[#allocation2] sm:$0xff]
        %v1094 = vld [vmem:[#allocation2 + $0x8] sm:$0xff]
        %v1095 = vld [vmem:[#allocation2 + $0x10] sm:$0xff]
        %v1096 = vld [vmem:[#allocation2 + $0x18] sm:$0xff]
        %v1097 = vld [vmem:[#allocation2 + $0x20] sm:$0xff]
        %v1098 = vld [vmem:[#allocation2 + $0x28] sm:$0xff]
        %v1099 = vld [vmem:[#allocation2 + $0x30] sm:$0xff]
        %v1100 = vld [vmem:[#allocation2 + $0x38] sm:$0xff]
        %v1101 = vld [vmem:[%s871] sm:$0x1]
        %v1102 = vld [vmem:[%s874] sm:$0x1]
        %vm1103 = vcmask 261120
        %v1104 = vsel %vm1103, %v1093, 0.0
        %1105 = vadd.xlane.f32.xlu0 %v1104
        %v1106 = vpop.xlane.xlu0 %1105
        %v1107 = vsel %vm1103, %v1094, 0.0
        %1108 = vadd.xlane.f32.xlu0 %v1107
        %v1109 = vpop.xlane.xlu0 %1108
        %v1110 = vsel %vm1103, %v1095, 0.0
        %1111 = vadd.xlane.f32.xlu0 %v1110
        %v1112 = vpop.xlane.xlu0 %1111
        %v1113 = vsel %vm1103, %v1096, 0.0
        %1114 = vadd.xlane.f32.xlu0 %v1113
        %v1115 = vpop.xlane.xlu0 %1114
        %v1116 = vsel %vm1103, %v1097, 0.0
        %1117 = vadd.xlane.f32.xlu0 %v1116
        %v1118 = vpop.xlane.xlu0 %1117
        %v1119 = vsel %vm1103, %v1098, 0.0
        %1120 = vadd.xlane.f32.xlu0 %v1119
        %v1121 = vpop.xlane.xlu0 %1120
        %v1122 = vsel %vm1103, %v1099, 0.0
        %1123 = vadd.xlane.f32.xlu0 %v1122
        %v1124 = vpop.xlane.xlu0 %1123
        %v1125 = vsel %vm1103, %v1100, 0.0
        %1126 = vadd.xlane.f32.xlu0 %v1125
        %v1127 = vpop.xlane.xlu0 %1126
        %v1128 = vrcp.pop 32.0
        %v1129 = vmul.f32 %v1106, %v1128
        %v1130 = vmul.f32 %v1109, %v1128
        %v1131 = vmul.f32 %v1112, %v1128
        %v1132 = vmul.f32 %v1115, %v1128
        %v1133 = vmul.f32 %v1118, %v1128
        %v1134 = vmul.f32 %v1121, %v1128
        %v1135 = vmul.f32 %v1124, %v1128
        %v1136 = vmul.f32 %v1127, %v1128
        %v1137 = vsub.f32 %v1093, %v1129
        %v1138 = vsub.f32 %v1094, %v1130
        %v1139 = vsub.f32 %v1095, %v1131
        %v1140 = vsub.f32 %v1096, %v1132
        %v1141 = vsub.f32 %v1097, %v1133
        %v1142 = vsub.f32 %v1098, %v1134
        %v1143 = vsub.f32 %v1099, %v1135
        %v1144 = vsub.f32 %v1100, %v1136
        %v1145 = vmul.f32 %v1137, %v1137
        %v1146 = vmul.f32 %v1138, %v1138
        %v1147 = vmul.f32 %v1139, %v1139
        %v1148 = vmul.f32 %v1140, %v1140
        %v1149 = vmul.f32 %v1141, %v1141
        %v1150 = vmul.f32 %v1142, %v1142
        %v1151 = vmul.f32 %v1143, %v1143
        %v1152 = vmul.f32 %v1144, %v1144
        %v1153 = vsel %vm1103, %v1145, 0.0
        %1154 = vadd.xlane.f32.xlu0 %v1153
        %v1155 = vpop.xlane.xlu0 %1154
        %v1156 = vsel %vm1103, %v1146, 0.0
        %1157 = vadd.xlane.f32.xlu0 %v1156
        %v1158 = vpop.xlane.xlu0 %1157
        %v1159 = vsel %vm1103, %v1147, 0.0
        %1160 = vadd.xlane.f32.xlu0 %v1159
        %v1161 = vpop.xlane.xlu0 %1160
        %v1162 = vsel %vm1103, %v1148, 0.0
        %1163 = vadd.xlane.f32.xlu0 %v1162
        %v1164 = vpop.xlane.xlu0 %1163
        %v1165 = vsel %vm1103, %v1149, 0.0
        %1166 = vadd.xlane.f32.xlu0 %v1165
        %v1167 = vpop.xlane.xlu0 %1166
        %v1168 = vsel %vm1103, %v1150, 0.0
        %1169 = vadd.xlane.f32.xlu0 %v1168
        %v1170 = vpop.xlane.xlu0 %1169
        %v1171 = vsel %vm1103, %v1151, 0.0
        %1172 = vadd.xlane.f32.xlu0 %v1171
        %v1173 = vpop.xlane.xlu0 %1172
        %v1174 = vsel %vm1103, %v1152, 0.0
        %1175 = vadd.xlane.f32.xlu0 %v1174
        %v1176 = vpop.xlane.xlu0 %1175
        %v1177 = vmul.f32 %v1155, %v1128
        %v1178 = vmul.f32 %v1158, %v1128
        %v1179 = vmul.f32 %v1161, %v1128
        %v1180 = vmul.f32 %v1164, %v1128
        %v1181 = vmul.f32 %v1167, %v1128
        %v1182 = vmul.f32 %v1170, %v1128
        %v1183 = vmul.f32 %v1173, %v1128
        %v1184 = vmul.f32 %v1176, %v1128
        %v1185 = vadd.f32 %v1177, 1e-06
        %v1186 = vadd.f32 %v1178, 1e-06
        %v1187 = vadd.f32 %v1179, 1e-06
        %v1188 = vadd.f32 %v1180, 1e-06
        %v1189 = vadd.f32 %v1181, 1e-06
        %v1190 = vadd.f32 %v1182, 1e-06
        %v1191 = vadd.f32 %v1183, 1e-06
        %v1192 = vadd.f32 %v1184, 1e-06
        %v1193 = vrsqrt.pop %v1185
        %v1194 = vrsqrt.pop %v1186
        %v1195 = vrsqrt.pop %v1187
        %v1196 = vrsqrt.pop %v1188
        %v1197 = vrsqrt.pop %v1189
        %v1198 = vrsqrt.pop %v1190
        %v1199 = vrsqrt.pop %v1191
        %v1200 = vrsqrt.pop %v1192
        %v1201 = vmul.f32 %v1137, %v1193
        %v1202 = vmul.f32 %v1138, %v1194
        %v1203 = vmul.f32 %v1139, %v1195
        %v1204 = vmul.f32 %v1140, %v1196
        %v1205 = vmul.f32 %v1141, %v1197
        %v1206 = vmul.f32 %v1142, %v1198
        %v1207 = vmul.f32 %v1143, %v1199
        %v1208 = vmul.f32 %v1144, %v1200
        %v1210 = vlaneseq
        %v1211 = vshrl.u32 %v1210, 7
        %v1212 = vsub.s32 0, %v1211
        %v1213 = vrot.slane %v1101, %v1212
        %v1215 = vmul.f32 %v1201, %v1213
        %v1216 = vmul.f32 %v1202, %v1213
        %v1217 = vmul.f32 %v1203, %v1213
        %v1218 = vmul.f32 %v1204, %v1213
        %v1219 = vmul.f32 %v1205, %v1213
        %v1220 = vmul.f32 %v1206, %v1213
        %v1221 = vmul.f32 %v1207, %v1213
        %v1222 = vmul.f32 %v1208, %v1213
        %v1224 = vlaneseq
        %v1225 = vshrl.u32 %v1224, 7
        %v1226 = vsub.s32 0, %v1225
        %v1227 = vrot.slane %v1102, %v1226
        %v1229 = vadd.f32 %v1215, %v1227
        %v1230 = vadd.f32 %v1216, %v1227
        %v1231 = vadd.f32 %v1217, %v1227
        %v1232 = vadd.f32 %v1218, %v1227
        %v1233 = vadd.f32 %v1219, %v1227
        %v1234 = vadd.f32 %v1220, %v1227
        %v1235 = vadd.f32 %v1221, %v1227
        %v1236 = vadd.f32 %v1222, %v1227
        %v1237 = vld [vmem:[%s879] sm:$0xff]
        %v1238 = vld [vmem:[%s879 + $0x8] sm:$0xff]
        %v1239 = vld [vmem:[%s879 + $0x10] sm:$0xff]
        %v1240 = vld [vmem:[%s879 + $0x18] sm:$0xff]
        %v1241 = vld [vmem:[%s882] sm:$0x1]
        %v1243 = vlaneseq
        %v1244 = vshrl.u32 %v1243, 7
        %v1245 = vsub.s32 0, %v1244
        %v1246 = vrot.slane %v1241, %v1245
        %v1249 = vsel %vm1103, %v1229, 0
        %v1252 = vsel %vm1103, %v1230, 0
        %v1255 = vsel %vm1103, %v1231, 0
        %v1258 = vsel %vm1103, %v1232, 0
        %v1261 = vsel %vm1103, %v1233, 0
        %v1264 = vsel %vm1103, %v1234, 0
        %v1267 = vsel %vm1103, %v1235, 0
        %v1270 = vsel %vm1103, %v1236, 0
        %1272 = vmatprep.subr.mxu0 0.0
        %1273 = vmatpush1.msra.mxu0 %v1237
        %1274 = vmatprep.subr.mxu0 0.0
        %1275 = vmatpush1.msra.mxu0 %v1238
        %1276 = vmatprep.subr.mxu0 0.0
        %1277 = vmatpush1.msra.mxu0 %v1239
        %1278 = vmatprep.subr.mxu0 0.0
        %1279 = vmatpush1.msra.mxu0 %v1240
        %1280 = vmatprep.subr.mxu0 0.0
        %1281 = vmatpush1.msra.mxu0 0.0
        %1282 = vmatprep.subr.mxu0 0.0
        %1283 = vmatpush1.msra.mxu0 0.0
        %1284 = vmatprep.subr.mxu0 0.0
        %1285 = vmatpush1.msra.mxu0 0.0
        %1286 = vmatprep.subr.mxu0 0.0
        %1287 = vmatpush1.msra.mxu0 0.0
        %1288 = vmatprep.subr.mxu0 0.0
        %1289 = vmatpush1.msra.mxu0 0.0
        %1290 = vmatprep.subr.mxu0 0.0
        %1291 = vmatpush1.msra.mxu0 0.0
        %1292 = vmatprep.subr.mxu0 0.0
        %1293 = vmatpush1.msra.mxu0 0.0
        %1294 = vmatprep.subr.mxu0 0.0
        %1295 = vmatpush1.msra.mxu0 0.0
        %1296 = vmatprep.subr.mxu0 0.0
        %1297 = vmatpush1.msra.mxu0 0.0
        %1298 = vmatprep.subr.mxu0 0.0
        %1299 = vmatpush1.msra.mxu0 0.0
        %1300 = vmatprep.subr.mxu0 0.0
        %1301 = vmatpush1.msra.mxu0 0.0
        %1302 = vmatprep.subr.mxu0 0.0
        %1303 = vmatpush1.msra.mxu0 0.0
        %1304 = vmatprep.subr.mxu0 0.0
        %1305 = vmatpush1.msra.mxu0 0.0
        %1306 = vmatprep.subr.mxu0 0.0
        %1307 = vmatpush1.msra.mxu0 0.0
        %1308 = vmatprep.subr.mxu0 0.0
        %1309 = vmatpush1.msra.mxu0 0.0
        %1310 = vmatprep.subr.mxu0 0.0
        %1311 = vmatpush1.msra.mxu0 0.0
        %1312 = vmatprep.subr.mxu0 0.0
        %1313 = vmatpush1.msra.mxu0 0.0
        %1314 = vmatprep.subr.mxu0 0.0
        %1315 = vmatpush1.msra.mxu0 0.0
        %1316 = vmatprep.subr.mxu0 0.0
        %1317 = vmatpush1.msra.mxu0 0.0
        %1318 = vmatprep.subr.mxu0 0.0
        %1319 = vmatpush1.msra.mxu0 0.0
        %1320 = vmatprep.subr.mxu0 0.0
        %1321 = vmatpush1.msra.mxu0 0.0
        %1322 = vmatprep.subr.mxu0 0.0
        %1323 = vmatpush1.msra.mxu0 0.0
        %1324 = vmatprep.subr.mxu0 0.0
        %1325 = vmatpush1.msra.mxu0 0.0
        %1326 = vmatprep.subr.mxu0 0.0
        %1327 = vmatpush1.msra.mxu0 0.0
        %1328 = vmatprep.subr.mxu0 0.0
        %1329 = vmatpush1.msra.mxu0 0.0
        %1330 = vmatprep.subr.mxu0 0.0
        %1331 = vmatpush1.msra.mxu0 0.0
        %1332 = vmatprep.subr.mxu0 0.0
        %1333 = vmatpush1.msra.mxu0 0.0
        %1334 = vmatprep.subr.mxu0 0.0
        %1335 = vmatpush1.msra.mxu0 0.0
        %1336 = vmatprep.mubr.f32.mxu0 0.0
        %1337 = vmatmul.mubr.f32.gmra.mrb[0].mxu0 %v1249
        %v1338 = vpop.f32.mrb[0].mxu0
        %v1339 = vadd.f32 %v1246, %v1338
        %v1340 = vpop.f32.mrb[0].mxu0
        %1341 = vmatprep.mubr.f32.mxu0 0.0
        %1342 = vmatmul.mubr.f32.gmra.mrb[0].mxu0 %v1252
        %v1343 = vpop.f32.mrb[0].mxu0
        %v1344 = vadd.f32 %v1246, %v1343
        %v1345 = vpop.f32.mrb[0].mxu0
        %1346 = vmatprep.mubr.f32.mxu0 0.0
        %1347 = vmatmul.mubr.f32.gmra.mrb[0].mxu0 %v1255
        %v1348 = vpop.f32.mrb[0].mxu0
        %v1349 = vadd.f32 %v1246, %v1348
        %v1350 = vpop.f32.mrb[0].mxu0
        %1351 = vmatprep.mubr.f32.mxu0 0.0
        %1352 = vmatmul.mubr.f32.gmra.mrb[0].mxu0 %v1258
        %v1353 = vpop.f32.mrb[0].mxu0
        %v1354 = vadd.f32 %v1246, %v1353
        %v1355 = vpop.f32.mrb[0].mxu0
        %1356 = vmatprep.mubr.f32.mxu0 0.0
        %1357 = vmatmul.mubr.f32.gmra.mrb[0].mxu0 %v1261
        %v1358 = vpop.f32.mrb[0].mxu0
        %v1359 = vadd.f32 %v1246, %v1358
        %v1360 = vpop.f32.mrb[0].mxu0
        %1361 = vmatprep.mubr.f32.mxu0 0.0
        %1362 = vmatmul.mubr.f32.gmra.mrb[0].mxu0 %v1264
        %v1363 = vpop.f32.mrb[0].mxu0
        %v1364 = vadd.f32 %v1246, %v1363
        %v1365 = vpop.f32.mrb[0].mxu0
        %1366 = vmatprep.mubr.f32.mxu0 0.0
        %1367 = vmatmul.mubr.f32.gmra.mrb[0].mxu0 %v1267
        %v1368 = vpop.f32.mrb[0].mxu0
        %v1369 = vadd.f32 %v1246, %v1368
        %v1370 = vpop.f32.mrb[0].mxu0
        %1371 = vmatprep.mubr.f32.mxu0 0.0
        %1372 = vmatmul.mubr.f32.gmra.mrb[0].mxu0 %v1270
        %v1373 = vpop.f32.mrb[0].mxu0
        %v1374 = vadd.f32 %v1246, %v1373
        %v1375 = vpop.f32.mrb[0].mxu0
        %1376 = vdwg.mxu0
        %1385 = vrot.lane.b32.xlu0 %v1339, 96
        %v1386 = vpop.permute.xlu0 %1385
        %1387 = vrot.lane.b32.xlu0 %v1344, 96
        %v1388 = vpop.permute.xlu0 %1387
        %1389 = vrot.lane.b32.xlu0 %v1349, 96
        %v1390 = vpop.permute.xlu0 %1389
        %1391 = vrot.lane.b32.xlu0 %v1354, 96
        %v1392 = vpop.permute.xlu0 %1391
        %1393 = vrot.lane.b32.xlu0 %v1359, 96
        %v1394 = vpop.permute.xlu0 %1393
        %1395 = vrot.lane.b32.xlu0 %v1364, 96
        %v1396 = vpop.permute.xlu0 %1395
        %1397 = vrot.lane.b32.xlu0 %v1369, 96
        %v1398 = vpop.permute.xlu0 %1397
        %1399 = vrot.lane.b32.xlu0 %v1374, 96
        %v1400 = vpop.permute.xlu0 %1399
        %vm1401 = vcmask 64512
        %v1402 = vsel %vm1401, %v1339, 0
        %v1404 = vsel %vm1401, %v1344, 0
        %v1406 = vsel %vm1401, %v1349, 0
        %v1408 = vsel %vm1401, %v1354, 0
        %v1410 = vsel %vm1401, %v1359, 0
        %v1412 = vsel %vm1401, %v1364, 0
        %v1414 = vsel %vm1401, %v1369, 0
        %v1416 = vsel %vm1401, %v1374, 0
        %v1418 = vsel %vm1401, %v1386, 0
        %v1420 = vsel %vm1401, %v1388, 0
        %v1422 = vsel %vm1401, %v1390, 0
        %v1424 = vsel %vm1401, %v1392, 0
        %v1426 = vsel %vm1401, %v1394, 0
        %v1428 = vsel %vm1401, %v1396, 0
        %v1430 = vsel %vm1401, %v1398, 0
        %v1432 = vsel %vm1401, %v1400, 0
        %1434 = vmatprep.subr.mxu0 0.0
        %1435 = vmatpush1.xpose.msra.mxu0 %v1418
        %1436 = vmatprep.subr.mxu0 0.0
        %1437 = vmatpush1.xpose.msra.mxu0 %v1420
        %1438 = vmatprep.subr.mxu0 0.0
        %1439 = vmatpush1.xpose.msra.mxu0 %v1422
        %1440 = vmatprep.subr.mxu0 0.0
        %1441 = vmatpush1.xpose.msra.mxu0 %v1424
        %1442 = vmatprep.subr.mxu0 0.0
        %1443 = vmatpush1.xpose.msra.mxu0 %v1426
        %1444 = vmatprep.subr.mxu0 0.0
        %1445 = vmatpush1.xpose.msra.mxu0 %v1428
        %1446 = vmatprep.subr.mxu0 0.0
        %1447 = vmatpush1.xpose.msra.mxu0 %v1430
        %1448 = vmatprep.subr.mxu0 0.0
        %1449 = vmatpush1.xpose.msra.mxu0 %v1432
        %1450 = vmatprep.subr.mxu0 0.0
        %1451 = vmatpush1.xpose.msra.mxu0 0.0
        %1452 = vmatprep.subr.mxu0 0.0
        %1453 = vmatpush1.xpose.msra.mxu0 0.0
        %1454 = vmatprep.subr.mxu0 0.0
        %1455 = vmatpush1.xpose.msra.mxu0 0.0
        %1456 = vmatprep.subr.mxu0 0.0
        %1457 = vmatpush1.xpose.msra.mxu0 0.0
        %1458 = vmatprep.subr.mxu0 0.0
        %1459 = vmatpush1.xpose.msra.mxu0 0.0
        %1460 = vmatprep.subr.mxu0 0.0
        %1461 = vmatpush1.xpose.msra.mxu0 0.0
        %1462 = vmatprep.subr.mxu0 0.0
        %1463 = vmatpush1.xpose.msra.mxu0 0.0
        %1464 = vmatprep.subr.mxu0 0.0
        %1465 = vmatpush1.xpose.msra.mxu0 0.0
        %1466 = vmatprep.subr.mxu0 0.0
        %1467 = vmatpush1.xpose.msra.mxu0 0.0
        %1468 = vmatprep.subr.mxu0 0.0
        %1469 = vmatpush1.xpose.msra.mxu0 0.0
        %1470 = vmatprep.subr.mxu0 0.0
        %1471 = vmatpush1.xpose.msra.mxu0 0.0
        %1472 = vmatprep.subr.mxu0 0.0
        %1473 = vmatpush1.xpose.msra.mxu0 0.0
        %1474 = vmatprep.subr.mxu0 0.0
        %1475 = vmatpush1.xpose.msra.mxu0 0.0
        %1476 = vmatprep.subr.mxu0 0.0
        %1477 = vmatpush1.xpose.msra.mxu0 0.0
        %1478 = vmatprep.subr.mxu0 0.0
        %1479 = vmatpush1.xpose.msra.mxu0 0.0
        %1480 = vmatprep.subr.mxu0 0.0
        %1481 = vmatpush1.xpose.msra.mxu0 0.0
        %1482 = vmatprep.subr.mxu0 0.0
        %1483 = vmatpush1.xpose.msra.mxu0 0.0
        %1484 = vmatprep.subr.mxu0 0.0
        %1485 = vmatpush1.xpose.msra.mxu0 0.0
        %1486 = vmatprep.subr.mxu0 0.0
        %1487 = vmatpush1.xpose.msra.mxu0 0.0
        %1488 = vmatprep.subr.mxu0 0.0
        %1489 = vmatpush1.xpose.msra.mxu0 0.0
        %1490 = vmatprep.subr.mxu0 0.0
        %1491 = vmatpush1.xpose.msra.mxu0 0.0
        %1492 = vmatprep.subr.mxu0 0.0
        %1493 = vmatpush1.xpose.msra.mxu0 0.0
        %1494 = vmatprep.subr.mxu0 0.0
        %1495 = vmatpush1.xpose.msra.mxu0 0.0
        %1496 = vmatprep.subr.mxu0 0.0
        %1497 = vmatpush1.xpose.msra.mxu0 0.0
        %1498 = vmatprep.mubr.f32.mxu0 0.0
        %1499 = vmatmul.mubr.f32.gmra.mrb[0].mxu0 %v1402
        %v1500 = vpop.f32.mrb[0].mxu0
        %v1501 = vadd.f32 0.0, %v1500
        %v1502 = vpop.f32.mrb[0].mxu0
        %1503 = vmatprep.mubr.f32.mxu0 0.0
        %1504 = vmatmul.mubr.f32.gmra.mrb[0].mxu0 %v1404
        %v1505 = vpop.f32.mrb[0].mxu0
        %v1506 = vadd.f32 0.0, %v1505
        %v1507 = vpop.f32.mrb[0].mxu0
        %1508 = vmatprep.mubr.f32.mxu0 0.0
        %1509 = vmatmul.mubr.f32.gmra.mrb[0].mxu0 %v1406
        %v1510 = vpop.f32.mrb[0].mxu0
        %v1511 = vadd.f32 0.0, %v1510
        %v1512 = vpop.f32.mrb[0].mxu0
        %1513 = vmatprep.mubr.f32.mxu0 0.0
        %1514 = vmatmul.mubr.f32.gmra.mrb[0].mxu0 %v1408
        %v1515 = vpop.f32.mrb[0].mxu0
        %v1516 = vadd.f32 0.0, %v1515
        %v1517 = vpop.f32.mrb[0].mxu0
        %1518 = vmatprep.mubr.f32.mxu0 0.0
        %1519 = vmatmul.mubr.f32.gmra.mrb[0].mxu0 %v1410
        %v1520 = vpop.f32.mrb[0].mxu0
        %v1521 = vadd.f32 0.0, %v1520
        %v1522 = vpop.f32.mrb[0].mxu0
        %1523 = vmatprep.mubr.f32.mxu0 0.0
        %1524 = vmatmul.mubr.f32.gmra.mrb[0].mxu0 %v1412
        %v1525 = vpop.f32.mrb[0].mxu0
        %v1526 = vadd.f32 0.0, %v1525
        %v1527 = vpop.f32.mrb[0].mxu0
        %1528 = vmatprep.mubr.f32.mxu0 0.0
        %1529 = vmatmul.mubr.f32.gmra.mrb[0].mxu0 %v1414
        %v1530 = vpop.f32.mrb[0].mxu0
        %v1531 = vadd.f32 0.0, %v1530
        %v1532 = vpop.f32.mrb[0].mxu0
        %1533 = vmatprep.mubr.f32.mxu0 0.0
        %1534 = vmatmul.mubr.f32.gmra.mrb[0].mxu0 %v1416
        %v1535 = vpop.f32.mrb[0].mxu0
        %v1536 = vadd.f32 0.0, %v1535
        %v1537 = vpop.f32.mrb[0].mxu0
        %1538 = vdwg.mxu0
        %v1539 = vmul.f32 %v1501, 0.35355338
        %v1540 = vmul.f32 %v1506, 0.35355338
        %v1541 = vmul.f32 %v1511, 0.35355338
        %v1542 = vmul.f32 %v1516, 0.35355338
        %v1543 = vmul.f32 %v1521, 0.35355338
        %v1544 = vmul.f32 %v1526, 0.35355338
        %v1545 = vmul.f32 %v1531, 0.35355338
        %v1546 = vmul.f32 %v1536, 0.35355338
        %vm1547 = vcmask 523264
        %v1548 = vsel %vm1547, %v1539, -inf
        %1549 = vmax.xlane.f32.xlu0 %v1548
        %v1550 = vpop.xlane.xlu0 %1549
        %v1551 = vsel %vm1547, %v1540, -inf
        %1552 = vmax.xlane.f32.xlu0 %v1551
        %v1553 = vpop.xlane.xlu0 %1552
        %v1554 = vsel %vm1547, %v1541, -inf
        %1555 = vmax.xlane.f32.xlu0 %v1554
        %v1556 = vpop.xlane.xlu0 %1555
        %v1557 = vsel %vm1547, %v1542, -inf
        %1558 = vmax.xlane.f32.xlu0 %v1557
        %v1559 = vpop.xlane.xlu0 %1558
        %v1560 = vsel %vm1547, %v1543, -inf
        %1561 = vmax.xlane.f32.xlu0 %v1560
        %v1562 = vpop.xlane.xlu0 %1561
        %v1563 = vsel %vm1547, %v1544, -inf
        %1564 = vmax.xlane.f32.xlu0 %v1563
        %v1565 = vpop.xlane.xlu0 %1564
        %v1566 = vsel %vm1547, %v1545, -inf
        %1567 = vmax.xlane.f32.xlu0 %v1566
        %v1568 = vpop.xlane.xlu0 %1567
        %v1569 = vsel %vm1547, %v1546, -inf
        %1570 = vmax.xlane.f32.xlu0 %v1569
        %v1571 = vpop.xlane.xlu0 %1570
        %v1572 = vsub.f32 %v1539, %v1550
        %v1573 = vsub.f32 %v1540, %v1553
        %v1574 = vsub.f32 %v1541, %v1556
        %v1575 = vsub.f32 %v1542, %v1559
        %v1576 = vsub.f32 %v1543, %v1562
        %v1577 = vsub.f32 %v1544, %v1565
        %v1578 = vsub.f32 %v1545, %v1568
        %v1579 = vsub.f32 %v1546, %v1571
        %v1580 = vmul.f32 %v1572, 1.442695
        %v1581 = vpow.pop %v1580
        %v1582 = vmul.f32 %v1573, 1.442695
        %v1583 = vpow.pop %v1582
        %v1584 = vmul.f32 %v1574, 1.442695
        %v1585 = vpow.pop %v1584
        %v1586 = vmul.f32 %v1575, 1.442695
        %v1587 = vpow.pop %v1586
        %v1588 = vmul.f32 %v1576, 1.442695
        %v1589 = vpow.pop %v1588
        %v1590 = vmul.f32 %v1577, 1.442695
        %v1591 = vpow.pop %v1590
        %v1592 = vmul.f32 %v1578, 1.442695
        %v1593 = vpow.pop %v1592
        %v1594 = vmul.f32 %v1579, 1.442695
        %v1595 = vpow.pop %v1594
        %v1596 = vsel %vm1547, %v1581, 0.0
        %1597 = vadd.xlane.f32.xlu0 %v1596
        %v1598 = vpop.xlane.xlu0 %1597
        %v1599 = vsel %vm1547, %v1583, 0.0
        %1600 = vadd.xlane.f32.xlu0 %v1599
        %v1601 = vpop.xlane.xlu0 %1600
        %v1602 = vsel %vm1547, %v1585, 0.0
        %1603 = vadd.xlane.f32.xlu0 %v1602
        %v1604 = vpop.xlane.xlu0 %1603
        %v1605 = vsel %vm1547, %v1587, 0.0
        %1606 = vadd.xlane.f32.xlu0 %v1605
        %v1607 = vpop.xlane.xlu0 %1606
        %v1608 = vsel %vm1547, %v1589, 0.0
        %1609 = vadd.xlane.f32.xlu0 %v1608
        %v1610 = vpop.xlane.xlu0 %1609
        %v1611 = vsel %vm1547, %v1591, 0.0
        %1612 = vadd.xlane.f32.xlu0 %v1611
        %v1613 = vpop.xlane.xlu0 %1612
        %v1614 = vsel %vm1547, %v1593, 0.0
        %1615 = vadd.xlane.f32.xlu0 %v1614
        %v1616 = vpop.xlane.xlu0 %1615
        %v1617 = vsel %vm1547, %v1595, 0.0
        %1618 = vadd.xlane.f32.xlu0 %v1617
        %v1619 = vpop.xlane.xlu0 %1618
        %v1620 = vrcp.pop %v1598
        %v1621 = vrcp.pop %v1601
        %v1622 = vrcp.pop %v1604
        %v1623 = vrcp.pop %v1607
        %v1624 = vrcp.pop %v1610
        %v1625 = vrcp.pop %v1613
        %v1626 = vrcp.pop %v1616
        %v1627 = vrcp.pop %v1619
        %v1628 = vmul.f32 %v1581, %v1620
        %v1629 = vmul.f32 %v1583, %v1621
        %v1630 = vmul.f32 %v1585, %v1622
        %v1631 = vmul.f32 %v1587, %v1623
        %v1632 = vmul.f32 %v1589, %v1624
        %v1633 = vmul.f32 %v1591, %v1625
        %v1634 = vmul.f32 %v1593, %v1626
        %v1635 = vmul.f32 %v1595, %v1627
        %1636 = vrot.lane.b32.xlu0 %v1339, 64
        %v1637 = vpop.permute.xlu0 %1636
        %1638 = vrot.lane.b32.xlu0 %v1344, 64
        %v1639 = vpop.permute.xlu0 %1638
        %1640 = vrot.lane.b32.xlu0 %v1349, 64
        %v1641 = vpop.permute.xlu0 %1640
        %1642 = vrot.lane.b32.xlu0 %v1354, 64
        %v1643 = vpop.permute.xlu0 %1642
        %1644 = vrot.lane.b32.xlu0 %v1359, 64
        %v1645 = vpop.permute.xlu0 %1644
        %1646 = vrot.lane.b32.xlu0 %v1364, 64
        %v1647 = vpop.permute.xlu0 %1646
        %1648 = vrot.lane.b32.xlu0 %v1369, 64
        %v1649 = vpop.permute.xlu0 %1648
        %1650 = vrot.lane.b32.xlu0 %v1374, 64
        %v1651 = vpop.permute.xlu0 %1650
        %v1661 = vsel %vm1547, %v1628, 0
        %v1664 = vsel %vm1547, %v1629, 0
        %v1667 = vsel %vm1547, %v1630, 0
        %v1670 = vsel %vm1547, %v1631, 0
        %v1673 = vsel %vm1547, %v1632, 0
        %v1676 = vsel %vm1547, %v1633, 0
        %v1679 = vsel %vm1547, %v1634, 0
        %v1682 = vsel %vm1547, %v1635, 0
        %1684 = vmatprep.subr.mxu0 0.0
        %1685 = vmatpush1.msra.mxu0 %v1637
        %1686 = vmatprep.subr.mxu0 0.0
        %1687 = vmatpush1.msra.mxu0 %v1639
        %1688 = vmatprep.subr.mxu0 0.0
        %1689 = vmatpush1.msra.mxu0 %v1641
        %1690 = vmatprep.subr.mxu0 0.0
        %1691 = vmatpush1.msra.mxu0 %v1643
        %1692 = vmatprep.subr.mxu0 0.0
        %1693 = vmatpush1.msra.mxu0 %v1645
        %1694 = vmatprep.subr.mxu0 0.0
        %1695 = vmatpush1.msra.mxu0 %v1647
        %1696 = vmatprep.subr.mxu0 0.0
        %1697 = vmatpush1.msra.mxu0 %v1649
        %1698 = vmatprep.subr.mxu0 0.0
        %1699 = vmatpush1.msra.mxu0 %v1651
        %1700 = vmatprep.subr.mxu0 0.0
        %1701 = vmatpush1.msra.mxu0 0.0
        %1702 = vmatprep.subr.mxu0 0.0
        %1703 = vmatpush1.msra.mxu0 0.0
        %1704 = vmatprep.subr.mxu0 0.0
        %1705 = vmatpush1.msra.mxu0 0.0
        %1706 = vmatprep.subr.mxu0 0.0
        %1707 = vmatpush1.msra.mxu0 0.0
        %1708 = vmatprep.subr.mxu0 0.0
        %1709 = vmatpush1.msra.mxu0 0.0
        %1710 = vmatprep.subr.mxu0 0.0
        %1711 = vmatpush1.msra.mxu0 0.0
        %1712 = vmatprep.subr.mxu0 0.0
        %1713 = vmatpush1.msra.mxu0 0.0
        %1714 = vmatprep.subr.mxu0 0.0
        %1715 = vmatpush1.msra.mxu0 0.0
        %1716 = vmatprep.subr.mxu0 0.0
        %1717 = vmatpush1.msra.mxu0 0.0
        %1718 = vmatprep.subr.mxu0 0.0
        %1719 = vmatpush1.msra.mxu0 0.0
        %1720 = vmatprep.subr.mxu0 0.0
        %1721 = vmatpush1.msra.mxu0 0.0
        %1722 = vmatprep.subr.mxu0 0.0
        %1723 = vmatpush1.msra.mxu0 0.0
        %1724 = vmatprep.subr.mxu0 0.0
        %1725 = vmatpush1.msra.mxu0 0.0
        %1726 = vmatprep.subr.mxu0 0.0
        %1727 = vmatpush1.msra.mxu0 0.0
        %1728 = vmatprep.subr.mxu0 0.0
        %1729 = vmatpush1.msra.mxu0 0.0
        %1730 = vmatprep.subr.mxu0 0.0
        %1731 = vmatpush1.msra.mxu0 0.0
        %1732 = vmatprep.subr.mxu0 0.0
        %1733 = vmatpush1.msra.mxu0 0.0
        %1734 = vmatprep.subr.mxu0 0.0
        %1735 = vmatpush1.msra.mxu0 0.0
        %1736 = vmatprep.subr.mxu0 0.0
        %1737 = vmatpush1.msra.mxu0 0.0
        %1738 = vmatprep.subr.mxu0 0.0
        %1739 = vmatpush1.msra.mxu0 0.0
        %1740 = vmatprep.subr.mxu0 0.0
        %1741 = vmatpush1.msra.mxu0 0.0
        %1742 = vmatprep.subr.mxu0 0.0
        %1743 = vmatpush1.msra.mxu0 0.0
        %1744 = vmatprep.subr.mxu0 0.0
        %1745 = vmatpush1.msra.mxu0 0.0
        %1746 = vmatprep.subr.mxu0 0.0
        %1747 = vmatpush1.msra.mxu0 0.0
        %1748 = vmatprep.mubr.f32.mxu0 0.0
        %1749 = vmatmul.mubr.f32.gmra.mrb[0].mxu0 %v1661
        %v1750 = vpop.f32.mrb[0].mxu0
        %v1751 = vadd.f32 0.0, %v1750
        %v1752 = vpop.f32.mrb[0].mxu0
        %1753 = vmatprep.mubr.f32.mxu0 0.0
        %1754 = vmatmul.mubr.f32.gmra.mrb[0].mxu0 %v1664
        %v1755 = vpop.f32.mrb[0].mxu0
        %v1756 = vadd.f32 0.0, %v1755
        %v1757 = vpop.f32.mrb[0].mxu0
        %1758 = vmatprep.mubr.f32.mxu0 0.0
        %1759 = vmatmul.mubr.f32.gmra.mrb[0].mxu0 %v1667
        %v1760 = vpop.f32.mrb[0].mxu0
        %v1761 = vadd.f32 0.0, %v1760
        %v1762 = vpop.f32.mrb[0].mxu0
        %1763 = vmatprep.mubr.f32.mxu0 0.0
        %1764 = vmatmul.mubr.f32.gmra.mrb[0].mxu0 %v1670
        %v1765 = vpop.f32.mrb[0].mxu0
        %v1766 = vadd.f32 0.0, %v1765
        %v1767 = vpop.f32.mrb[0].mxu0
        %1768 = vmatprep.mubr.f32.mxu0 0.0
        %1769 = vmatmul.mubr.f32.gmra.mrb[0].mxu0 %v1673
        %v1770 = vpop.f32.mrb[0].mxu0
        %v1771 = vadd.f32 0.0, %v1770
        %v1772 = vpop.f32.mrb[0].mxu0
        %1773 = vmatprep.mubr.f32.mxu0 0.0
        %1774 = vmatmul.mubr.f32.gmra.mrb[0].mxu0 %v1676
        %v1775 = vpop.f32.mrb[0].mxu0
        %v1776 = vadd.f32 0.0, %v1775
        %v1777 = vpop.f32.mrb[0].mxu0
        %1778 = vmatprep.mubr.f32.mxu0 0.0
        %1779 = vmatmul.mubr.f32.gmra.mrb[0].mxu0 %v1679
        %v1780 = vpop.f32.mrb[0].mxu0
        %v1781 = vadd.f32 0.0, %v1780
        %v1782 = vpop.f32.mrb[0].mxu0
        %1783 = vmatprep.mubr.f32.mxu0 0.0
        %1784 = vmatmul.mubr.f32.gmra.mrb[0].mxu0 %v1682
        %v1785 = vpop.f32.mrb[0].mxu0
        %v1786 = vadd.f32 0.0, %v1785
        %v1787 = vpop.f32.mrb[0].mxu0
        %1788 = vdwg.mxu0
        %1789 = vrot.lane.b32.xlu0 %v1339, 120
        %v1790 = vpop.permute.xlu0 %1789
        %1791 = vrot.lane.b32.xlu0 %v1344, 120
        %v1792 = vpop.permute.xlu0 %1791
        %1793 = vrot.lane.b32.xlu0 %v1349, 120
        %v1794 = vpop.permute.xlu0 %1793
        %1795 = vrot.lane.b32.xlu0 %v1354, 120
        %v1796 = vpop.permute.xlu0 %1795
        %1797 = vrot.lane.b32.xlu0 %v1359, 120
        %v1798 = vpop.permute.xlu0 %1797
        %1799 = vrot.lane.b32.xlu0 %v1364, 120
        %v1800 = vpop.permute.xlu0 %1799
        %1801 = vrot.lane.b32.xlu0 %v1369, 120
        %v1802 = vpop.permute.xlu0 %1801
        %1803 = vrot.lane.b32.xlu0 %v1374, 120
        %v1804 = vpop.permute.xlu0 %1803
        %1805 = vrot.lane.b32.xlu0 %v1339, 88
        %v1806 = vpop.permute.xlu0 %1805
        %1807 = vrot.lane.b32.xlu0 %v1344, 88
        %v1808 = vpop.permute.xlu0 %1807
        %1809 = vrot.lane.b32.xlu0 %v1349, 88
        %v1810 = vpop.permute.xlu0 %1809
        %1811 = vrot.lane.b32.xlu0 %v1354, 88
        %v1812 = vpop.permute.xlu0 %1811
        %1813 = vrot.lane.b32.xlu0 %v1359, 88
        %v1814 = vpop.permute.xlu0 %1813
        %1815 = vrot.lane.b32.xlu0 %v1364, 88
        %v1816 = vpop.permute.xlu0 %1815
        %1817 = vrot.lane.b32.xlu0 %v1369, 88
        %v1818 = vpop.permute.xlu0 %1817
        %1819 = vrot.lane.b32.xlu0 %v1374, 88
        %v1820 = vpop.permute.xlu0 %1819
        %v1821 = vsel %vm1401, %v1790, 0
        %v1823 = vsel %vm1401, %v1792, 0
        %v1825 = vsel %vm1401, %v1794, 0
        %v1827 = vsel %vm1401, %v1796, 0
        %v1829 = vsel %vm1401, %v1798, 0
        %v1831 = vsel %vm1401, %v1800, 0
        %v1833 = vsel %vm1401, %v1802, 0
        %v1835 = vsel %vm1401, %v1804, 0
        %v1837 = vsel %vm1401, %v1806, 0
        %v1839 = vsel %vm1401, %v1808, 0
        %v1841 = vsel %vm1401, %v1810, 0
        %v1843 = vsel %vm1401, %v1812, 0
        %v1845 = vsel %vm1401, %v1814, 0
        %v1847 = vsel %vm1401, %v1816, 0
        %v1849 = vsel %vm1401, %v1818, 0
        %v1851 = vsel %vm1401, %v1820, 0
        %1853 = vmatprep.subr.mxu0 0.0
        %1854 = vmatpush1.xpose.msra.mxu0 %v1837
        %1855 = vmatprep.subr.mxu0 0.0
        %1856 = vmatpush1.xpose.msra.mxu0 %v1839
        %1857 = vmatprep.subr.mxu0 0.0
        %1858 = vmatpush1.xpose.msra.mxu0 %v1841
        %1859 = vmatprep.subr.mxu0 0.0
        %1860 = vmatpush1.xpose.msra.mxu0 %v1843
        %1861 = vmatprep.subr.mxu0 0.0
        %1862 = vmatpush1.xpose.msra.mxu0 %v1845
        %1863 = vmatprep.subr.mxu0 0.0
        %1864 = vmatpush1.xpose.msra.mxu0 %v1847
        %1865 = vmatprep.subr.mxu0 0.0
        %1866 = vmatpush1.xpose.msra.mxu0 %v1849
        %1867 = vmatprep.subr.mxu0 0.0
        %1868 = vmatpush1.xpose.msra.mxu0 %v1851
        %1869 = vmatprep.subr.mxu0 0.0
        %1870 = vmatpush1.xpose.msra.mxu0 0.0
        %1871 = vmatprep.subr.mxu0 0.0
        %1872 = vmatpush1.xpose.msra.mxu0 0.0
        %1873 = vmatprep.subr.mxu0 0.0
        %1874 = vmatpush1.xpose.msra.mxu0 0.0
        %1875 = vmatprep.subr.mxu0 0.0
        %1876 = vmatpush1.xpose.msra.mxu0 0.0
        %1877 = vmatprep.subr.mxu0 0.0
        %1878 = vmatpush1.xpose.msra.mxu0 0.0
        %1879 = vmatprep.subr.mxu0 0.0
        %1880 = vmatpush1.xpose.msra.mxu0 0.0
        %1881 = vmatprep.subr.mxu0 0.0
        %1882 = vmatpush1.xpose.msra.mxu0 0.0
        %1883 = vmatprep.subr.mxu0 0.0
        %1884 = vmatpush1.xpose.msra.mxu0 0.0
        %1885 = vmatprep.subr.mxu0 0.0
        %1886 = vmatpush1.xpose.msra.mxu0 0.0
        %1887 = vmatprep.subr.mxu0 0.0
        %1888 = vmatpush1.xpose.msra.mxu0 0.0
        %1889 = vmatprep.subr.mxu0 0.0
        %1890 = vmatpush1.xpose.msra.mxu0 0.0
        %1891 = vmatprep.subr.mxu0 0.0
        %1892 = vmatpush1.xpose.msra.mxu0 0.0
        %1893 = vmatprep.subr.mxu0 0.0
        %1894 = vmatpush1.xpose.msra.mxu0 0.0
        %1895 = vmatprep.subr.mxu0 0.0
        %1896 = vmatpush1.xpose.msra.mxu0 0.0
        %1897 = vmatprep.subr.mxu0 0.0
        %1898 = vmatpush1.xpose.msra.mxu0 0.0
        %1899 = vmatprep.subr.mxu0 0.0
        %1900 = vmatpush1.xpose.msra.mxu0 0.0
        %1901 = vmatprep.subr.mxu0 0.0
        %1902 = vmatpush1.xpose.msra.mxu0 0.0
        %1903 = vmatprep.subr.mxu0 0.0
        %1904 = vmatpush1.xpose.msra.mxu0 0.0
        %1905 = vmatprep.subr.mxu0 0.0
        %1906 = vmatpush1.xpose.msra.mxu0 0.0
        %1907 = vmatprep.subr.mxu0 0.0
        %1908 = vmatpush1.xpose.msra.mxu0 0.0
        %1909 = vmatprep.subr.mxu0 0.0
        %1910 = vmatpush1.xpose.msra.mxu0 0.0
        %1911 = vmatprep.subr.mxu0 0.0
        %1912 = vmatpush1.xpose.msra.mxu0 0.0
        %1913 = vmatprep.subr.mxu0 0.0
        %1914 = vmatpush1.xpose.msra.mxu0 0.0
        %1915 = vmatprep.subr.mxu0 0.0
        %1916 = vmatpush1.xpose.msra.mxu0 0.0
        %1917 = vmatprep.mubr.f32.mxu0 0.0
        %1918 = vmatmul.mubr.f32.gmra.mrb[0].mxu0 %v1821
        %v1919 = vpop.f32.mrb[0].mxu0
        %v1920 = vadd.f32 0.0, %v1919
        %v1921 = vpop.f32.mrb[0].mxu0
        %1922 = vmatprep.mubr.f32.mxu0 0.0
        %1923 = vmatmul.mubr.f32.gmra.mrb[0].mxu0 %v1823
        %v1924 = vpop.f32.mrb[0].mxu0
        %v1925 = vadd.f32 0.0, %v1924
        %v1926 = vpop.f32.mrb[0].mxu0
        %1927 = vmatprep.mubr.f32.mxu0 0.0
        %1928 = vmatmul.mubr.f32.gmra.mrb[0].mxu0 %v1825
        %v1929 = vpop.f32.mrb[0].mxu0
        %v1930 = vadd.f32 0.0, %v1929
        %v1931 = vpop.f32.mrb[0].mxu0
        %1932 = vmatprep.mubr.f32.mxu0 0.0
        %1933 = vmatmul.mubr.f32.gmra.mrb[0].mxu0 %v1827
        %v1934 = vpop.f32.mrb[0].mxu0
        %v1935 = vadd.f32 0.0, %v1934
        %v1936 = vpop.f32.mrb[0].mxu0
        %1937 = vmatprep.mubr.f32.mxu0 0.0
        %1938 = vmatmul.mubr.f32.gmra.mrb[0].mxu0 %v1829
        %v1939 = vpop.f32.mrb[0].mxu0
        %v1940 = vadd.f32 0.0, %v1939
        %v1941 = vpop.f32.mrb[0].mxu0
        %1942 = vmatprep.mubr.f32.mxu0 0.0
        %1943 = vmatmul.mubr.f32.gmra.mrb[0].mxu0 %v1831
        %v1944 = vpop.f32.mrb[0].mxu0
        %v1945 = vadd.f32 0.0, %v1944
        %v1946 = vpop.f32.mrb[0].mxu0
        %1947 = vmatprep.mubr.f32.mxu0 0.0
        %1948 = vmatmul.mubr.f32.gmra.mrb[0].mxu0 %v1833
        %v1949 = vpop.f32.mrb[0].mxu0
        %v1950 = vadd.f32 0.0, %v1949
        %v1951 = vpop.f32.mrb[0].mxu0
        %1952 = vmatprep.mubr.f32.mxu0 0.0
        %1953 = vmatmul.mubr.f32.gmra.mrb[0].mxu0 %v1835
        %v1954 = vpop.f32.mrb[0].mxu0
        %v1955 = vadd.f32 0.0, %v1954
        %v1956 = vpop.f32.mrb[0].mxu0
        %1957 = vdwg.mxu0
        %v1958 = vmul.f32 %v1920, 0.35355338
        %v1959 = vmul.f32 %v1925, 0.35355338
        %v1960 = vmul.f32 %v1930, 0.35355338
        %v1961 = vmul.f32 %v1935, 0.35355338
        %v1962 = vmul.f32 %v1940, 0.35355338
        %v1963 = vmul.f32 %v1945, 0.35355338
        %v1964 = vmul.f32 %v1950, 0.35355338
        %v1965 = vmul.f32 %v1955, 0.35355338
        %v1966 = vsel %vm1547, %v1958, -inf
        %1967 = vmax.xlane.f32.xlu0 %v1966
        %v1968 = vpop.xlane.xlu0 %1967
        %v1969 = vsel %vm1547, %v1959, -inf
        %1970 = vmax.xlane.f32.xlu0 %v1969
        %v1971 = vpop.xlane.xlu0 %1970
        %v1972 = vsel %vm1547, %v1960, -inf
        %1973 = vmax.xlane.f32.xlu0 %v1972
        %v1974 = vpop.xlane.xlu0 %1973
        %v1975 = vsel %vm1547, %v1961, -inf
        %1976 = vmax.xlane.f32.xlu0 %v1975
        %v1977 = vpop.xlane.xlu0 %1976
        %v1978 = vsel %vm1547, %v1962, -inf
        %1979 = vmax.xlane.f32.xlu0 %v1978
        %v1980 = vpop.xlane.xlu0 %1979
        %v1981 = vsel %vm1547, %v1963, -inf
        %1982 = vmax.xlane.f32.xlu0 %v1981
        %v1983 = vpop.xlane.xlu0 %1982
        %v1984 = vsel %vm1547, %v1964, -inf
        %1985 = vmax.xlane.f32.xlu0 %v1984
        %v1986 = vpop.xlane.xlu0 %1985
        %v1987 = vsel %vm1547, %v1965, -inf
        %1988 = vmax.xlane.f32.xlu0 %v1987
        %v1989 = vpop.xlane.xlu0 %1988
        %v1990 = vsub.f32 %v1958, %v1968
        %v1991 = vsub.f32 %v1959, %v1971
        %v1992 = vsub.f32 %v1960, %v1974
        %v1993 = vsub.f32 %v1961, %v1977
        %v1994 = vsub.f32 %v1962, %v1980
        %v1995 = vsub.f32 %v1963, %v1983
        %v1996 = vsub.f32 %v1964, %v1986
        %v1997 = vsub.f32 %v1965, %v1989
        %v1998 = vmul.f32 %v1990, 1.442695
        %v1999 = vpow.pop %v1998
        %v2000 = vmul.f32 %v1991, 1.442695
        %v2001 = vpow.pop %v2000
        %v2002 = vmul.f32 %v1992, 1.442695
        %v2003 = vpow.pop %v2002
        %v2004 = vmul.f32 %v1993, 1.442695
        %v2005 = vpow.pop %v2004
        %v2006 = vmul.f32 %v1994, 1.442695
        %v2007 = vpow.pop %v2006
        %v2008 = vmul.f32 %v1995, 1.442695
        %v2009 = vpow.pop %v2008
        %v2010 = vmul.f32 %v1996, 1.442695
        %v2011 = vpow.pop %v2010
        %v2012 = vmul.f32 %v1997, 1.442695
        %v2013 = vpow.pop %v2012
        %v2014 = vsel %vm1547, %v1999, 0.0
        %2015 = vadd.xlane.f32.xlu0 %v2014
        %v2016 = vpop.xlane.xlu0 %2015
        %v2017 = vsel %vm1547, %v2001, 0.0
        %2018 = vadd.xlane.f32.xlu0 %v2017
        %v2019 = vpop.xlane.xlu0 %2018
        %v2020 = vsel %vm1547, %v2003, 0.0
        %2021 = vadd.xlane.f32.xlu0 %v2020
        %v2022 = vpop.xlane.xlu0 %2021
        %v2023 = vsel %vm1547, %v2005, 0.0
        %2024 = vadd.xlane.f32.xlu0 %v2023
        %v2025 = vpop.xlane.xlu0 %2024
        %v2026 = vsel %vm1547, %v2007, 0.0
        %2027 = vadd.xlane.f32.xlu0 %v2026
        %v2028 = vpop.xlane.xlu0 %2027
        %v2029 = vsel %vm1547, %v2009, 0.0
        %2030 = vadd.xlane.f32.xlu0 %v2029
        %v2031 = vpop.xlane.xlu0 %2030
        %v2032 = vsel %vm1547, %v2011, 0.0
        %2033 = vadd.xlane.f32.xlu0 %v2032
        %v2034 = vpop.xlane.xlu0 %2033
        %v2035 = vsel %vm1547, %v2013, 0.0
        %2036 = vadd.xlane.f32.xlu0 %v2035
        %v2037 = vpop.xlane.xlu0 %2036
        %v2038 = vrcp.pop %v2016
        %v2039 = vrcp.pop %v2019
        %v2040 = vrcp.pop %v2022
        %v2041 = vrcp.pop %v2025
        %v2042 = vrcp.pop %v2028
        %v2043 = vrcp.pop %v2031
        %v2044 = vrcp.pop %v2034
        %v2045 = vrcp.pop %v2037
        %v2046 = vmul.f32 %v1999, %v2038
        %v2047 = vmul.f32 %v2001, %v2039
        %v2048 = vmul.f32 %v2003, %v2040
        %v2049 = vmul.f32 %v2005, %v2041
        %v2050 = vmul.f32 %v2007, %v2042
        %v2051 = vmul.f32 %v2009, %v2043
        %v2052 = vmul.f32 %v2011, %v2044
        %v2053 = vmul.f32 %v2013, %v2045
        %2054 = vrot.lane.b32.xlu0 %v1339, 56
        %v2055 = vpop.permute.xlu0 %2054
        %2056 = vrot.lane.b32.xlu0 %v1344, 56
        %v2057 = vpop.permute.xlu0 %2056
        %2058 = vrot.lane.b32.xlu0 %v1349, 56
        %v2059 = vpop.permute.xlu0 %2058
        %2060 = vrot.lane.b32.xlu0 %v1354, 56
        %v2061 = vpop.permute.xlu0 %2060
        %2062 = vrot.lane.b32.xlu0 %v1359, 56
        %v2063 = vpop.permute.xlu0 %2062
        %2064 = vrot.lane.b32.xlu0 %v1364, 56
        %v2065 = vpop.permute.xlu0 %2064
        %2066 = vrot.lane.b32.xlu0 %v1369, 56
        %v2067 = vpop.permute.xlu0 %2066
        %2068 = vrot.lane.b32.xlu0 %v1374, 56
        %v2069 = vpop.permute.xlu0 %2068
        %v2079 = vsel %vm1547, %v2046, 0
        %v2082 = vsel %vm1547, %v2047, 0
        %v2085 = vsel %vm1547, %v2048, 0
        %v2088 = vsel %vm1547, %v2049, 0
        %v2091 = vsel %vm1547, %v2050, 0
        %v2094 = vsel %vm1547, %v2051, 0
        %v2097 = vsel %vm1547, %v2052, 0
        %v2100 = vsel %vm1547, %v2053, 0
        %2102 = vmatprep.subr.mxu0 0.0
        %2103 = vmatpush1.msra.mxu0 %v2055
        %2104 = vmatprep.subr.mxu0 0.0
        %2105 = vmatpush1.msra.mxu0 %v2057
        %2106 = vmatprep.subr.mxu0 0.0
        %2107 = vmatpush1.msra.mxu0 %v2059
        %2108 = vmatprep.subr.mxu0 0.0
        %2109 = vmatpush1.msra.mxu0 %v2061
        %2110 = vmatprep.subr.mxu0 0.0
        %2111 = vmatpush1.msra.mxu0 %v2063
        %2112 = vmatprep.subr.mxu0 0.0
        %2113 = vmatpush1.msra.mxu0 %v2065
        %2114 = vmatprep.subr.mxu0 0.0
        %2115 = vmatpush1.msra.mxu0 %v2067
        %2116 = vmatprep.subr.mxu0 0.0
        %2117 = vmatpush1.msra.mxu0 %v2069
        %2118 = vmatprep.subr.mxu0 0.0
        %2119 = vmatpush1.msra.mxu0 0.0
        %2120 = vmatprep.subr.mxu0 0.0
        %2121 = vmatpush1.msra.mxu0 0.0
        %2122 = vmatprep.subr.mxu0 0.0
        %2123 = vmatpush1.msra.mxu0 0.0
        %2124 = vmatprep.subr.mxu0 0.0
        %2125 = vmatpush1.msra.mxu0 0.0
        %2126 = vmatprep.subr.mxu0 0.0
        %2127 = vmatpush1.msra.mxu0 0.0
        %2128 = vmatprep.subr.mxu0 0.0
        %2129 = vmatpush1.msra.mxu0 0.0
        %2130 = vmatprep.subr.mxu0 0.0
        %2131 = vmatpush1.msra.mxu0 0.0
        %2132 = vmatprep.subr.mxu0 0.0
        %2133 = vmatpush1.msra.mxu0 0.0
        %2134 = vmatprep.subr.mxu0 0.0
        %2135 = vmatpush1.msra.mxu0 0.0
        %2136 = vmatprep.subr.mxu0 0.0
        %2137 = vmatpush1.msra.mxu0 0.0
        %2138 = vmatprep.subr.mxu0 0.0
        %2139 = vmatpush1.msra.mxu0 0.0
        %2140 = vmatprep.subr.mxu0 0.0
        %2141 = vmatpush1.msra.mxu0 0.0
        %2142 = vmatprep.subr.mxu0 0.0
        %2143 = vmatpush1.msra.mxu0 0.0
        %2144 = vmatprep.subr.mxu0 0.0
        %2145 = vmatpush1.msra.mxu0 0.0
        %2146 = vmatprep.subr.mxu0 0.0
        %2147 = vmatpush1.msra.mxu0 0.0
        %2148 = vmatprep.subr.mxu0 0.0
        %2149 = vmatpush1.msra.mxu0 0.0
        %2150 = vmatprep.subr.mxu0 0.0
        %2151 = vmatpush1.msra.mxu0 0.0
        %2152 = vmatprep.subr.mxu0 0.0
        %2153 = vmatpush1.msra.mxu0 0.0
        %2154 = vmatprep.subr.mxu0 0.0
        %2155 = vmatpush1.msra.mxu0 0.0
        %2156 = vmatprep.subr.mxu0 0.0
        %2157 = vmatpush1.msra.mxu0 0.0
        %2158 = vmatprep.subr.mxu0 0.0
        %2159 = vmatpush1.msra.mxu0 0.0
        %2160 = vmatprep.subr.mxu0 0.0
        %2161 = vmatpush1.msra.mxu0 0.0
        %2162 = vmatprep.subr.mxu0 0.0
        %2163 = vmatpush1.msra.mxu0 0.0
        %2164 = vmatprep.subr.mxu0 0.0
        %2165 = vmatpush1.msra.mxu0 0.0
        %2166 = vmatprep.mubr.f32.mxu0 0.0
        %2167 = vmatmul.mubr.f32.gmra.mrb[0].mxu0 %v2079
        %v2168 = vpop.f32.mrb[0].mxu0
        %v2169 = vadd.f32 0.0, %v2168
        %v2170 = vpop.f32.mrb[0].mxu0
        %2171 = vmatprep.mubr.f32.mxu0 0.0
        %2172 = vmatmul.mubr.f32.gmra.mrb[0].mxu0 %v2082
        %v2173 = vpop.f32.mrb[0].mxu0
        %v2174 = vadd.f32 0.0, %v2173
        %v2175 = vpop.f32.mrb[0].mxu0
        %2176 = vmatprep.mubr.f32.mxu0 0.0
        %2177 = vmatmul.mubr.f32.gmra.mrb[0].mxu0 %v2085
        %v2178 = vpop.f32.mrb[0].mxu0
        %v2179 = vadd.f32 0.0, %v2178
        %v2180 = vpop.f32.mrb[0].mxu0
        %2181 = vmatprep.mubr.f32.mxu0 0.0
        %2182 = vmatmul.mubr.f32.gmra.mrb[0].mxu0 %v2088
        %v2183 = vpop.f32.mrb[0].mxu0
        %v2184 = vadd.f32 0.0, %v2183
        %v2185 = vpop.f32.mrb[0].mxu0
        %2186 = vmatprep.mubr.f32.mxu0 0.0
        %2187 = vmatmul.mubr.f32.gmra.mrb[0].mxu0 %v2091
        %v2188 = vpop.f32.mrb[0].mxu0
        %v2189 = vadd.f32 0.0, %v2188
        %v2190 = vpop.f32.mrb[0].mxu0
        %2191 = vmatprep.mubr.f32.mxu0 0.0
        %2192 = vmatmul.mubr.f32.gmra.mrb[0].mxu0 %v2094
        %v2193 = vpop.f32.mrb[0].mxu0
        %v2194 = vadd.f32 0.0, %v2193
        %v2195 = vpop.f32.mrb[0].mxu0
        %2196 = vmatprep.mubr.f32.mxu0 0.0
        %2197 = vmatmul.mubr.f32.gmra.mrb[0].mxu0 %v2097
        %v2198 = vpop.f32.mrb[0].mxu0
        %v2199 = vadd.f32 0.0, %v2198
        %v2200 = vpop.f32.mrb[0].mxu0
        %2201 = vmatprep.mubr.f32.mxu0 0.0
        %2202 = vmatmul.mubr.f32.gmra.mrb[0].mxu0 %v2100
        %v2203 = vpop.f32.mrb[0].mxu0
        %v2204 = vadd.f32 0.0, %v2203
        %v2205 = vpop.f32.mrb[0].mxu0
        %2206 = vdwg.mxu0
        %2207 = vrot.lane.b32.xlu0 %v1339, 112
        %v2208 = vpop.permute.xlu0 %2207
        %2209 = vrot.lane.b32.xlu0 %v1344, 112
        %v2210 = vpop.permute.xlu0 %2209
        %2211 = vrot.lane.b32.xlu0 %v1349, 112
        %v2212 = vpop.permute.xlu0 %2211
        %2213 = vrot.lane.b32.xlu0 %v1354, 112
        %v2214 = vpop.permute.xlu0 %2213
        %2215 = vrot.lane.b32.xlu0 %v1359, 112
        %v2216 = vpop.permute.xlu0 %2215
        %2217 = vrot.lane.b32.xlu0 %v1364, 112
        %v2218 = vpop.permute.xlu0 %2217
        %2219 = vrot.lane.b32.xlu0 %v1369, 112
        %v2220 = vpop.permute.xlu0 %2219
        %2221 = vrot.lane.b32.xlu0 %v1374, 112
        %v2222 = vpop.permute.xlu0 %2221
        %2223 = vrot.lane.b32.xlu0 %v1339, 80
        %v2224 = vpop.permute.xlu0 %2223
        %2225 = vrot.lane.b32.xlu0 %v1344, 80
        %v2226 = vpop.permute.xlu0 %2225
        %2227 = vrot.lane.b32.xlu0 %v1349, 80
        %v2228 = vpop.permute.xlu0 %2227
        %2229 = vrot.lane.b32.xlu0 %v1354, 80
        %v2230 = vpop.permute.xlu0 %2229
        %2231 = vrot.lane.b32.xlu0 %v1359, 80
        %v2232 = vpop.permute.xlu0 %2231
        %2233 = vrot.lane.b32.xlu0 %v1364, 80
        %v2234 = vpop.permute.xlu0 %2233
        %2235 = vrot.lane.b32.xlu0 %v1369, 80
        %v2236 = vpop.permute.xlu0 %2235
        %2237 = vrot.lane.b32.xlu0 %v1374, 80
        %v2238 = vpop.permute.xlu0 %2237
        %v2239 = vsel %vm1401, %v2208, 0
        %v2241 = vsel %vm1401, %v2210, 0
        %v2243 = vsel %vm1401, %v2212, 0
        %v2245 = vsel %vm1401, %v2214, 0
        %v2247 = vsel %vm1401, %v2216, 0
        %v2249 = vsel %vm1401, %v2218, 0
        %v2251 = vsel %vm1401, %v2220, 0
        %v2253 = vsel %vm1401, %v2222, 0
        %v2255 = vsel %vm1401, %v2224, 0
        %v2257 = vsel %vm1401, %v2226, 0
        %v2259 = vsel %vm1401, %v2228, 0
        %v2261 = vsel %vm1401, %v2230, 0
        %v2263 = vsel %vm1401, %v2232, 0
        %v2265 = vsel %vm1401, %v2234, 0
        %v2267 = vsel %vm1401, %v2236, 0
        %v2269 = vsel %vm1401, %v2238, 0
        %2271 = vmatprep.subr.mxu0 0.0
        %2272 = vmatpush1.xpose.msra.mxu0 %v2255
        %2273 = vmatprep.subr.mxu0 0.0
        %2274 = vmatpush1.xpose.msra.mxu0 %v2257
        %2275 = vmatprep.subr.mxu0 0.0
        %2276 = vmatpush1.xpose.msra.mxu0 %v2259
        %2277 = vmatprep.subr.mxu0 0.0
        %2278 = vmatpush1.xpose.msra.mxu0 %v2261
        %2279 = vmatprep.subr.mxu0 0.0
        %2280 = vmatpush1.xpose.msra.mxu0 %v2263
        %2281 = vmatprep.subr.mxu0 0.0
        %2282 = vmatpush1.xpose.msra.mxu0 %v2265
        %2283 = vmatprep.subr.mxu0 0.0
        %2284 = vmatpush1.xpose.msra.mxu0 %v2267
        %2285 = vmatprep.subr.mxu0 0.0
        %2286 = vmatpush1.xpose.msra.mxu0 %v2269
        %2287 = vmatprep.subr.mxu0 0.0
        %2288 = vmatpush1.xpose.msra.mxu0 0.0
        %2289 = vmatprep.subr.mxu0 0.0
        %2290 = vmatpush1.xpose.msra.mxu0 0.0
        %2291 = vmatprep.subr.mxu0 0.0
        %2292 = vmatpush1.xpose.msra.mxu0 0.0
        %2293 = vmatprep.subr.mxu0 0.0
        %2294 = vmatpush1.xpose.msra.mxu0 0.0
        %2295 = vmatprep.subr.mxu0 0.0
        %2296 = vmatpush1.xpose.msra.mxu0 0.0
        %2297 = vmatprep.subr.mxu0 0.0
        %2298 = vmatpush1.xpose.msra.mxu0 0.0
        %2299 = vmatprep.subr.mxu0 0.0
        %2300 = vmatpush1.xpose.msra.mxu0 0.0
        %2301 = vmatprep.subr.mxu0 0.0
        %2302 = vmatpush1.xpose.msra.mxu0 0.0
        %2303 = vmatprep.subr.mxu0 0.0
        %2304 = vmatpush1.xpose.msra.mxu0 0.0
        %2305 = vmatprep.subr.mxu0 0.0
        %2306 = vmatpush1.xpose.msra.mxu0 0.0
        %2307 = vmatprep.subr.mxu0 0.0
        %2308 = vmatpush1.xpose.msra.mxu0 0.0
        %2309 = vmatprep.subr.mxu0 0.0
        %2310 = vmatpush1.xpose.msra.mxu0 0.0
        %2311 = vmatprep.subr.mxu0 0.0
        %2312 = vmatpush1.xpose.msra.mxu0 0.0
        %2313 = vmatprep.subr.mxu0 0.0
        %2314 = vmatpush1.xpose.msra.mxu0 0.0
        %2315 = vmatprep.subr.mxu0 0.0
        %2316 = vmatpush1.xpose.msra.mxu0 0.0
        %2317 = vmatprep.subr.mxu0 0.0
        %2318 = vmatpush1.xpose.msra.mxu0 0.0
        %2319 = vmatprep.subr.mxu0 0.0
        %2320 = vmatpush1.xpose.msra.mxu0 0.0
        %2321 = vmatprep.subr.mxu0 0.0
        %2322 = vmatpush1.xpose.msra.mxu0 0.0
        %2323 = vmatprep.subr.mxu0 0.0
        %2324 = vmatpush1.xpose.msra.mxu0 0.0
        %2325 = vmatprep.subr.mxu0 0.0
        %2326 = vmatpush1.xpose.msra.mxu0 0.0
        %2327 = vmatprep.subr.mxu0 0.0
        %2328 = vmatpush1.xpose.msra.mxu0 0.0
        %2329 = vmatprep.subr.mxu0 0.0
        %2330 = vmatpush1.xpose.msra.mxu0 0.0
        %2331 = vmatprep.subr.mxu0 0.0
        %2332 = vmatpush1.xpose.msra.mxu0 0.0
        %2333 = vmatprep.subr.mxu0 0.0
        %2334 = vmatpush1.xpose.msra.mxu0 0.0
        %2335 = vmatprep.mubr.f32.mxu0 0.0
        %2336 = vmatmul.mubr.f32.gmra.mrb[0].mxu0 %v2239
        %v2337 = vpop.f32.mrb[0].mxu0
        %v2338 = vadd.f32 0.0, %v2337
        %v2339 = vpop.f32.mrb[0].mxu0
        %2340 = vmatprep.mubr.f32.mxu0 0.0
        %2341 = vmatmul.mubr.f32.gmra.mrb[0].mxu0 %v2241
        %v2342 = vpop.f32.mrb[0].mxu0
        %v2343 = vadd.f32 0.0, %v2342
        %v2344 = vpop.f32.mrb[0].mxu0
        %2345 = vmatprep.mubr.f32.mxu0 0.0
        %2346 = vmatmul.mubr.f32.gmra.mrb[0].mxu0 %v2243
        %v2347 = vpop.f32.mrb[0].mxu0
        %v2348 = vadd.f32 0.0, %v2347
        %v2349 = vpop.f32.mrb[0].mxu0
        %2350 = vmatprep.mubr.f32.mxu0 0.0
        %2351 = vmatmul.mubr.f32.gmra.mrb[0].mxu0 %v2245
        %v2352 = vpop.f32.mrb[0].mxu0
        %v2353 = vadd.f32 0.0, %v2352
        %v2354 = vpop.f32.mrb[0].mxu0
        %2355 = vmatprep.mubr.f32.mxu0 0.0
        %2356 = vmatmul.mubr.f32.gmra.mrb[0].mxu0 %v2247
        %v2357 = vpop.f32.mrb[0].mxu0
        %v2358 = vadd.f32 0.0, %v2357
        %v2359 = vpop.f32.mrb[0].mxu0
        %2360 = vmatprep.mubr.f32.mxu0 0.0
        %2361 = vmatmul.mubr.f32.gmra.mrb[0].mxu0 %v2249
        %v2362 = vpop.f32.mrb[0].mxu0
        %v2363 = vadd.f32 0.0, %v2362
        %v2364 = vpop.f32.mrb[0].mxu0
        %2365 = vmatprep.mubr.f32.mxu0 0.0
        %2366 = vmatmul.mubr.f32.gmra.mrb[0].mxu0 %v2251
        %v2367 = vpop.f32.mrb[0].mxu0
        %v2368 = vadd.f32 0.0, %v2367
        %v2369 = vpop.f32.mrb[0].mxu0
        %2370 = vmatprep.mubr.f32.mxu0 0.0
        %2371 = vmatmul.mubr.f32.gmra.mrb[0].mxu0 %v2253
        %v2372 = vpop.f32.mrb[0].mxu0
        %v2373 = vadd.f32 0.0, %v2372
        %v2374 = vpop.f32.mrb[0].mxu0
        %2375 = vdwg.mxu0
        %v2376 = vmul.f32 %v2338, 0.35355338
        %v2377 = vmul.f32 %v2343, 0.35355338
        %v2378 = vmul.f32 %v2348, 0.35355338
        %v2379 = vmul.f32 %v2353, 0.35355338
        %v2380 = vmul.f32 %v2358, 0.35355338
        %v2381 = vmul.f32 %v2363, 0.35355338
        %v2382 = vmul.f32 %v2368, 0.35355338
        %v2383 = vmul.f32 %v2373, 0.35355338
        %v2384 = vsel %vm1547, %v2376, -inf
        %2385 = vmax.xlane.f32.xlu0 %v2384
        %v2386 = vpop.xlane.xlu0 %2385
        %v2387 = vsel %vm1547, %v2377, -inf
        %2388 = vmax.xlane.f32.xlu0 %v2387
        %v2389 = vpop.xlane.xlu0 %2388
        %v2390 = vsel %vm1547, %v2378, -inf
        %2391 = vmax.xlane.f32.xlu0 %v2390
        %v2392 = vpop.xlane.xlu0 %2391
        %v2393 = vsel %vm1547, %v2379, -inf
        %2394 = vmax.xlane.f32.xlu0 %v2393
        %v2395 = vpop.xlane.xlu0 %2394
        %v2396 = vsel %vm1547, %v2380, -inf
        %2397 = vmax.xlane.f32.xlu0 %v2396
        %v2398 = vpop.xlane.xlu0 %2397
        %v2399 = vsel %vm1547, %v2381, -inf
        %2400 = vmax.xlane.f32.xlu0 %v2399
        %v2401 = vpop.xlane.xlu0 %2400
        %v2402 = vsel %vm1547, %v2382, -inf
        %2403 = vmax.xlane.f32.xlu0 %v2402
        %v2404 = vpop.xlane.xlu0 %2403
        %v2405 = vsel %vm1547, %v2383, -inf
        %2406 = vmax.xlane.f32.xlu0 %v2405
        %v2407 = vpop.xlane.xlu0 %2406
        %v2408 = vsub.f32 %v2376, %v2386
        %v2409 = vsub.f32 %v2377, %v2389
        %v2410 = vsub.f32 %v2378, %v2392
        %v2411 = vsub.f32 %v2379, %v2395
        %v2412 = vsub.f32 %v2380, %v2398
        %v2413 = vsub.f32 %v2381, %v2401
        %v2414 = vsub.f32 %v2382, %v2404
        %v2415 = vsub.f32 %v2383, %v2407
        %v2416 = vmul.f32 %v2408, 1.442695
        %v2417 = vpow.pop %v2416
        %v2418 = vmul.f32 %v2409, 1.442695
        %v2419 = vpow.pop %v2418
        %v2420 = vmul.f32 %v2410, 1.442695
        %v2421 = vpow.pop %v2420
        %v2422 = vmul.f32 %v2411, 1.442695
        %v2423 = vpow.pop %v2422
        %v2424 = vmul.f32 %v2412, 1.442695
        %v2425 = vpow.pop %v2424
        %v2426 = vmul.f32 %v2413, 1.442695
        %v2427 = vpow.pop %v2426
        %v2428 = vmul.f32 %v2414, 1.442695
        %v2429 = vpow.pop %v2428
        %v2430 = vmul.f32 %v2415, 1.442695
        %v2431 = vpow.pop %v2430
        %v2432 = vsel %vm1547, %v2417, 0.0
        %2433 = vadd.xlane.f32.xlu0 %v2432
        %v2434 = vpop.xlane.xlu0 %2433
        %v2435 = vsel %vm1547, %v2419, 0.0
        %2436 = vadd.xlane.f32.xlu0 %v2435
        %v2437 = vpop.xlane.xlu0 %2436
        %v2438 = vsel %vm1547, %v2421, 0.0
        %2439 = vadd.xlane.f32.xlu0 %v2438
        %v2440 = vpop.xlane.xlu0 %2439
        %v2441 = vsel %vm1547, %v2423, 0.0
        %2442 = vadd.xlane.f32.xlu0 %v2441
        %v2443 = vpop.xlane.xlu0 %2442
        %v2444 = vsel %vm1547, %v2425, 0.0
        %2445 = vadd.xlane.f32.xlu0 %v2444
        %v2446 = vpop.xlane.xlu0 %2445
        %v2447 = vsel %vm1547, %v2427, 0.0
        %2448 = vadd.xlane.f32.xlu0 %v2447
        %v2449 = vpop.xlane.xlu0 %2448
        %v2450 = vsel %vm1547, %v2429, 0.0
        %2451 = vadd.xlane.f32.xlu0 %v2450
        %v2452 = vpop.xlane.xlu0 %2451
        %v2453 = vsel %vm1547, %v2431, 0.0
        %2454 = vadd.xlane.f32.xlu0 %v2453
        %v2455 = vpop.xlane.xlu0 %2454
        %v2456 = vrcp.pop %v2434
        %v2457 = vrcp.pop %v2437
        %v2458 = vrcp.pop %v2440
        %v2459 = vrcp.pop %v2443
        %v2460 = vrcp.pop %v2446
        %v2461 = vrcp.pop %v2449
        %v2462 = vrcp.pop %v2452
        %v2463 = vrcp.pop %v2455
        %v2464 = vmul.f32 %v2417, %v2456
        %v2465 = vmul.f32 %v2419, %v2457
        %v2466 = vmul.f32 %v2421, %v2458
        %v2467 = vmul.f32 %v2423, %v2459
        %v2468 = vmul.f32 %v2425, %v2460
        %v2469 = vmul.f32 %v2427, %v2461
        %v2470 = vmul.f32 %v2429, %v2462
        %v2471 = vmul.f32 %v2431, %v2463
        %2472 = vrot.lane.b32.xlu0 %v1339, 48
        %v2473 = vpop.permute.xlu0 %2472
        %2474 = vrot.lane.b32.xlu0 %v1344, 48
        %v2475 = vpop.permute.xlu0 %2474
        %2476 = vrot.lane.b32.xlu0 %v1349, 48
        %v2477 = vpop.permute.xlu0 %2476
        %2478 = vrot.lane.b32.xlu0 %v1354, 48
        %v2479 = vpop.permute.xlu0 %2478
        %2480 = vrot.lane.b32.xlu0 %v1359, 48
        %v2481 = vpop.permute.xlu0 %2480
        %2482 = vrot.lane.b32.xlu0 %v1364, 48
        %v2483 = vpop.permute.xlu0 %2482
        %2484 = vrot.lane.b32.xlu0 %v1369, 48
        %v2485 = vpop.permute.xlu0 %2484
        %2486 = vrot.lane.b32.xlu0 %v1374, 48
        %v2487 = vpop.permute.xlu0 %2486
        %v2497 = vsel %vm1547, %v2464, 0
        %v2500 = vsel %vm1547, %v2465, 0
        %v2503 = vsel %vm1547, %v2466, 0
        %v2506 = vsel %vm1547, %v2467, 0
        %v2509 = vsel %vm1547, %v2468, 0
        %v2512 = vsel %vm1547, %v2469, 0
        %v2515 = vsel %vm1547, %v2470, 0
        %v2518 = vsel %vm1547, %v2471, 0
        %2520 = vmatprep.subr.mxu0 0.0
        %2521 = vmatpush1.msra.mxu0 %v2473
        %2522 = vmatprep.subr.mxu0 0.0
        %2523 = vmatpush1.msra.mxu0 %v2475
        %2524 = vmatprep.subr.mxu0 0.0
        %2525 = vmatpush1.msra.mxu0 %v2477
        %2526 = vmatprep.subr.mxu0 0.0
        %2527 = vmatpush1.msra.mxu0 %v2479
        %2528 = vmatprep.subr.mxu0 0.0
        %2529 = vmatpush1.msra.mxu0 %v2481
        %2530 = vmatprep.subr.mxu0 0.0
        %2531 = vmatpush1.msra.mxu0 %v2483
        %2532 = vmatprep.subr.mxu0 0.0
        %2533 = vmatpush1.msra.mxu0 %v2485
        %2534 = vmatprep.subr.mxu0 0.0
        %2535 = vmatpush1.msra.mxu0 %v2487
        %2536 = vmatprep.subr.mxu0 0.0
        %2537 = vmatpush1.msra.mxu0 0.0
        %2538 = vmatprep.subr.mxu0 0.0
        %2539 = vmatpush1.msra.mxu0 0.0
        %2540 = vmatprep.subr.mxu0 0.0
        %2541 = vmatpush1.msra.mxu0 0.0
        %2542 = vmatprep.subr.mxu0 0.0
        %2543 = vmatpush1.msra.mxu0 0.0
        %2544 = vmatprep.subr.mxu0 0.0
        %2545 = vmatpush1.msra.mxu0 0.0
        %2546 = vmatprep.subr.mxu0 0.0
        %2547 = vmatpush1.msra.mxu0 0.0
        %2548 = vmatprep.subr.mxu0 0.0
        %2549 = vmatpush1.msra.mxu0 0.0
        %2550 = vmatprep.subr.mxu0 0.0
        %2551 = vmatpush1.msra.mxu0 0.0
        %2552 = vmatprep.subr.mxu0 0.0
        %2553 = vmatpush1.msra.mxu0 0.0
        %2554 = vmatprep.subr.mxu0 0.0
        %2555 = vmatpush1.msra.mxu0 0.0
        %2556 = vmatprep.subr.mxu0 0.0
        %2557 = vmatpush1.msra.mxu0 0.0
        %2558 = vmatprep.subr.mxu0 0.0
        %2559 = vmatpush1.msra.mxu0 0.0
        %2560 = vmatprep.subr.mxu0 0.0
        %2561 = vmatpush1.msra.mxu0 0.0
        %2562 = vmatprep.subr.mxu0 0.0
        %2563 = vmatpush1.msra.mxu0 0.0
        %2564 = vmatprep.subr.mxu0 0.0
        %2565 = vmatpush1.msra.mxu0 0.0
        %2566 = vmatprep.subr.mxu0 0.0
        %2567 = vmatpush1.msra.mxu0 0.0
        %2568 = vmatprep.subr.mxu0 0.0
        %2569 = vmatpush1.msra.mxu0 0.0
        %2570 = vmatprep.subr.mxu0 0.0
        %2571 = vmatpush1.msra.mxu0 0.0
        %2572 = vmatprep.subr.mxu0 0.0
        %2573 = vmatpush1.msra.mxu0 0.0
        %2574 = vmatprep.subr.mxu0 0.0
        %2575 = vmatpush1.msra.mxu0 0.0
        %2576 = vmatprep.subr.mxu0 0.0
        %2577 = vmatpush1.msra.mxu0 0.0
        %2578 = vmatprep.subr.mxu0 0.0
        %2579 = vmatpush1.msra.mxu0 0.0
        %2580 = vmatprep.subr.mxu0 0.0
        %2581 = vmatpush1.msra.mxu0 0.0
        %2582 = vmatprep.subr.mxu0 0.0
        %2583 = vmatpush1.msra.mxu0 0.0
        %2584 = vmatprep.mubr.f32.mxu0 0.0
        %2585 = vmatmul.mubr.f32.gmra.mrb[0].mxu0 %v2497
        %v2586 = vpop.f32.mrb[0].mxu0
        %v2587 = vadd.f32 0.0, %v2586
        %v2588 = vpop.f32.mrb[0].mxu0
        %2589 = vmatprep.mubr.f32.mxu0 0.0
        %2590 = vmatmul.mubr.f32.gmra.mrb[0].mxu0 %v2500
        %v2591 = vpop.f32.mrb[0].mxu0
        %v2592 = vadd.f32 0.0, %v2591
        %v2593 = vpop.f32.mrb[0].mxu0
        %2594 = vmatprep.mubr.f32.mxu0 0.0
        %2595 = vmatmul.mubr.f32.gmra.mrb[0].mxu0 %v2503
        %v2596 = vpop.f32.mrb[0].mxu0
        %v2597 = vadd.f32 0.0, %v2596
        %v2598 = vpop.f32.mrb[0].mxu0
        %2599 = vmatprep.mubr.f32.mxu0 0.0
        %2600 = vmatmul.mubr.f32.gmra.mrb[0].mxu0 %v2506
        %v2601 = vpop.f32.mrb[0].mxu0
        %v2602 = vadd.f32 0.0, %v2601
        %v2603 = vpop.f32.mrb[0].mxu0
        %2604 = vmatprep.mubr.f32.mxu0 0.0
        %2605 = vmatmul.mubr.f32.gmra.mrb[0].mxu0 %v2509
        %v2606 = vpop.f32.mrb[0].mxu0
        %v2607 = vadd.f32 0.0, %v2606
        %v2608 = vpop.f32.mrb[0].mxu0
        %2609 = vmatprep.mubr.f32.mxu0 0.0
        %2610 = vmatmul.mubr.f32.gmra.mrb[0].mxu0 %v2512
        %v2611 = vpop.f32.mrb[0].mxu0
        %v2612 = vadd.f32 0.0, %v2611
        %v2613 = vpop.f32.mrb[0].mxu0
        %2614 = vmatprep.mubr.f32.mxu0 0.0
        %2615 = vmatmul.mubr.f32.gmra.mrb[0].mxu0 %v2515
        %v2616 = vpop.f32.mrb[0].mxu0
        %v2617 = vadd.f32 0.0, %v2616
        %v2618 = vpop.f32.mrb[0].mxu0
        %2619 = vmatprep.mubr.f32.mxu0 0.0
        %2620 = vmatmul.mubr.f32.gmra.mrb[0].mxu0 %v2518
        %v2621 = vpop.f32.mrb[0].mxu0
        %v2622 = vadd.f32 0.0, %v2621
        %v2623 = vpop.f32.mrb[0].mxu0
        %2624 = vdwg.mxu0
        %2625 = vrot.lane.b32.xlu0 %v1339, 104
        %v2626 = vpop.permute.xlu0 %2625
        %2627 = vrot.lane.b32.xlu0 %v1344, 104
        %v2628 = vpop.permute.xlu0 %2627
        %2629 = vrot.lane.b32.xlu0 %v1349, 104
        %v2630 = vpop.permute.xlu0 %2629
        %2631 = vrot.lane.b32.xlu0 %v1354, 104
        %v2632 = vpop.permute.xlu0 %2631
        %2633 = vrot.lane.b32.xlu0 %v1359, 104
        %v2634 = vpop.permute.xlu0 %2633
        %2635 = vrot.lane.b32.xlu0 %v1364, 104
        %v2636 = vpop.permute.xlu0 %2635
        %2637 = vrot.lane.b32.xlu0 %v1369, 104
        %v2638 = vpop.permute.xlu0 %2637
        %2639 = vrot.lane.b32.xlu0 %v1374, 104
        %v2640 = vpop.permute.xlu0 %2639
        %2641 = vrot.lane.b32.xlu0 %v1339, 72
        %v2642 = vpop.permute.xlu0 %2641
        %2643 = vrot.lane.b32.xlu0 %v1344, 72
        %v2644 = vpop.permute.xlu0 %2643
        %2645 = vrot.lane.b32.xlu0 %v1349, 72
        %v2646 = vpop.permute.xlu0 %2645
        %2647 = vrot.lane.b32.xlu0 %v1354, 72
        %v2648 = vpop.permute.xlu0 %2647
        %2649 = vrot.lane.b32.xlu0 %v1359, 72
        %v2650 = vpop.permute.xlu0 %2649
        %2651 = vrot.lane.b32.xlu0 %v1364, 72
        %v2652 = vpop.permute.xlu0 %2651
        %2653 = vrot.lane.b32.xlu0 %v1369, 72
        %v2654 = vpop.permute.xlu0 %2653
        %2655 = vrot.lane.b32.xlu0 %v1374, 72
        %v2656 = vpop.permute.xlu0 %2655
        %v2657 = vsel %vm1401, %v2626, 0
        %v2659 = vsel %vm1401, %v2628, 0
        %v2661 = vsel %vm1401, %v2630, 0
        %v2663 = vsel %vm1401, %v2632, 0
        %v2665 = vsel %vm1401, %v2634, 0
        %v2667 = vsel %vm1401, %v2636, 0
        %v2669 = vsel %vm1401, %v2638, 0
        %v2671 = vsel %vm1401, %v2640, 0
        %v2673 = vsel %vm1401, %v2642, 0
        %v2675 = vsel %vm1401, %v2644, 0
        %v2677 = vsel %vm1401, %v2646, 0
        %v2679 = vsel %vm1401, %v2648, 0
        %v2681 = vsel %vm1401, %v2650, 0
        %v2683 = vsel %vm1401, %v2652, 0
        %v2685 = vsel %vm1401, %v2654, 0
        %v2687 = vsel %vm1401, %v2656, 0
        %2689 = vmatprep.subr.mxu0 0.0
        %2690 = vmatpush1.xpose.msra.mxu0 %v2673
        %2691 = vmatprep.subr.mxu0 0.0
        %2692 = vmatpush1.xpose.msra.mxu0 %v2675
        %2693 = vmatprep.subr.mxu0 0.0
        %2694 = vmatpush1.xpose.msra.mxu0 %v2677
        %2695 = vmatprep.subr.mxu0 0.0
        %2696 = vmatpush1.xpose.msra.mxu0 %v2679
        %2697 = vmatprep.subr.mxu0 0.0
        %2698 = vmatpush1.xpose.msra.mxu0 %v2681
        %2699 = vmatprep.subr.mxu0 0.0
        %2700 = vmatpush1.xpose.msra.mxu0 %v2683
        %2701 = vmatprep.subr.mxu0 0.0
        %2702 = vmatpush1.xpose.msra.mxu0 %v2685
        %2703 = vmatprep.subr.mxu0 0.0
        %2704 = vmatpush1.xpose.msra.mxu0 %v2687
        %2705 = vmatprep.subr.mxu0 0.0
        %2706 = vmatpush1.xpose.msra.mxu0 0.0
        %2707 = vmatprep.subr.mxu0 0.0
        %2708 = vmatpush1.xpose.msra.mxu0 0.0
        %2709 = vmatprep.subr.mxu0 0.0
        %2710 = vmatpush1.xpose.msra.mxu0 0.0
        %2711 = vmatprep.subr.mxu0 0.0
        %2712 = vmatpush1.xpose.msra.mxu0 0.0
        %2713 = vmatprep.subr.mxu0 0.0
        %2714 = vmatpush1.xpose.msra.mxu0 0.0
        %2715 = vmatprep.subr.mxu0 0.0
        %2716 = vmatpush1.xpose.msra.mxu0 0.0
        %2717 = vmatprep.subr.mxu0 0.0
        %2718 = vmatpush1.xpose.msra.mxu0 0.0
        %2719 = vmatprep.subr.mxu0 0.0
        %2720 = vmatpush1.xpose.msra.mxu0 0.0
        %2721 = vmatprep.subr.mxu0 0.0
        %2722 = vmatpush1.xpose.msra.mxu0 0.0
        %2723 = vmatprep.subr.mxu0 0.0
        %2724 = vmatpush1.xpose.msra.mxu0 0.0
        %2725 = vmatprep.subr.mxu0 0.0
        %2726 = vmatpush1.xpose.msra.mxu0 0.0
        %2727 = vmatprep.subr.mxu0 0.0
        %2728 = vmatpush1.xpose.msra.mxu0 0.0
        %2729 = vmatprep.subr.mxu0 0.0
        %2730 = vmatpush1.xpose.msra.mxu0 0.0
        %2731 = vmatprep.subr.mxu0 0.0
        %2732 = vmatpush1.xpose.msra.mxu0 0.0
        %2733 = vmatprep.subr.mxu0 0.0
        %2734 = vmatpush1.xpose.msra.mxu0 0.0
        %2735 = vmatprep.subr.mxu0 0.0
        %2736 = vmatpush1.xpose.msra.mxu0 0.0
        %2737 = vmatprep.subr.mxu0 0.0
        %2738 = vmatpush1.xpose.msra.mxu0 0.0
        %2739 = vmatprep.subr.mxu0 0.0
        %2740 = vmatpush1.xpose.msra.mxu0 0.0
        %2741 = vmatprep.subr.mxu0 0.0
        %2742 = vmatpush1.xpose.msra.mxu0 0.0
        %2743 = vmatprep.subr.mxu0 0.0
        %2744 = vmatpush1.xpose.msra.mxu0 0.0
        %2745 = vmatprep.subr.mxu0 0.0
        %2746 = vmatpush1.xpose.msra.mxu0 0.0
        %2747 = vmatprep.subr.mxu0 0.0
        %2748 = vmatpush1.xpose.msra.mxu0 0.0
        %2749 = vmatprep.subr.mxu0 0.0
        %2750 = vmatpush1.xpose.msra.mxu0 0.0
        %2751 = vmatprep.subr.mxu0 0.0
        %2752 = vmatpush1.xpose.msra.mxu0 0.0
        %2753 = vmatprep.mubr.f32.mxu0 0.0
        %2754 = vmatmul.mubr.f32.gmra.mrb[0].mxu0 %v2657
        %v2755 = vpop.f32.mrb[0].mxu0
        %v2756 = vadd.f32 0.0, %v2755
        %v2757 = vpop.f32.mrb[0].mxu0
        %2758 = vmatprep.mubr.f32.mxu0 0.0
        %2759 = vmatmul.mubr.f32.gmra.mrb[0].mxu0 %v2659
        %v2760 = vpop.f32.mrb[0].mxu0
        %v2761 = vadd.f32 0.0, %v2760
        %v2762 = vpop.f32.mrb[0].mxu0
        %2763 = vmatprep.mubr.f32.mxu0 0.0
        %2764 = vmatmul.mubr.f32.gmra.mrb[0].mxu0 %v2661
        %v2765 = vpop.f32.mrb[0].mxu0
        %v2766 = vadd.f32 0.0, %v2765
        %v2767 = vpop.f32.mrb[0].mxu0
        %2768 = vmatprep.mubr.f32.mxu0 0.0
        %2769 = vmatmul.mubr.f32.gmra.mrb[0].mxu0 %v2663
        %v2770 = vpop.f32.mrb[0].mxu0
        %v2771 = vadd.f32 0.0, %v2770
        %v2772 = vpop.f32.mrb[0].mxu0
        %2773 = vmatprep.mubr.f32.mxu0 0.0
        %2774 = vmatmul.mubr.f32.gmra.mrb[0].mxu0 %v2665
        %v2775 = vpop.f32.mrb[0].mxu0
        %v2776 = vadd.f32 0.0, %v2775
        %v2777 = vpop.f32.mrb[0].mxu0
        %2778 = vmatprep.mubr.f32.mxu0 0.0
        %2779 = vmatmul.mubr.f32.gmra.mrb[0].mxu0 %v2667
        %v2780 = vpop.f32.mrb[0].mxu0
        %v2781 = vadd.f32 0.0, %v2780
        %v2782 = vpop.f32.mrb[0].mxu0
        %2783 = vmatprep.mubr.f32.mxu0 0.0
        %2784 = vmatmul.mubr.f32.gmra.mrb[0].mxu0 %v2669
        %v2785 = vpop.f32.mrb[0].mxu0
        %v2786 = vadd.f32 0.0, %v2785
        %v2787 = vpop.f32.mrb[0].mxu0
        %2788 = vmatprep.mubr.f32.mxu0 0.0
        %2789 = vmatmul.mubr.f32.gmra.mrb[0].mxu0 %v2671
        %v2790 = vpop.f32.mrb[0].mxu0
        %v2791 = vadd.f32 0.0, %v2790
        %v2792 = vpop.f32.mrb[0].mxu0
        %2793 = vdwg.mxu0
        %v2794 = vmul.f32 %v2756, 0.35355338
        %v2795 = vmul.f32 %v2761, 0.35355338
        %v2796 = vmul.f32 %v2766, 0.35355338
        %v2797 = vmul.f32 %v2771, 0.35355338
        %v2798 = vmul.f32 %v2776, 0.35355338
        %v2799 = vmul.f32 %v2781, 0.35355338
        %v2800 = vmul.f32 %v2786, 0.35355338
        %v2801 = vmul.f32 %v2791, 0.35355338
        %v2802 = vsel %vm1547, %v2794, -inf
        %2803 = vmax.xlane.f32.xlu0 %v2802
        %v2804 = vpop.xlane.xlu0 %2803
        %v2805 = vsel %vm1547, %v2795, -inf
        %2806 = vmax.xlane.f32.xlu0 %v2805
        %v2807 = vpop.xlane.xlu0 %2806
        %v2808 = vsel %vm1547, %v2796, -inf
        %2809 = vmax.xlane.f32.xlu0 %v2808
        %v2810 = vpop.xlane.xlu0 %2809
        %v2811 = vsel %vm1547, %v2797, -inf
        %2812 = vmax.xlane.f32.xlu0 %v2811
        %v2813 = vpop.xlane.xlu0 %2812
        %v2814 = vsel %vm1547, %v2798, -inf
        %2815 = vmax.xlane.f32.xlu0 %v2814
        %v2816 = vpop.xlane.xlu0 %2815
        %v2817 = vsel %vm1547, %v2799, -inf
        %2818 = vmax.xlane.f32.xlu0 %v2817
        %v2819 = vpop.xlane.xlu0 %2818
        %v2820 = vsel %vm1547, %v2800, -inf
        %2821 = vmax.xlane.f32.xlu0 %v2820
        %v2822 = vpop.xlane.xlu0 %2821
        %v2823 = vsel %vm1547, %v2801, -inf
        %2824 = vmax.xlane.f32.xlu0 %v2823
        %v2825 = vpop.xlane.xlu0 %2824
        %v2826 = vsub.f32 %v2794, %v2804
        %v2827 = vsub.f32 %v2795, %v2807
        %v2828 = vsub.f32 %v2796, %v2810
        %v2829 = vsub.f32 %v2797, %v2813
        %v2830 = vsub.f32 %v2798, %v2816
        %v2831 = vsub.f32 %v2799, %v2819
        %v2832 = vsub.f32 %v2800, %v2822
        %v2833 = vsub.f32 %v2801, %v2825
        %v2834 = vmul.f32 %v2826, 1.442695
        %v2835 = vpow.pop %v2834
        %v2836 = vmul.f32 %v2827, 1.442695
        %v2837 = vpow.pop %v2836
        %v2838 = vmul.f32 %v2828, 1.442695
        %v2839 = vpow.pop %v2838
        %v2840 = vmul.f32 %v2829, 1.442695
        %v2841 = vpow.pop %v2840
        %v2842 = vmul.f32 %v2830, 1.442695
        %v2843 = vpow.pop %v2842
        %v2844 = vmul.f32 %v2831, 1.442695
        %v2845 = vpow.pop %v2844
        %v2846 = vmul.f32 %v2832, 1.442695
        %v2847 = vpow.pop %v2846
        %v2848 = vmul.f32 %v2833, 1.442695
        %v2849 = vpow.pop %v2848
        %v2850 = vsel %vm1547, %v2835, 0.0
        %2851 = vadd.xlane.f32.xlu0 %v2850
        %v2852 = vpop.xlane.xlu0 %2851
        %v2853 = vsel %vm1547, %v2837, 0.0
        %2854 = vadd.xlane.f32.xlu0 %v2853
        %v2855 = vpop.xlane.xlu0 %2854
        %v2856 = vsel %vm1547, %v2839, 0.0
        %2857 = vadd.xlane.f32.xlu0 %v2856
        %v2858 = vpop.xlane.xlu0 %2857
        %v2859 = vsel %vm1547, %v2841, 0.0
        %2860 = vadd.xlane.f32.xlu0 %v2859
        %v2861 = vpop.xlane.xlu0 %2860
        %v2862 = vsel %vm1547, %v2843, 0.0
        %2863 = vadd.xlane.f32.xlu0 %v2862
        %v2864 = vpop.xlane.xlu0 %2863
        %v2865 = vsel %vm1547, %v2845, 0.0
        %2866 = vadd.xlane.f32.xlu0 %v2865
        %v2867 = vpop.xlane.xlu0 %2866
        %v2868 = vsel %vm1547, %v2847, 0.0
        %2869 = vadd.xlane.f32.xlu0 %v2868
        %v2870 = vpop.xlane.xlu0 %2869
        %v2871 = vsel %vm1547, %v2849, 0.0
        %2872 = vadd.xlane.f32.xlu0 %v2871
        %v2873 = vpop.xlane.xlu0 %2872
        %v2874 = vrcp.pop %v2852
        %v2875 = vrcp.pop %v2855
        %v2876 = vrcp.pop %v2858
        %v2877 = vrcp.pop %v2861
        %v2878 = vrcp.pop %v2864
        %v2879 = vrcp.pop %v2867
        %v2880 = vrcp.pop %v2870
        %v2881 = vrcp.pop %v2873
        %v2882 = vmul.f32 %v2835, %v2874
        %v2883 = vmul.f32 %v2837, %v2875
        %v2884 = vmul.f32 %v2839, %v2876
        %v2885 = vmul.f32 %v2841, %v2877
        %v2886 = vmul.f32 %v2843, %v2878
        %v2887 = vmul.f32 %v2845, %v2879
        %v2888 = vmul.f32 %v2847, %v2880
        %v2889 = vmul.f32 %v2849, %v2881
        %2890 = vrot.lane.b32.xlu0 %v1339, 40
        %v2891 = vpop.permute.xlu0 %2890
        %2892 = vrot.lane.b32.xlu0 %v1344, 40
        %v2893 = vpop.permute.xlu0 %2892
        %2894 = vrot.lane.b32.xlu0 %v1349, 40
        %v2895 = vpop.permute.xlu0 %2894
        %2896 = vrot.lane.b32.xlu0 %v1354, 40
        %v2897 = vpop.permute.xlu0 %2896
        %2898 = vrot.lane.b32.xlu0 %v1359, 40
        %v2899 = vpop.permute.xlu0 %2898
        %2900 = vrot.lane.b32.xlu0 %v1364, 40
        %v2901 = vpop.permute.xlu0 %2900
        %2902 = vrot.lane.b32.xlu0 %v1369, 40
        %v2903 = vpop.permute.xlu0 %2902
        %2904 = vrot.lane.b32.xlu0 %v1374, 40
        %v2905 = vpop.permute.xlu0 %2904
        %v2915 = vsel %vm1547, %v2882, 0
        %v2918 = vsel %vm1547, %v2883, 0
        %v2921 = vsel %vm1547, %v2884, 0
        %v2924 = vsel %vm1547, %v2885, 0
        %v2927 = vsel %vm1547, %v2886, 0
        %v2930 = vsel %vm1547, %v2887, 0
        %v2933 = vsel %vm1547, %v2888, 0
        %v2936 = vsel %vm1547, %v2889, 0
        %2938 = vmatprep.subr.mxu0 0.0
        %2939 = vmatpush1.msra.mxu0 %v2891
        %2940 = vmatprep.subr.mxu0 0.0
        %2941 = vmatpush1.msra.mxu0 %v2893
        %2942 = vmatprep.subr.mxu0 0.0
        %2943 = vmatpush1.msra.mxu0 %v2895
        %2944 = vmatprep.subr.mxu0 0.0
        %2945 = vmatpush1.msra.mxu0 %v2897
        %2946 = vmatprep.subr.mxu0 0.0
        %2947 = vmatpush1.msra.mxu0 %v2899
        %2948 = vmatprep.subr.mxu0 0.0
        %2949 = vmatpush1.msra.mxu0 %v2901
        %2950 = vmatprep.subr.mxu0 0.0
        %2951 = vmatpush1.msra.mxu0 %v2903
        %2952 = vmatprep.subr.mxu0 0.0
        %2953 = vmatpush1.msra.mxu0 %v2905
        %2954 = vmatprep.subr.mxu0 0.0
        %2955 = vmatpush1.msra.mxu0 0.0
        %2956 = vmatprep.subr.mxu0 0.0
        %2957 = vmatpush1.msra.mxu0 0.0
        %2958 = vmatprep.subr.mxu0 0.0
        %2959 = vmatpush1.msra.mxu0 0.0
        %2960 = vmatprep.subr.mxu0 0.0
        %2961 = vmatpush1.msra.mxu0 0.0
        %2962 = vmatprep.subr.mxu0 0.0
        %2963 = vmatpush1.msra.mxu0 0.0
        %2964 = vmatprep.subr.mxu0 0.0
        %2965 = vmatpush1.msra.mxu0 0.0
        %2966 = vmatprep.subr.mxu0 0.0
        %2967 = vmatpush1.msra.mxu0 0.0
        %2968 = vmatprep.subr.mxu0 0.0
        %2969 = vmatpush1.msra.mxu0 0.0
        %2970 = vmatprep.subr.mxu0 0.0
        %2971 = vmatpush1.msra.mxu0 0.0
        %2972 = vmatprep.subr.mxu0 0.0
        %2973 = vmatpush1.msra.mxu0 0.0
        %2974 = vmatprep.subr.mxu0 0.0
        %2975 = vmatpush1.msra.mxu0 0.0
        %2976 = vmatprep.subr.mxu0 0.0
        %2977 = vmatpush1.msra.mxu0 0.0
        %2978 = vmatprep.subr.mxu0 0.0
        %2979 = vmatpush1.msra.mxu0 0.0
        %2980 = vmatprep.subr.mxu0 0.0
        %2981 = vmatpush1.msra.mxu0 0.0
        %2982 = vmatprep.subr.mxu0 0.0
        %2983 = vmatpush1.msra.mxu0 0.0
        %2984 = vmatprep.subr.mxu0 0.0
        %2985 = vmatpush1.msra.mxu0 0.0
        %2986 = vmatprep.subr.mxu0 0.0
        %2987 = vmatpush1.msra.mxu0 0.0
        %2988 = vmatprep.subr.mxu0 0.0
        %2989 = vmatpush1.msra.mxu0 0.0
        %2990 = vmatprep.subr.mxu0 0.0
        %2991 = vmatpush1.msra.mxu0 0.0
        %2992 = vmatprep.subr.mxu0 0.0
        %2993 = vmatpush1.msra.mxu0 0.0
        %2994 = vmatprep.subr.mxu0 0.0
        %2995 = vmatpush1.msra.mxu0 0.0
        %2996 = vmatprep.subr.mxu0 0.0
        %2997 = vmatpush1.msra.mxu0 0.0
        %2998 = vmatprep.subr.mxu0 0.0
        %2999 = vmatpush1.msra.mxu0 0.0
        %3000 = vmatprep.subr.mxu0 0.0
        %3001 = vmatpush1.msra.mxu0 0.0
        %3002 = vmatprep.mubr.f32.mxu0 0.0
        %3003 = vmatmul.mubr.f32.gmra.mrb[0].mxu0 %v2915
        %v3004 = vpop.f32.mrb[0].mxu0
        %v3005 = vadd.f32 0.0, %v3004
        %v3006 = vpop.f32.mrb[0].mxu0
        %3007 = vmatprep.mubr.f32.mxu0 0.0
        %3008 = vmatmul.mubr.f32.gmra.mrb[0].mxu0 %v2918
        %v3009 = vpop.f32.mrb[0].mxu0
        %v3010 = vadd.f32 0.0, %v3009
        %v3011 = vpop.f32.mrb[0].mxu0
        %3012 = vmatprep.mubr.f32.mxu0 0.0
        %3013 = vmatmul.mubr.f32.gmra.mrb[0].mxu0 %v2921
        %v3014 = vpop.f32.mrb[0].mxu0
        %v3015 = vadd.f32 0.0, %v3014
        %v3016 = vpop.f32.mrb[0].mxu0
        %3017 = vmatprep.mubr.f32.mxu0 0.0
        %3018 = vmatmul.mubr.f32.gmra.mrb[0].mxu0 %v2924
        %v3019 = vpop.f32.mrb[0].mxu0
        %v3020 = vadd.f32 0.0, %v3019
        %v3021 = vpop.f32.mrb[0].mxu0
        %3022 = vmatprep.mubr.f32.mxu0 0.0
        %3023 = vmatmul.mubr.f32.gmra.mrb[0].mxu0 %v2927
        %v3024 = vpop.f32.mrb[0].mxu0
        %v3025 = vadd.f32 0.0, %v3024
        %v3026 = vpop.f32.mrb[0].mxu0
        %3027 = vmatprep.mubr.f32.mxu0 0.0
        %3028 = vmatmul.mubr.f32.gmra.mrb[0].mxu0 %v2930
        %v3029 = vpop.f32.mrb[0].mxu0
        %v3030 = vadd.f32 0.0, %v3029
        %v3031 = vpop.f32.mrb[0].mxu0
        %3032 = vmatprep.mubr.f32.mxu0 0.0
        %3033 = vmatmul.mubr.f32.gmra.mrb[0].mxu0 %v2933
        %v3034 = vpop.f32.mrb[0].mxu0
        %v3035 = vadd.f32 0.0, %v3034
        %v3036 = vpop.f32.mrb[0].mxu0
        %3037 = vmatprep.mubr.f32.mxu0 0.0
        %3038 = vmatmul.mubr.f32.gmra.mrb[0].mxu0 %v2936
        %v3039 = vpop.f32.mrb[0].mxu0
        %v3040 = vadd.f32 0.0, %v3039
        %v3041 = vpop.f32.mrb[0].mxu0
        %3042 = vdwg.mxu0
        %3051 = vrot.lane.b32.xlu0 %v2169, 8
        %v3052 = vpop.permute.xlu0 %3051
        %3053 = vrot.lane.b32.xlu0 %v2174, 8
        %v3054 = vpop.permute.xlu0 %3053
        %3055 = vrot.lane.b32.xlu0 %v2179, 8
        %v3056 = vpop.permute.xlu0 %3055
        %3057 = vrot.lane.b32.xlu0 %v2184, 8
        %v3058 = vpop.permute.xlu0 %3057
        %3059 = vrot.lane.b32.xlu0 %v2189, 8
        %v3060 = vpop.permute.xlu0 %3059
        %3061 = vrot.lane.b32.xlu0 %v2194, 8
        %v3062 = vpop.permute.xlu0 %3061
        %3063 = vrot.lane.b32.xlu0 %v2199, 8
        %v3064 = vpop.permute.xlu0 %3063
        %3065 = vrot.lane.b32.xlu0 %v2204, 8
        %v3066 = vpop.permute.xlu0 %3065
        %3083 = vrot.lane.b32.xlu0 %v2587, 16
        %v3084 = vpop.permute.xlu0 %3083
        %3085 = vrot.lane.b32.xlu0 %v2592, 16
        %v3086 = vpop.permute.xlu0 %3085
        %3087 = vrot.lane.b32.xlu0 %v2597, 16
        %v3088 = vpop.permute.xlu0 %3087
        %3089 = vrot.lane.b32.xlu0 %v2602, 16
        %v3090 = vpop.permute.xlu0 %3089
        %3091 = vrot.lane.b32.xlu0 %v2607, 16
        %v3092 = vpop.permute.xlu0 %3091
        %3093 = vrot.lane.b32.xlu0 %v2612, 16
        %v3094 = vpop.permute.xlu0 %3093
        %3095 = vrot.lane.b32.xlu0 %v2617, 16
        %v3096 = vpop.permute.xlu0 %3095
        %3097 = vrot.lane.b32.xlu0 %v2622, 16
        %v3098 = vpop.permute.xlu0 %3097
        %3115 = vrot.lane.b32.xlu0 %v3005, 24
        %v3116 = vpop.permute.xlu0 %3115
        %3117 = vrot.lane.b32.xlu0 %v3010, 24
        %v3118 = vpop.permute.xlu0 %3117
        %3119 = vrot.lane.b32.xlu0 %v3015, 24
        %v3120 = vpop.permute.xlu0 %3119
        %3121 = vrot.lane.b32.xlu0 %v3020, 24
        %v3122 = vpop.permute.xlu0 %3121
        %3123 = vrot.lane.b32.xlu0 %v3025, 24
        %v3124 = vpop.permute.xlu0 %3123
        %3125 = vrot.lane.b32.xlu0 %v3030, 24
        %v3126 = vpop.permute.xlu0 %3125
        %3127 = vrot.lane.b32.xlu0 %v3035, 24
        %v3128 = vpop.permute.xlu0 %3127
        %3129 = vrot.lane.b32.xlu0 %v3040, 24
        %v3130 = vpop.permute.xlu0 %3129
        %v3139 = vsel %vm1401, %v1751, %v3052
        %v3140 = vsel %vm1401, %v1756, %v3054
        %v3141 = vsel %vm1401, %v1761, %v3056
        %v3142 = vsel %vm1401, %v1766, %v3058
        %v3143 = vsel %vm1401, %v1771, %v3060
        %v3144 = vsel %vm1401, %v1776, %v3062
        %v3145 = vsel %vm1401, %v1781, %v3064
        %v3146 = vsel %vm1401, %v1786, %v3066
        %vm3147 = vcmask 130048
        %v3148 = vsel %vm3147, %v3139, %v3084
        %v3149 = vsel %vm3147, %v3140, %v3086
        %v3150 = vsel %vm3147, %v3141, %v3088
        %v3151 = vsel %vm3147, %v3142, %v3090
        %v3152 = vsel %vm3147, %v3143, %v3092
        %v3153 = vsel %vm3147, %v3144, %v3094
        %v3154 = vsel %vm3147, %v3145, %v3096
        %v3155 = vsel %vm3147, %v3146, %v3098
        %vm3156 = vcmask 195584
        %v3157 = vsel %vm3156, %v3148, %v3116
        %v3158 = vsel %vm3156, %v3149, %v3118
        %v3159 = vsel %vm3156, %v3150, %v3120
        %v3160 = vsel %vm3156, %v3151, %v3122
        %v3161 = vsel %vm3156, %v3152, %v3124
        %v3162 = vsel %vm3156, %v3153, %v3126
        %v3163 = vsel %vm3156, %v3154, %v3128
        %v3164 = vsel %vm3156, %v3155, %v3130
        %v3165 = vld [vmem:[%s890] sm:$0x1]
        %v3167 = vlaneseq
        %v3168 = vshrl.u32 %v3167, 7
        %v3169 = vsub.s32 0, %v3168
        %v3170 = vrot.slane %v3165, %v3169
        %v3172 = vadd.f32 %v1093, %v3170
        %v3173 = vadd.f32 %v1094, %v3170
        %v3174 = vadd.f32 %v1095, %v3170
        %v3175 = vadd.f32 %v1096, %v3170
        %v3176 = vadd.f32 %v1097, %v3170
        %v3177 = vadd.f32 %v1098, %v3170
        %v3178 = vadd.f32 %v1099, %v3170
        %v3179 = vadd.f32 %v1100, %v3170
        %v3180 = vld [vmem:[%s887] sm:$0xff]
        %v3181 = vld [vmem:[%s887 + $0x8] sm:$0xff]
        %v3182 = vld [vmem:[%s887 + $0x10] sm:$0xff]
        %v3183 = vld [vmem:[%s887 + $0x18] sm:$0xff]
        %v3185 = vsel %vm1103, %v3157, 0
        %v3188 = vsel %vm1103, %v3158, 0
        %v3191 = vsel %vm1103, %v3159, 0
        %v3194 = vsel %vm1103, %v3160, 0
        %v3197 = vsel %vm1103, %v3161, 0
        %v3200 = vsel %vm1103, %v3162, 0
        %v3203 = vsel %vm1103, %v3163, 0
        %v3206 = vsel %vm1103, %v3164, 0
        %3208 = vmatprep.subr.mxu0 0.0
        %3209 = vmatpush1.msra.mxu0 %v3180
        %3210 = vmatprep.subr.mxu0 0.0
        %3211 = vmatpush1.msra.mxu0 %v3181
        %3212 = vmatprep.subr.mxu0 0.0
        %3213 = vmatpush1.msra.mxu0 %v3182
        %3214 = vmatprep.subr.mxu0 0.0
        %3215 = vmatpush1.msra.mxu0 %v3183
        %3216 = vmatprep.subr.mxu0 0.0
        %3217 = vmatpush1.msra.mxu0 0.0
        %3218 = vmatprep.subr.mxu0 0.0
        %3219 = vmatpush1.msra.mxu0 0.0
        %3220 = vmatprep.subr.mxu0 0.0
        %3221 = vmatpush1.msra.mxu0 0.0
        %3222 = vmatprep.subr.mxu0 0.0
        %3223 = vmatpush1.msra.mxu0 0.0
        %3224 = vmatprep.subr.mxu0 0.0
        %3225 = vmatpush1.msra.mxu0 0.0
        %3226 = vmatprep.subr.mxu0 0.0
        %3227 = vmatpush1.msra.mxu0 0.0
        %3228 = vmatprep.subr.mxu0 0.0
        %3229 = vmatpush1.msra.mxu0 0.0
        %3230 = vmatprep.subr.mxu0 0.0
        %3231 = vmatpush1.msra.mxu0 0.0
        %3232 = vmatprep.subr.mxu0 0.0
        %3233 = vmatpush1.msra.mxu0 0.0
        %3234 = vmatprep.subr.mxu0 0.0
        %3235 = vmatpush1.msra.mxu0 0.0
        %3236 = vmatprep.subr.mxu0 0.0
        %3237 = vmatpush1.msra.mxu0 0.0
        %3238 = vmatprep.subr.mxu0 0.0
        %3239 = vmatpush1.msra.mxu0 0.0
        %3240 = vmatprep.subr.mxu0 0.0
        %3241 = vmatpush1.msra.mxu0 0.0
        %3242 = vmatprep.subr.mxu0 0.0
        %3243 = vmatpush1.msra.mxu0 0.0
        %3244 = vmatprep.subr.mxu0 0.0
        %3245 = vmatpush1.msra.mxu0 0.0
        %3246 = vmatprep.subr.mxu0 0.0
        %3247 = vmatpush1.msra.mxu0 0.0
        %3248 = vmatprep.subr.mxu0 0.0
        %3249 = vmatpush1.msra.mxu0 0.0
        %3250 = vmatprep.subr.mxu0 0.0
        %3251 = vmatpush1.msra.mxu0 0.0
        %3252 = vmatprep.subr.mxu0 0.0
        %3253 = vmatpush1.msra.mxu0 0.0
        %3254 = vmatprep.subr.mxu0 0.0
        %3255 = vmatpush1.msra.mxu0 0.0
        %3256 = vmatprep.subr.mxu0 0.0
        %3257 = vmatpush1.msra.mxu0 0.0
        %3258 = vmatprep.subr.mxu0 0.0
        %3259 = vmatpush1.msra.mxu0 0.0
        %3260 = vmatprep.subr.mxu0 0.0
        %3261 = vmatpush1.msra.mxu0 0.0
        %3262 = vmatprep.subr.mxu0 0.0
        %3263 = vmatpush1.msra.mxu0 0.0
        %3264 = vmatprep.subr.mxu0 0.0
        %3265 = vmatpush1.msra.mxu0 0.0
        %3266 = vmatprep.subr.mxu0 0.0
        %3267 = vmatpush1.msra.mxu0 0.0
        %3268 = vmatprep.subr.mxu0 0.0
        %3269 = vmatpush1.msra.mxu0 0.0
        %3270 = vmatprep.subr.mxu0 0.0
        %3271 = vmatpush1.msra.mxu0 0.0
        %3272 = vmatprep.mubr.f32.mxu0 0.0
        %3273 = vmatmul.mubr.f32.gmra.mrb[0].mxu0 %v3185
        %v3274 = vpop.f32.mrb[0].mxu0
        %v3275 = vadd.f32 0.0, %v3274
        %v3276 = vpop.f32.mrb[0].mxu0
        %3277 = vmatprep.mubr.f32.mxu0 0.0
        %3278 = vmatmul.mubr.f32.gmra.mrb[0].mxu0 %v3188
        %v3279 = vpop.f32.mrb[0].mxu0
        %v3280 = vadd.f32 0.0, %v3279
        %v3281 = vpop.f32.mrb[0].mxu0
        %3282 = vmatprep.mubr.f32.mxu0 0.0
        %3283 = vmatmul.mubr.f32.gmra.mrb[0].mxu0 %v3191
        %v3284 = vpop.f32.mrb[0].mxu0
        %v3285 = vadd.f32 0.0, %v3284
        %v3286 = vpop.f32.mrb[0].mxu0
        %3287 = vmatprep.mubr.f32.mxu0 0.0
        %3288 = vmatmul.mubr.f32.gmra.mrb[0].mxu0 %v3194
        %v3289 = vpop.f32.mrb[0].mxu0
        %v3290 = vadd.f32 0.0, %v3289
        %v3291 = vpop.f32.mrb[0].mxu0
        %3292 = vmatprep.mubr.f32.mxu0 0.0
        %3293 = vmatmul.mubr.f32.gmra.mrb[0].mxu0 %v3197
        %v3294 = vpop.f32.mrb[0].mxu0
        %v3295 = vadd.f32 0.0, %v3294
        %v3296 = vpop.f32.mrb[0].mxu0
        %3297 = vmatprep.mubr.f32.mxu0 0.0
        %3298 = vmatmul.mubr.f32.gmra.mrb[0].mxu0 %v3200
        %v3299 = vpop.f32.mrb[0].mxu0
        %v3300 = vadd.f32 0.0, %v3299
        %v3301 = vpop.f32.mrb[0].mxu0
        %3302 = vmatprep.mubr.f32.mxu0 0.0
        %3303 = vmatmul.mubr.f32.gmra.mrb[0].mxu0 %v3203
        %v3304 = vpop.f32.mrb[0].mxu0
        %v3305 = vadd.f32 0.0, %v3304
        %v3306 = vpop.f32.mrb[0].mxu0
        %3307 = vmatprep.mubr.f32.mxu0 0.0
        %3308 = vmatmul.mubr.f32.gmra.mrb[0].mxu0 %v3206
        %v3309 = vpop.f32.mrb[0].mxu0
        %v3310 = vadd.f32 0.0, %v3309
        %v3311 = vpop.f32.mrb[0].mxu0
        %3312 = vdwg.mxu0
        %v3313 = vadd.f32 %v3172, %v3275
        %v3314 = vadd.f32 %v3173, %v3280
        %v3315 = vadd.f32 %v3174, %v3285
        %v3316 = vadd.f32 %v3175, %v3290
        %v3317 = vadd.f32 %v3176, %v3295
        %v3318 = vadd.f32 %v3177, %v3300
        %v3319 = vadd.f32 %v3178, %v3305
        %v3320 = vadd.f32 %v3179, %v3310
        %v3321 = vld [vmem:[%s893] sm:$0x1]
        %v3322 = vld [vmem:[%s896] sm:$0x1]
        %v3323 = vsel %vm1103, %v3313, 0.0
        %3324 = vadd.xlane.f32.xlu0 %v3323
        %v3325 = vpop.xlane.xlu0 %3324
        %v3326 = vsel %vm1103, %v3314, 0.0
        %3327 = vadd.xlane.f32.xlu0 %v3326
        %v3328 = vpop.xlane.xlu0 %3327
        %v3329 = vsel %vm1103, %v3315, 0.0
        %3330 = vadd.xlane.f32.xlu0 %v3329
        %v3331 = vpop.xlane.xlu0 %3330
        %v3332 = vsel %vm1103, %v3316, 0.0
        %3333 = vadd.xlane.f32.xlu0 %v3332
        %v3334 = vpop.xlane.xlu0 %3333
        %v3335 = vsel %vm1103, %v3317, 0.0
        %3336 = vadd.xlane.f32.xlu0 %v3335
        %v3337 = vpop.xlane.xlu0 %3336
        %v3338 = vsel %vm1103, %v3318, 0.0
        %3339 = vadd.xlane.f32.xlu0 %v3338
        %v3340 = vpop.xlane.xlu0 %3339
        %v3341 = vsel %vm1103, %v3319, 0.0
        %3342 = vadd.xlane.f32.xlu0 %v3341
        %v3343 = vpop.xlane.xlu0 %3342
        %v3344 = vsel %vm1103, %v3320, 0.0
        %3345 = vadd.xlane.f32.xlu0 %v3344
        %v3346 = vpop.xlane.xlu0 %3345
        %v3347 = vmul.f32 %v3325, %v1128
        %v3348 = vmul.f32 %v3328, %v1128
        %v3349 = vmul.f32 %v3331, %v1128
        %v3350 = vmul.f32 %v3334, %v1128
        %v3351 = vmul.f32 %v3337, %v1128
        %v3352 = vmul.f32 %v3340, %v1128
        %v3353 = vmul.f32 %v3343, %v1128
        %v3354 = vmul.f32 %v3346, %v1128
        %v3355 = vsub.f32 %v3313, %v3347
        %v3356 = vsub.f32 %v3314, %v3348
        %v3357 = vsub.f32 %v3315, %v3349
        %v3358 = vsub.f32 %v3316, %v3350
        %v3359 = vsub.f32 %v3317, %v3351
        %v3360 = vsub.f32 %v3318, %v3352
        %v3361 = vsub.f32 %v3319, %v3353
        %v3362 = vsub.f32 %v3320, %v3354
        %v3363 = vmul.f32 %v3355, %v3355
        %v3364 = vmul.f32 %v3356, %v3356
        %v3365 = vmul.f32 %v3357, %v3357
        %v3366 = vmul.f32 %v3358, %v3358
        %v3367 = vmul.f32 %v3359, %v3359
        %v3368 = vmul.f32 %v3360, %v3360
        %v3369 = vmul.f32 %v3361, %v3361
        %v3370 = vmul.f32 %v3362, %v3362
        %v3371 = vsel %vm1103, %v3363, 0.0
        %3372 = vadd.xlane.f32.xlu0 %v3371
        %v3373 = vpop.xlane.xlu0 %3372
        %v3374 = vsel %vm1103, %v3364, 0.0
        %3375 = vadd.xlane.f32.xlu0 %v3374
        %v3376 = vpop.xlane.xlu0 %3375
        %v3377 = vsel %vm1103, %v3365, 0.0
        %3378 = vadd.xlane.f32.xlu0 %v3377
        %v3379 = vpop.xlane.xlu0 %3378
        %v3380 = vsel %vm1103, %v3366, 0.0
        %3381 = vadd.xlane.f32.xlu0 %v3380
        %v3382 = vpop.xlane.xlu0 %3381
        %v3383 = vsel %vm1103, %v3367, 0.0
        %3384 = vadd.xlane.f32.xlu0 %v3383
        %v3385 = vpop.xlane.xlu0 %3384
        %v3386 = vsel %vm1103, %v3368, 0.0
        %3387 = vadd.xlane.f32.xlu0 %v3386
        %v3388 = vpop.xlane.xlu0 %3387
        %v3389 = vsel %vm1103, %v3369, 0.0
        %3390 = vadd.xlane.f32.xlu0 %v3389
        %v3391 = vpop.xlane.xlu0 %3390
        %v3392 = vsel %vm1103, %v3370, 0.0
        %3393 = vadd.xlane.f32.xlu0 %v3392
        %v3394 = vpop.xlane.xlu0 %3393
        %v3395 = vmul.f32 %v3373, %v1128
        %v3396 = vmul.f32 %v3376, %v1128
        %v3397 = vmul.f32 %v3379, %v1128
        %v3398 = vmul.f32 %v3382, %v1128
        %v3399 = vmul.f32 %v3385, %v1128
        %v3400 = vmul.f32 %v3388, %v1128
        %v3401 = vmul.f32 %v3391, %v1128
        %v3402 = vmul.f32 %v3394, %v1128
        %v3403 = vadd.f32 %v3395, 1e-06
        %v3404 = vadd.f32 %v3396, 1e-06
        %v3405 = vadd.f32 %v3397, 1e-06
        %v3406 = vadd.f32 %v3398, 1e-06
        %v3407 = vadd.f32 %v3399, 1e-06
        %v3408 = vadd.f32 %v3400, 1e-06
        %v3409 = vadd.f32 %v3401, 1e-06
        %v3410 = vadd.f32 %v3402, 1e-06
        %v3411 = vrsqrt.pop %v3403
        %v3412 = vrsqrt.pop %v3404
        %v3413 = vrsqrt.pop %v3405
        %v3414 = vrsqrt.pop %v3406
        %v3415 = vrsqrt.pop %v3407
        %v3416 = vrsqrt.pop %v3408
        %v3417 = vrsqrt.pop %v3409
        %v3418 = vrsqrt.pop %v3410
        %v3419 = vmul.f32 %v3355, %v3411
        %v3420 = vmul.f32 %v3356, %v3412
        %v3421 = vmul.f32 %v3357, %v3413
        %v3422 = vmul.f32 %v3358, %v3414
        %v3423 = vmul.f32 %v3359, %v3415
        %v3424 = vmul.f32 %v3360, %v3416
        %v3425 = vmul.f32 %v3361, %v3417
        %v3426 = vmul.f32 %v3362, %v3418
        %v3428 = vlaneseq
        %v3429 = vshrl.u32 %v3428, 7
        %v3430 = vsub.s32 0, %v3429
        %v3431 = vrot.slane %v3321, %v3430
        %v3433 = vmul.f32 %v3419, %v3431
        %v3434 = vmul.f32 %v3420, %v3431
        %v3435 = vmul.f32 %v3421, %v3431
        %v3436 = vmul.f32 %v3422, %v3431
        %v3437 = vmul.f32 %v3423, %v3431
        %v3438 = vmul.f32 %v3424, %v3431
        %v3439 = vmul.f32 %v3425, %v3431
        %v3440 = vmul.f32 %v3426, %v3431
        %v3442 = vlaneseq
        %v3443 = vshrl.u32 %v3442, 7
        %v3444 = vsub.s32 0, %v3443
        %v3445 = vrot.slane %v3322, %v3444
        %v3447 = vadd.f32 %v3433, %v3445
        %v3448 = vadd.f32 %v3434, %v3445
        %v3449 = vadd.f32 %v3435, %v3445
        %v3450 = vadd.f32 %v3436, %v3445
        %v3451 = vadd.f32 %v3437, %v3445
        %v3452 = vadd.f32 %v3438, %v3445
        %v3453 = vadd.f32 %v3439, %v3445
        %v3454 = vadd.f32 %v3440, %v3445
        %v3455 = vld [vmem:[%s901] sm:$0xff]
        %v3456 = vld [vmem:[%s901 + $0x8] sm:$0xff]
        %v3457 = vld [vmem:[%s901 + $0x10] sm:$0xff]
        %v3458 = vld [vmem:[%s901 + $0x18] sm:$0xff]
        %v3459 = vld [vmem:[%s904] sm:$0x1]
        %v3461 = vlaneseq
        %v3462 = vshrl.u32 %v3461, 7
        %v3463 = vsub.s32 0, %v3462
        %v3464 = vrot.slane %v3459, %v3463
        %v3467 = vsel %vm1103, %v3447, 0
        %v3470 = vsel %vm1103, %v3448, 0
        %v3473 = vsel %vm1103, %v3449, 0
        %v3476 = vsel %vm1103, %v3450, 0
        %v3479 = vsel %vm1103, %v3451, 0
        %v3482 = vsel %vm1103, %v3452, 0
        %v3485 = vsel %vm1103, %v3453, 0
        %v3488 = vsel %vm1103, %v3454, 0
        %3490 = vmatprep.subr.mxu0 0.0
        %3491 = vmatpush1.msra.mxu0 %v3455
        %3492 = vmatprep.subr.mxu0 0.0
        %3493 = vmatpush1.msra.mxu0 %v3456
        %3494 = vmatprep.subr.mxu0 0.0
        %3495 = vmatpush1.msra.mxu0 %v3457
        %3496 = vmatprep.subr.mxu0 0.0
        %3497 = vmatpush1.msra.mxu0 %v3458
        %3498 = vmatprep.subr.mxu0 0.0
        %3499 = vmatpush1.msra.mxu0 0.0
        %3500 = vmatprep.subr.mxu0 0.0
        %3501 = vmatpush1.msra.mxu0 0.0
        %3502 = vmatprep.subr.mxu0 0.0
        %3503 = vmatpush1.msra.mxu0 0.0
        %3504 = vmatprep.subr.mxu0 0.0
        %3505 = vmatpush1.msra.mxu0 0.0
        %3506 = vmatprep.subr.mxu0 0.0
        %3507 = vmatpush1.msra.mxu0 0.0
        %3508 = vmatprep.subr.mxu0 0.0
        %3509 = vmatpush1.msra.mxu0 0.0
        %3510 = vmatprep.subr.mxu0 0.0
        %3511 = vmatpush1.msra.mxu0 0.0
        %3512 = vmatprep.subr.mxu0 0.0
        %3513 = vmatpush1.msra.mxu0 0.0
        %3514 = vmatprep.subr.mxu0 0.0
        %3515 = vmatpush1.msra.mxu0 0.0
        %3516 = vmatprep.subr.mxu0 0.0
        %3517 = vmatpush1.msra.mxu0 0.0
        %3518 = vmatprep.subr.mxu0 0.0
        %3519 = vmatpush1.msra.mxu0 0.0
        %3520 = vmatprep.subr.mxu0 0.0
        %3521 = vmatpush1.msra.mxu0 0.0
        %3522 = vmatprep.subr.mxu0 0.0
        %3523 = vmatpush1.msra.mxu0 0.0
        %3524 = vmatprep.subr.mxu0 0.0
        %3525 = vmatpush1.msra.mxu0 0.0
        %3526 = vmatprep.subr.mxu0 0.0
        %3527 = vmatpush1.msra.mxu0 0.0
        %3528 = vmatprep.subr.mxu0 0.0
        %3529 = vmatpush1.msra.mxu0 0.0
        %3530 = vmatprep.subr.mxu0 0.0
        %3531 = vmatpush1.msra.mxu0 0.0
        %3532 = vmatprep.subr.mxu0 0.0
        %3533 = vmatpush1.msra.mxu0 0.0
        %3534 = vmatprep.subr.mxu0 0.0
        %3535 = vmatpush1.msra.mxu0 0.0
        %3536 = vmatprep.subr.mxu0 0.0
        %3537 = vmatpush1.msra.mxu0 0.0
        %3538 = vmatprep.subr.mxu0 0.0
        %3539 = vmatpush1.msra.mxu0 0.0
        %3540 = vmatprep.subr.mxu0 0.0
        %3541 = vmatpush1.msra.mxu0 0.0
        %3542 = vmatprep.subr.mxu0 0.0
        %3543 = vmatpush1.msra.mxu0 0.0
        %3544 = vmatprep.subr.mxu0 0.0
        %3545 = vmatpush1.msra.mxu0 0.0
        %3546 = vmatprep.subr.mxu0 0.0
        %3547 = vmatpush1.msra.mxu0 0.0
        %3548 = vmatprep.subr.mxu0 0.0
        %3549 = vmatpush1.msra.mxu0 0.0
        %3550 = vmatprep.subr.mxu0 0.0
        %3551 = vmatpush1.msra.mxu0 0.0
        %3552 = vmatprep.subr.mxu0 0.0
        %3553 = vmatpush1.msra.mxu0 0.0
        %3554 = vmatprep.mubr.f32.mxu0 0.0
        %3555 = vmatmul.mubr.f32.gmra.mrb[0].mxu0 %v3467
        %v3556 = vpop.f32.mrb[0].mxu0
        %v3557 = vadd.f32 %v3464, %v3556
        %v3558 = vpop.f32.mrb[0].mxu0
        %3559 = vmatprep.mubr.f32.mxu0 0.0
        %3560 = vmatmul.mubr.f32.gmra.mrb[0].mxu0 %v3470
        %v3561 = vpop.f32.mrb[0].mxu0
        %v3562 = vadd.f32 %v3464, %v3561
        %v3563 = vpop.f32.mrb[0].mxu0
        %3564 = vmatprep.mubr.f32.mxu0 0.0
        %3565 = vmatmul.mubr.f32.gmra.mrb[0].mxu0 %v3473
        %v3566 = vpop.f32.mrb[0].mxu0
        %v3567 = vadd.f32 %v3464, %v3566
        %v3568 = vpop.f32.mrb[0].mxu0
        %3569 = vmatprep.mubr.f32.mxu0 0.0
        %3570 = vmatmul.mubr.f32.gmra.mrb[0].mxu0 %v3476
        %v3571 = vpop.f32.mrb[0].mxu0
        %v3572 = vadd.f32 %v3464, %v3571
        %v3573 = vpop.f32.mrb[0].mxu0
        %3574 = vmatprep.mubr.f32.mxu0 0.0
        %3575 = vmatmul.mubr.f32.gmra.mrb[0].mxu0 %v3479
        %v3576 = vpop.f32.mrb[0].mxu0
        %v3577 = vadd.f32 %v3464, %v3576
        %v3578 = vpop.f32.mrb[0].mxu0
        %3579 = vmatprep.mubr.f32.mxu0 0.0
        %3580 = vmatmul.mubr.f32.gmra.mrb[0].mxu0 %v3482
        %v3581 = vpop.f32.mrb[0].mxu0
        %v3582 = vadd.f32 %v3464, %v3581
        %v3583 = vpop.f32.mrb[0].mxu0
        %3584 = vmatprep.mubr.f32.mxu0 0.0
        %3585 = vmatmul.mubr.f32.gmra.mrb[0].mxu0 %v3485
        %v3586 = vpop.f32.mrb[0].mxu0
        %v3587 = vadd.f32 %v3464, %v3586
        %v3588 = vpop.f32.mrb[0].mxu0
        %3589 = vmatprep.mubr.f32.mxu0 0.0
        %3590 = vmatmul.mubr.f32.gmra.mrb[0].mxu0 %v3488
        %v3591 = vpop.f32.mrb[0].mxu0
        %v3592 = vadd.f32 %v3464, %v3591
        %v3593 = vpop.f32.mrb[0].mxu0
        %3594 = vdwg.mxu0
        %v3595 = vmul.f32 %v3557, 0.5
        %v3596 = vmul.f32 %v3562, 0.5
        %v3597 = vmul.f32 %v3567, 0.5
        %v3598 = vmul.f32 %v3572, 0.5
        %v3599 = vmul.f32 %v3577, 0.5
        %v3600 = vmul.f32 %v3582, 0.5
        %v3601 = vmul.f32 %v3587, 0.5
        %v3602 = vmul.f32 %v3592, 0.5
        %v3603 = vmul.f32 %v3557, 0.70710677
        %v3604 = vmul.f32 %v3562, 0.70710677
        %v3605 = vmul.f32 %v3567, 0.70710677
        %v3606 = vmul.f32 %v3572, 0.70710677
        %v3607 = vmul.f32 %v3577, 0.70710677
        %v3608 = vmul.f32 %v3582, 0.70710677
        %v3609 = vmul.f32 %v3587, 0.70710677
        %v3610 = vmul.f32 %v3592, 0.70710677
        %v3611 = verf.f32.pop %v3603
        %v3612 = verf.f32.pop %v3604
        %v3613 = verf.f32.pop %v3605
        %v3614 = verf.f32.pop %v3606
        %v3615 = verf.f32.pop %v3607
        %v3616 = verf.f32.pop %v3608
        %v3617 = verf.f32.pop %v3609
        %v3618 = verf.f32.pop %v3610
        %v3619 = vadd.f32 %v3611, 1.0
        %v3620 = vadd.f32 %v3612, 1.0
        %v3621 = vadd.f32 %v3613, 1.0
        %v3622 = vadd.f32 %v3614, 1.0
        %v3623 = vadd.f32 %v3615, 1.0
        %v3624 = vadd.f32 %v3616, 1.0
        %v3625 = vadd.f32 %v3617, 1.0
        %v3626 = vadd.f32 %v3618, 1.0
        %v3627 = vmul.f32 %v3595, %v3619
        %v3628 = vmul.f32 %v3596, %v3620
        %v3629 = vmul.f32 %v3597, %v3621
        %v3630 = vmul.f32 %v3598, %v3622
        %v3631 = vmul.f32 %v3599, %v3623
        %v3632 = vmul.f32 %v3600, %v3624
        %v3633 = vmul.f32 %v3601, %v3625
        %v3634 = vmul.f32 %v3602, %v3626
        %v3635 = vld [vmem:[%s909] sm:$0xff]
        %v3636 = vld [vmem:[%s909 + $0x8] sm:$0xff]
        %v3637 = vld [vmem:[%s909 + $0x10] sm:$0xff]
        %v3638 = vld [vmem:[%s909 + $0x18] sm:$0xff]
        %v3639 = vld [vmem:[%s909 + $0x20] sm:$0xff]
        %v3640 = vld [vmem:[%s909 + $0x28] sm:$0xff]
        %v3641 = vld [vmem:[%s909 + $0x30] sm:$0xff]
        %v3642 = vld [vmem:[%s909 + $0x38] sm:$0xff]
        %v3643 = vld [vmem:[%s912] sm:$0x1]
        %v3645 = vlaneseq
        %v3646 = vshrl.u32 %v3645, 7
        %v3647 = vsub.s32 0, %v3646
        %v3648 = vrot.slane %v3643, %v3647
        %v3651 = vsel %vm1547, %v3627, 0
        %v3654 = vsel %vm1547, %v3628, 0
        %v3657 = vsel %vm1547, %v3629, 0
        %v3660 = vsel %vm1547, %v3630, 0
        %v3663 = vsel %vm1547, %v3631, 0
        %v3666 = vsel %vm1547, %v3632, 0
        %v3669 = vsel %vm1547, %v3633, 0
        %v3672 = vsel %vm1547, %v3634, 0
        %3674 = vmatprep.subr.mxu0 0.0
        %3675 = vmatpush1.msra.mxu0 %v3635
        %3676 = vmatprep.subr.mxu0 0.0
        %3677 = vmatpush1.msra.mxu0 %v3636
        %3678 = vmatprep.subr.mxu0 0.0
        %3679 = vmatpush1.msra.mxu0 %v3637
        %3680 = vmatprep.subr.mxu0 0.0
        %3681 = vmatpush1.msra.mxu0 %v3638
        %3682 = vmatprep.subr.mxu0 0.0
        %3683 = vmatpush1.msra.mxu0 %v3639
        %3684 = vmatprep.subr.mxu0 0.0
        %3685 = vmatpush1.msra.mxu0 %v3640
        %3686 = vmatprep.subr.mxu0 0.0
        %3687 = vmatpush1.msra.mxu0 %v3641
        %3688 = vmatprep.subr.mxu0 0.0
        %3689 = vmatpush1.msra.mxu0 %v3642
        %3690 = vmatprep.subr.mxu0 0.0
        %3691 = vmatpush1.msra.mxu0 0.0
        %3692 = vmatprep.subr.mxu0 0.0
        %3693 = vmatpush1.msra.mxu0 0.0
        %3694 = vmatprep.subr.mxu0 0.0
        %3695 = vmatpush1.msra.mxu0 0.0
        %3696 = vmatprep.subr.mxu0 0.0
        %3697 = vmatpush1.msra.mxu0 0.0
        %3698 = vmatprep.subr.mxu0 0.0
        %3699 = vmatpush1.msra.mxu0 0.0
        %3700 = vmatprep.subr.mxu0 0.0
        %3701 = vmatpush1.msra.mxu0 0.0
        %3702 = vmatprep.subr.mxu0 0.0
        %3703 = vmatpush1.msra.mxu0 0.0
        %3704 = vmatprep.subr.mxu0 0.0
        %3705 = vmatpush1.msra.mxu0 0.0
        %3706 = vmatprep.subr.mxu0 0.0
        %3707 = vmatpush1.msra.mxu0 0.0
        %3708 = vmatprep.subr.mxu0 0.0
        %3709 = vmatpush1.msra.mxu0 0.0
        %3710 = vmatprep.subr.mxu0 0.0
        %3711 = vmatpush1.msra.mxu0 0.0
        %3712 = vmatprep.subr.mxu0 0.0
        %3713 = vmatpush1.msra.mxu0 0.0
        %3714 = vmatprep.subr.mxu0 0.0
        %3715 = vmatpush1.msra.mxu0 0.0
        %3716 = vmatprep.subr.mxu0 0.0
        %3717 = vmatpush1.msra.mxu0 0.0
        %3718 = vmatprep.subr.mxu0 0.0
        %3719 = vmatpush1.msra.mxu0 0.0
        %3720 = vmatprep.subr.mxu0 0.0
        %3721 = vmatpush1.msra.mxu0 0.0
        %3722 = vmatprep.subr.mxu0 0.0
        %3723 = vmatpush1.msra.mxu0 0.0
        %3724 = vmatprep.subr.mxu0 0.0
        %3725 = vmatpush1.msra.mxu0 0.0
        %3726 = vmatprep.subr.mxu0 0.0
        %3727 = vmatpush1.msra.mxu0 0.0
        %3728 = vmatprep.subr.mxu0 0.0
        %3729 = vmatpush1.msra.mxu0 0.0
        %3730 = vmatprep.subr.mxu0 0.0
        %3731 = vmatpush1.msra.mxu0 0.0
        %3732 = vmatprep.subr.mxu0 0.0
        %3733 = vmatpush1.msra.mxu0 0.0
        %3734 = vmatprep.subr.mxu0 0.0
        %3735 = vmatpush1.msra.mxu0 0.0
        %3736 = vmatprep.subr.mxu0 0.0
        %3737 = vmatpush1.msra.mxu0 0.0
        %3738 = vmatprep.mubr.f32.mxu0 0.0
        %3739 = vmatmul.mubr.f32.gmra.mrb[0].mxu0 %v3651
        %v3740 = vpop.f32.mrb[0].mxu0
        %v3741 = vadd.f32 %v3648, %v3740
        %v3742 = vpop.f32.mrb[0].mxu0
        %3743 = vmatprep.mubr.f32.mxu0 0.0
        %3744 = vmatmul.mubr.f32.gmra.mrb[0].mxu0 %v3654
        %v3745 = vpop.f32.mrb[0].mxu0
        %v3746 = vadd.f32 %v3648, %v3745
        %v3747 = vpop.f32.mrb[0].mxu0
        %3748 = vmatprep.mubr.f32.mxu0 0.0
        %3749 = vmatmul.mubr.f32.gmra.mrb[0].mxu0 %v3657
        %v3750 = vpop.f32.mrb[0].mxu0
        %v3751 = vadd.f32 %v3648, %v3750
        %v3752 = vpop.f32.mrb[0].mxu0
        %3753 = vmatprep.mubr.f32.mxu0 0.0
        %3754 = vmatmul.mubr.f32.gmra.mrb[0].mxu0 %v3660
        %v3755 = vpop.f32.mrb[0].mxu0
        %v3756 = vadd.f32 %v3648, %v3755
        %v3757 = vpop.f32.mrb[0].mxu0
        %3758 = vmatprep.mubr.f32.mxu0 0.0
        %3759 = vmatmul.mubr.f32.gmra.mrb[0].mxu0 %v3663
        %v3760 = vpop.f32.mrb[0].mxu0
        %v3761 = vadd.f32 %v3648, %v3760
        %v3762 = vpop.f32.mrb[0].mxu0
        %3763 = vmatprep.mubr.f32.mxu0 0.0
        %3764 = vmatmul.mubr.f32.gmra.mrb[0].mxu0 %v3666
        %v3765 = vpop.f32.mrb[0].mxu0
        %v3766 = vadd.f32 %v3648, %v3765
        %v3767 = vpop.f32.mrb[0].mxu0
        %3768 = vmatprep.mubr.f32.mxu0 0.0
        %3769 = vmatmul.mubr.f32.gmra.mrb[0].mxu0 %v3669
        %v3770 = vpop.f32.mrb[0].mxu0
        %v3771 = vadd.f32 %v3648, %v3770
        %v3772 = vpop.f32.mrb[0].mxu0
        %3773 = vmatprep.mubr.f32.mxu0 0.0
        %3774 = vmatmul.mubr.f32.gmra.mrb[0].mxu0 %v3672
        %v3775 = vpop.f32.mrb[0].mxu0
        %v3776 = vadd.f32 %v3648, %v3775
        %v3777 = vpop.f32.mrb[0].mxu0
        %3778 = vdwg.mxu0
        %v3779 = vadd.f32 %v3741, %v3313
        %v3780 = vadd.f32 %v3746, %v3314
        %v3781 = vadd.f32 %v3751, %v3315
        %v3782 = vadd.f32 %v3756, %v3316
        %v3783 = vadd.f32 %v3761, %v3317
        %v3784 = vadd.f32 %v3766, %v3318
        %v3785 = vadd.f32 %v3771, %v3319
        %v3786 = vadd.f32 %v3776, %v3320
        %3787 = vst.msk [vmem:[#allocation2] sm:$0xff] %vm1103, %v3779
        %3788 = vst.msk [vmem:[#allocation2 + $0x8] sm:$0xff] %vm1103, %v3780
        %3789 = vst.msk [vmem:[#allocation2 + $0x10] sm:$0xff] %vm1103, %v3781
        %3790 = vst.msk [vmem:[#allocation2 + $0x18] sm:$0xff] %vm1103, %v3782
        %3791 = vst.msk [vmem:[#allocation2 + $0x20] sm:$0xff] %vm1103, %v3783
        %3792 = vst.msk [vmem:[#allocation2 + $0x28] sm:$0xff] %vm1103, %v3784
        %3793 = vst.msk [vmem:[#allocation2 + $0x30] sm:$0xff] %vm1103, %v3785
        %3794 = vst.msk [vmem:[#allocation2 + $0x38] sm:$0xff] %vm1103, %v3786
        %p3795 = scmp.eq.s32.totalorder %s42, 1
        // Predicated region
        $region117: #{vit_none_forward.1} parent=111 // pred_check
          %p3796 = pneg %p3795
        $region118: #{vit_none_forward.1} parent=111 // pred_check_branch
          %3798 = sbr.rel (%p3796) target = $region120
        $region119: #{vit_none_forward.1} parent=111 // pred_region
          %v3799 = vld [vmem:[%s16] sm:$0x1]
          %v3800 = vld [vmem:[%s17] sm:$0x1]
          %v3801 = vsel %vm1103, %v3779, 0.0
          %3802 = vadd.xlane.f32.xlu0 %v3801
          %v3803 = vpop.xlane.xlu0 %3802
          %v3804 = vsel %vm1103, %v3780, 0.0
          %3805 = vadd.xlane.f32.xlu0 %v3804
          %v3806 = vpop.xlane.xlu0 %3805
          %v3807 = vsel %vm1103, %v3781, 0.0
          %3808 = vadd.xlane.f32.xlu0 %v3807
          %v3809 = vpop.xlane.xlu0 %3808
          %v3810 = vsel %vm1103, %v3782, 0.0
          %3811 = vadd.xlane.f32.xlu0 %v3810
          %v3812 = vpop.xlane.xlu0 %3811
          %v3813 = vsel %vm1103, %v3783, 0.0
          %3814 = vadd.xlane.f32.xlu0 %v3813
          %v3815 = vpop.xlane.xlu0 %3814
          %v3816 = vsel %vm1103, %v3784, 0.0
          %3817 = vadd.xlane.f32.xlu0 %v3816
          %v3818 = vpop.xlane.xlu0 %3817
          %v3819 = vsel %vm1103, %v3785, 0.0
          %3820 = vadd.xlane.f32.xlu0 %v3819
          %v3821 = vpop.xlane.xlu0 %3820
          %v3822 = vsel %vm1103, %v3786, 0.0
          %3823 = vadd.xlane.f32.xlu0 %v3822
          %v3824 = vpop.xlane.xlu0 %3823
          %v3825 = vmul.f32 %v3803, %v1128
          %v3826 = vmul.f32 %v3806, %v1128
          %v3827 = vmul.f32 %v3809, %v1128
          %v3828 = vmul.f32 %v3812, %v1128
          %v3829 = vmul.f32 %v3815, %v1128
          %v3830 = vmul.f32 %v3818, %v1128
          %v3831 = vmul.f32 %v3821, %v1128
          %v3832 = vmul.f32 %v3824, %v1128
          %v3833 = vsub.f32 %v3779, %v3825
          %v3834 = vsub.f32 %v3780, %v3826
          %v3835 = vsub.f32 %v3781, %v3827
          %v3836 = vsub.f32 %v3782, %v3828
          %v3837 = vsub.f32 %v3783, %v3829
          %v3838 = vsub.f32 %v3784, %v3830
          %v3839 = vsub.f32 %v3785, %v3831
          %v3840 = vsub.f32 %v3786, %v3832
          %v3841 = vmul.f32 %v3833, %v3833
          %v3842 = vmul.f32 %v3834, %v3834
          %v3843 = vmul.f32 %v3835, %v3835
          %v3844 = vmul.f32 %v3836, %v3836
          %v3845 = vmul.f32 %v3837, %v3837
          %v3846 = vmul.f32 %v3838, %v3838
          %v3847 = vmul.f32 %v3839, %v3839
          %v3848 = vmul.f32 %v3840, %v3840
          %v3849 = vsel %vm1103, %v3841, 0.0
          %3850 = vadd.xlane.f32.xlu0 %v3849
          %v3851 = vpop.xlane.xlu0 %3850
          %v3852 = vsel %vm1103, %v3842, 0.0
          %3853 = vadd.xlane.f32.xlu0 %v3852
          %v3854 = vpop.xlane.xlu0 %3853
          %v3855 = vsel %vm1103, %v3843, 0.0
          %3856 = vadd.xlane.f32.xlu0 %v3855
          %v3857 = vpop.xlane.xlu0 %3856
          %v3858 = vsel %vm1103, %v3844, 0.0
          %3859 = vadd.xlane.f32.xlu0 %v3858
          %v3860 = vpop.xlane.xlu0 %3859
          %v3861 = vsel %vm1103, %v3845, 0.0
          %3862 = vadd.xlane.f32.xlu0 %v3861
          %v3863 = vpop.xlane.xlu0 %3862
          %v3864 = vsel %vm1103, %v3846, 0.0
          %3865 = vadd.xlane.f32.xlu0 %v3864
          %v3866 = vpop.xlane.xlu0 %3865
          %v3867 = vsel %vm1103, %v3847, 0.0
          %3868 = vadd.xlane.f32.xlu0 %v3867
          %v3869 = vpop.xlane.xlu0 %3868
          %v3870 = vsel %vm1103, %v3848, 0.0
          %3871 = vadd.xlane.f32.xlu0 %v3870
          %v3872 = vpop.xlane.xlu0 %3871
          %v3873 = vmul.f32 %v3851, %v1128
          %v3874 = vmul.f32 %v3854, %v1128
          %v3875 = vmul.f32 %v3857, %v1128
          %v3876 = vmul.f32 %v3860, %v1128
          %v3877 = vmul.f32 %v3863, %v1128
          %v3878 = vmul.f32 %v3866, %v1128
          %v3879 = vmul.f32 %v3869, %v1128
          %v3880 = vmul.f32 %v3872, %v1128
          %v3881 = vadd.f32 %v3873, 1e-06
          %v3882 = vadd.f32 %v3874, 1e-06
          %v3883 = vadd.f32 %v3875, 1e-06
          %v3884 = vadd.f32 %v3876, 1e-06
          %v3885 = vadd.f32 %v3877, 1e-06
          %v3886 = vadd.f32 %v3878, 1e-06
          %v3887 = vadd.f32 %v3879, 1e-06
          %v3888 = vadd.f32 %v3880, 1e-06
          %v3889 = vrsqrt.pop %v3881
          %v3890 = vrsqrt.pop %v3882
          %v3891 = vrsqrt.pop %v3883
          %v3892 = vrsqrt.pop %v3884
          %v3893 = vrsqrt.pop %v3885
          %v3894 = vrsqrt.pop %v3886
          %v3895 = vrsqrt.pop %v3887
          %v3896 = vrsqrt.pop %v3888
          %v3897 = vmul.f32 %v3833, %v3889
          %v3898 = vmul.f32 %v3834, %v3890
          %v3899 = vmul.f32 %v3835, %v3891
          %v3900 = vmul.f32 %v3836, %v3892
          %v3901 = vmul.f32 %v3837, %v3893
          %v3902 = vmul.f32 %v3838, %v3894
          %v3903 = vmul.f32 %v3839, %v3895
          %v3904 = vmul.f32 %v3840, %v3896
          %v3906 = vlaneseq
          %v3907 = vshrl.u32 %v3906, 7
          %v3908 = vsub.s32 0, %v3907
          %v3909 = vrot.slane %v3799, %v3908
          %v3911 = vmul.f32 %v3897, %v3909
          %v3912 = vmul.f32 %v3898, %v3909
          %v3913 = vmul.f32 %v3899, %v3909
          %v3914 = vmul.f32 %v3900, %v3909
          %v3915 = vmul.f32 %v3901, %v3909
          %v3916 = vmul.f32 %v3902, %v3909
          %v3917 = vmul.f32 %v3903, %v3909
          %v3918 = vmul.f32 %v3904, %v3909
          %v3920 = vlaneseq
          %v3921 = vshrl.u32 %v3920, 7
          %v3922 = vsub.s32 0, %v3921
          %v3923 = vrot.slane %v3800, %v3922
          %v3925 = vadd.f32 %v3911, %v3923
          %v3926 = vadd.f32 %v3912, %v3923
          %v3927 = vadd.f32 %v3913, %v3923
          %v3928 = vadd.f32 %v3914, %v3923
          %v3929 = vadd.f32 %v3915, %v3923
          %v3930 = vadd.f32 %v3916, %v3923
          %v3931 = vadd.f32 %v3917, %v3923
          %v3932 = vadd.f32 %v3918, %v3923
          %v3933 = vld [vmem:[%s18] sm:$0x7]
          %v3935 = vsel %vm1103, %v3933, 0
          %v3938 = vsel %vm1103, %v3925, 0
          %v3941 = vsel %vm1103, %v3926, 0
          %v3944 = vsel %vm1103, %v3927, 0
          %v3947 = vsel %vm1103, %v3928, 0
          %v3950 = vsel %vm1103, %v3929, 0
          %v3953 = vsel %vm1103, %v3930, 0
          %v3956 = vsel %vm1103, %v3931, 0
          %v3959 = vsel %vm1103, %v3932, 0
          %3961 = vmatprep.subr.mxu0 0.0
          %3962 = vmatpush1.xpose.msra.mxu0 %v3938
          %3963 = vmatprep.subr.mxu0 0.0
          %3964 = vmatpush1.xpose.msra.mxu0 %v3941
          %3965 = vmatprep.subr.mxu0 0.0
          %3966 = vmatpush1.xpose.msra.mxu0 %v3944
          %3967 = vmatprep.subr.mxu0 0.0
          %3968 = vmatpush1.xpose.msra.mxu0 %v3947
          %3969 = vmatprep.subr.mxu0 0.0
          %3970 = vmatpush1.xpose.msra.mxu0 %v3950
          %3971 = vmatprep.subr.mxu0 0.0
          %3972 = vmatpush1.xpose.msra.mxu0 %v3953
          %3973 = vmatprep.subr.mxu0 0.0
          %3974 = vmatpush1.xpose.msra.mxu0 %v3956
          %3975 = vmatprep.subr.mxu0 0.0
          %3976 = vmatpush1.xpose.msra.mxu0 %v3959
          %3977 = vmatprep.subr.mxu0 0.0
          %3978 = vmatpush1.xpose.msra.mxu0 0.0
          %3979 = vmatprep.subr.mxu0 0.0
          %3980 = vmatpush1.xpose.msra.mxu0 0.0
          %3981 = vmatprep.subr.mxu0 0.0
          %3982 = vmatpush1.xpose.msra.mxu0 0.0
          %3983 = vmatprep.subr.mxu0 0.0
          %3984 = vmatpush1.xpose.msra.mxu0 0.0
          %3985 = vmatprep.subr.mxu0 0.0
          %3986 = vmatpush1.xpose.msra.mxu0 0.0
          %3987 = vmatprep.subr.mxu0 0.0
          %3988 = vmatpush1.xpose.msra.mxu0 0.0
          %3989 = vmatprep.subr.mxu0 0.0
          %3990 = vmatpush1.xpose.msra.mxu0 0.0
          %3991 = vmatprep.subr.mxu0 0.0
          %3992 = vmatpush1.xpose.msra.mxu0 0.0
          %3993 = vmatprep.subr.mxu0 0.0
          %3994 = vmatpush1.xpose.msra.mxu0 0.0
          %3995 = vmatprep.subr.mxu0 0.0
          %3996 = vmatpush1.xpose.msra.mxu0 0.0
          %3997 = vmatprep.subr.mxu0 0.0
          %3998 = vmatpush1.xpose.msra.mxu0 0.0
          %3999 = vmatprep.subr.mxu0 0.0
          %4000 = vmatpush1.xpose.msra.mxu0 0.0
          %4001 = vmatprep.subr.mxu0 0.0
          %4002 = vmatpush1.xpose.msra.mxu0 0.0
          %4003 = vmatprep.subr.mxu0 0.0
          %4004 = vmatpush1.xpose.msra.mxu0 0.0
          %4005 = vmatprep.subr.mxu0 0.0
          %4006 = vmatpush1.xpose.msra.mxu0 0.0
          %4007 = vmatprep.subr.mxu0 0.0
          %4008 = vmatpush1.xpose.msra.mxu0 0.0
          %4009 = vmatprep.subr.mxu0 0.0
          %4010 = vmatpush1.xpose.msra.mxu0 0.0
          %4011 = vmatprep.subr.mxu0 0.0
          %4012 = vmatpush1.xpose.msra.mxu0 0.0
          %4013 = vmatprep.subr.mxu0 0.0
          %4014 = vmatpush1.xpose.msra.mxu0 0.0
          %4015 = vmatprep.subr.mxu0 0.0
          %4016 = vmatpush1.xpose.msra.mxu0 0.0
          %4017 = vmatprep.subr.mxu0 0.0
          %4018 = vmatpush1.xpose.msra.mxu0 0.0
          %4019 = vmatprep.subr.mxu0 0.0
          %4020 = vmatpush1.xpose.msra.mxu0 0.0
          %4021 = vmatprep.subr.mxu0 0.0
          %4022 = vmatpush1.xpose.msra.mxu0 0.0
          %4023 = vmatprep.subr.mxu0 0.0
          %4024 = vmatpush1.xpose.msra.mxu0 0.0
          %4025 = vmatprep.mubr.f32.mxu0 0.0
          %4026 = vmatmul.mubr.f32.gmra.mrb[0].mxu0 %v3935
          %v4027 = vpop.f32.mrb[0].mxu0
          %v4028 = vadd.f32 0.0, %v4027
          %v4029 = vpop.f32.mrb[0].mxu0
          %4030 = vdwg.mxu0
          %v4031 = vld [vmem:[%s19] sm:$0x7]
          %4033 = vset.pattern.permute.xlu0 0
          %4034 = vperm.xlu0 %4033, %v4031
          %v4035 = vpop.permute.xlu0 %4034
          %v4037 = vmul.f32 %v4028, %v4035
          %v4038 = vld [vmem:[%s20] sm:$0x7]
          %4040 = vset.pattern.permute.xlu0 0
          %4041 = vperm.xlu0 %4040, %v4038
          %v4042 = vpop.permute.xlu0 %4041
          %v4044 = vadd.f32 %v4037, %v4042
          %v4045 = vmax.f32 %v4044, 0.0
          %v4046 = vld [vmem:[%s21] sm:$0xff]
          %v4047 = vld [vmem:[%s21 + $0x8] sm:$0xff]
          %v4048 = vld [vmem:[%s21 + $0x10] sm:$0xff]
          %v4049 = vld [vmem:[%s21 + $0x18] sm:$0xff]
          %v4050 = vld [vmem:[%s21 + $0x20] sm:$0xff]
          %v4051 = vld [vmem:[%s21 + $0x28] sm:$0xff]
          %v4052 = vld [vmem:[%s21 + $0x30] sm:$0xff]
          %v4053 = vld [vmem:[%s21 + $0x38] sm:$0xff]
          %v4054 = vld [vmem:[%s21 + $0x40] sm:$0xff]
          %v4055 = vld [vmem:[%s21 + $0x48] sm:$0xff]
          %v4056 = vld [vmem:[%s21 + $0x50] sm:$0xff]
          %v4057 = vld [vmem:[%s21 + $0x58] sm:$0xff]
          %v4058 = vld [vmem:[%s21 + $0x60] sm:$0xff]
          %v4059 = vld [vmem:[%s21 + $0x68] sm:$0xff]
          %v4060 = vld [vmem:[%s21 + $0x70] sm:$0xff]
          %v4061 = vld [vmem:[%s21 + $0x78] sm:$0xff]
          %v4062 = vld [vmem:[%s21 + $0x80] sm:$0xff]
          %v4063 = vld [vmem:[%s21 + $0x88] sm:$0xff]
          %v4064 = vld [vmem:[%s21 + $0x90] sm:$0xff]
          %v4065 = vld [vmem:[%s21 + $0x98] sm:$0xff]
          %v4066 = vld [vmem:[%s21 + $0xa0] sm:$0xff]
          %v4067 = vld [vmem:[%s21 + $0xa8] sm:$0xff]
          %v4068 = vld [vmem:[%s21 + $0xb0] sm:$0xff]
          %v4069 = vld [vmem:[%s21 + $0xb8] sm:$0xff]
          %v4070 = vld [vmem:[%s21 + $0xc0] sm:$0xff]
          %v4071 = vld [vmem:[%s21 + $0xc8] sm:$0xff]
          %v4072 = vld [vmem:[%s21 + $0xd0] sm:$0xff]
          %v4073 = vld [vmem:[%s21 + $0xd8] sm:$0xff]
          %v4074 = vld [vmem:[%s22] sm:$0xff]
          %v4075 = vld [vmem:[%s22 + $0x8] sm:$0xff]
          %v4076 = vld [vmem:[%s22 + $0x10] sm:$0xff]
          %v4077 = vld [vmem:[%s22 + $0x18] sm:$0xff]
          %v4078 = vld [vmem:[%s22 + $0x20] sm:$0xff]
          %v4079 = vld [vmem:[%s22 + $0x28] sm:$0xff]
          %v4080 = vld [vmem:[%s22 + $0x30] sm:$0xff]
          %v4081 = vld [vmem:[%s22 + $0x38] sm:$0xff]
          %v4082 = vld [vmem:[%s22 + $0x40] sm:$0xff]
          %v4083 = vld [vmem:[%s22 + $0x48] sm:$0xff]
          %v4084 = vld [vmem:[%s22 + $0x50] sm:$0xff]
          %v4085 = vld [vmem:[%s22 + $0x58] sm:$0xff]
          %v4086 = vld [vmem:[%s22 + $0x60] sm:$0xff]
          %v4087 = vld [vmem:[%s22 + $0x68] sm:$0xff]
          %v4088 = vld [vmem:[%s22 + $0x70] sm:$0xff]
          %v4089 = vld [vmem:[%s22 + $0x78] sm:$0xff]
          %v4090 = vlaneseq
          %v4091 = vshrl.u32 %v4090, 7
          %v4092 = vsub.s32 0, %v4091
          %v4093 = vrot.slane %v4045, %v4092
          %v4094 = vmul.f32 %v4046, %v4093
          %v4095 = vmul.f32 %v4047, %v4093
          %v4096 = vmul.f32 %v4048, %v4093
          %v4097 = vmul.f32 %v4049, %v4093
          %v4098 = vmul.f32 %v4050, %v4093
          %v4099 = vmul.f32 %v4051, %v4093
          %v4100 = vmul.f32 %v4052, %v4093
          %v4101 = vmul.f32 %v4053, %v4093
          %v4102 = vmul.f32 %v4054, %v4093
          %v4103 = vmul.f32 %v4055, %v4093
          %v4104 = vmul.f32 %v4056, %v4093
          %v4105 = vmul.f32 %v4057, %v4093
          %v4106 = vmul.f32 %v4058, %v4093
          %v4107 = vmul.f32 %v4059, %v4093
          %v4108 = vmul.f32 %v4060, %v4093
          %v4109 = vmul.f32 %v4061, %v4093
          %v4110 = vmul.f32 %v4062, %v4093
          %v4111 = vmul.f32 %v4063, %v4093
          %v4112 = vmul.f32 %v4064, %v4093
          %v4113 = vmul.f32 %v4065, %v4093
          %v4114 = vmul.f32 %v4066, %v4093
          %v4115 = vmul.f32 %v4067, %v4093
          %v4116 = vmul.f32 %v4068, %v4093
          %v4117 = vmul.f32 %v4069, %v4093
          %v4118 = vmul.f32 %v4070, %v4093
          %v4119 = vmul.f32 %v4071, %v4093
          %v4120 = vmul.f32 %v4072, %v4093
          %v4121 = vmul.f32 %v4073, %v4093
          %v4123 = vsel %vm1547, %v4094, 0
          %v4126 = vsel %vm1547, %v4095, 0
          %v4129 = vsel %vm1547, %v4096, 0
          %v4132 = vsel %vm1547, %v4097, 0
          %v4135 = vsel %vm1547, %v4098, 0
          %v4138 = vsel %vm1547, %v4099, 0
          %v4141 = vsel %vm1547, %v4100, 0
          %v4144 = vsel %vm1547, %v4101, 0
          %v4147 = vsel %vm1547, %v4102, 0
          %v4150 = vsel %vm1547, %v4103, 0
          %v4153 = vsel %vm1547, %v4104, 0
          %v4156 = vsel %vm1547, %v4105, 0
          %v4159 = vsel %vm1547, %v4106, 0
          %v4162 = vsel %vm1547, %v4107, 0
          %v4165 = vsel %vm1547, %v4108, 0
          %v4168 = vsel %vm1547, %v4109, 0
          %v4171 = vsel %vm1547, %v4110, 0
          %v4174 = vsel %vm1547, %v4111, 0
          %v4177 = vsel %vm1547, %v4112, 0
          %v4180 = vsel %vm1547, %v4113, 0
          %v4183 = vsel %vm1547, %v4114, 0
          %v4186 = vsel %vm1547, %v4115, 0
          %v4189 = vsel %vm1547, %v4116, 0
          %v4192 = vsel %vm1547, %v4117, 0
          %v4195 = vsel %vm1547, %v4118, 0
          %v4198 = vsel %vm1547, %v4119, 0
          %v4201 = vsel %vm1547, %v4120, 0
          %v4204 = vsel %vm1547, %v4121, 0
          %4206 = vmatprep.subr.mxu0 %v4075
          %4207 = vmatpush1.msra.mxu0 %v4074
          %4208 = vmatprep.subr.mxu0 %v4077
          %4209 = vmatpush1.msra.mxu0 %v4076
          %4210 = vmatprep.subr.mxu0 %v4079
          %4211 = vmatpush1.msra.mxu0 %v4078
          %4212 = vmatprep.subr.mxu0 %v4081
          %4213 = vmatpush1.msra.mxu0 %v4080
          %4214 = vmatprep.subr.mxu0 %v4083
          %4215 = vmatpush1.msra.mxu0 %v4082
          %4216 = vmatprep.subr.mxu0 %v4085
          %4217 = vmatpush1.msra.mxu0 %v4084
          %4218 = vmatprep.subr.mxu0 %v4087
          %4219 = vmatpush1.msra.mxu0 %v4086
          %4220 = vmatprep.subr.mxu0 %v4089
          %4221 = vmatpush1.msra.mxu0 %v4088
          %4222 = vmatprep.subr.mxu0 0.0
          %4223 = vmatpush1.msra.mxu0 0.0
          %4224 = vmatprep.subr.mxu0 0.0
          %4225 = vmatpush1.msra.mxu0 0.0
          %4226 = vmatprep.subr.mxu0 0.0
          %4227 = vmatpush1.msra.mxu0 0.0
          %4228 = vmatprep.subr.mxu0 0.0
          %4229 = vmatpush1.msra.mxu0 0.0
          %4230 = vmatprep.subr.mxu0 0.0
          %4231 = vmatpush1.msra.mxu0 0.0
          %4232 = vmatprep.subr.mxu0 0.0
          %4233 = vmatpush1.msra.mxu0 0.0
          %4234 = vmatprep.subr.mxu0 0.0
          %4235 = vmatpush1.msra.mxu0 0.0
          %4236 = vmatprep.subr.mxu0 0.0
          %4237 = vmatpush1.msra.mxu0 0.0
          %4238 = vmatprep.subr.mxu0 0.0
          %4239 = vmatpush1.msra.mxu0 0.0
          %4240 = vmatprep.subr.mxu0 0.0
          %4241 = vmatpush1.msra.mxu0 0.0
          %4242 = vmatprep.subr.mxu0 0.0
          %4243 = vmatpush1.msra.mxu0 0.0
          %4244 = vmatprep.subr.mxu0 0.0
          %4245 = vmatpush1.msra.mxu0 0.0
          %4246 = vmatprep.subr.mxu0 0.0
          %4247 = vmatpush1.msra.mxu0 0.0
          %4248 = vmatprep.subr.mxu0 0.0
          %4249 = vmatpush1.msra.mxu0 0.0
          %4250 = vmatprep.subr.mxu0 0.0
          %4251 = vmatpush1.msra.mxu0 0.0
          %4252 = vmatprep.subr.mxu0 0.0
          %4253 = vmatpush1.msra.mxu0 0.0
          %4254 = vmatprep.subr.mxu0 0.0
          %4255 = vmatpush1.msra.mxu0 0.0
          %4256 = vmatprep.subr.mxu0 0.0
          %4257 = vmatpush1.msra.mxu0 0.0
          %4258 = vmatprep.subr.mxu0 0.0
          %4259 = vmatpush1.msra.mxu0 0.0
          %4260 = vmatprep.subr.mxu0 0.0
          %4261 = vmatpush1.msra.mxu0 0.0
          %4262 = vmatprep.subr.mxu0 0.0
          %4263 = vmatpush1.msra.mxu0 0.0
          %4264 = vmatprep.subr.mxu0 0.0
          %4265 = vmatpush1.msra.mxu0 0.0
          %4266 = vmatprep.subr.mxu0 0.0
          %4267 = vmatpush1.msra.mxu0 0.0
          %4268 = vmatprep.subr.mxu0 0.0
          %4269 = vmatpush1.msra.mxu0 0.0
          %4270 = vmatprep.mubr.f32.mxu0 0.0
          %4271 = vmatmul.mubr.f32.gmra.mrb[0].mxu0 %v4123
          %v4272 = vpop.f32.mrb[0].mxu0
          %v4273 = vadd.f32 0.0, %v4272
          %v4274 = vpop.f32.mrb[0].mxu0
          %v4275 = vadd.f32 0.0, %v4274
          %4276 = vmatprep.mubr.f32.mxu0 0.0
          %4277 = vmatmul.mubr.f32.gmra.mrb[0].mxu0 %v4126
          %v4278 = vpop.f32.mrb[0].mxu0
          %v4279 = vadd.f32 0.0, %v4278
          %v4280 = vpop.f32.mrb[0].mxu0
          %v4281 = vadd.f32 0.0, %v4280
          %4282 = vmatprep.mubr.f32.mxu0 0.0
          %4283 = vmatmul.mubr.f32.gmra.mrb[0].mxu0 %v4129
          %v4284 = vpop.f32.mrb[0].mxu0
          %v4285 = vadd.f32 0.0, %v4284
          %v4286 = vpop.f32.mrb[0].mxu0
          %v4287 = vadd.f32 0.0, %v4286
          %4288 = vmatprep.mubr.f32.mxu0 0.0
          %4289 = vmatmul.mubr.f32.gmra.mrb[0].mxu0 %v4132
          %v4290 = vpop.f32.mrb[0].mxu0
          %v4291 = vadd.f32 0.0, %v4290
          %v4292 = vpop.f32.mrb[0].mxu0
          %v4293 = vadd.f32 0.0, %v4292
          %4294 = vmatprep.mubr.f32.mxu0 0.0
          %4295 = vmatmul.mubr.f32.gmra.mrb[0].mxu0 %v4135
          %v4296 = vpop.f32.mrb[0].mxu0
          %v4297 = vadd.f32 0.0, %v4296
          %v4298 = vpop.f32.mrb[0].mxu0
          %v4299 = vadd.f32 0.0, %v4298
          %4300 = vmatprep.mubr.f32.mxu0 0.0
          %4301 = vmatmul.mubr.f32.gmra.mrb[0].mxu0 %v4138
          %v4302 = vpop.f32.mrb[0].mxu0
          %v4303 = vadd.f32 0.0, %v4302
          %v4304 = vpop.f32.mrb[0].mxu0
          %v4305 = vadd.f32 0.0, %v4304
          %4306 = vmatprep.mubr.f32.mxu0 0.0
          %4307 = vmatmul.mubr.f32.gmra.mrb[0].mxu0 %v4141
          %v4308 = vpop.f32.mrb[0].mxu0
          %v4309 = vadd.f32 0.0, %v4308
          %v4310 = vpop.f32.mrb[0].mxu0
          %v4311 = vadd.f32 0.0, %v4310
          %4312 = vmatprep.mubr.f32.mxu0 0.0
          %4313 = vmatmul.mubr.f32.gmra.mrb[0].mxu0 %v4144
          %v4314 = vpop.f32.mrb[0].mxu0
          %v4315 = vadd.f32 0.0, %v4314
          %v4316 = vpop.f32.mrb[0].mxu0
          %v4317 = vadd.f32 0.0, %v4316
          %4318 = vmatprep.mubr.f32.mxu0 0.0
          %4319 = vmatmul.mubr.f32.gmra.mrb[0].mxu0 %v4147
          %v4320 = vpop.f32.mrb[0].mxu0
          %v4321 = vadd.f32 0.0, %v4320
          %v4322 = vpop.f32.mrb[0].mxu0
          %v4323 = vadd.f32 0.0, %v4322
          %4324 = vmatprep.mubr.f32.mxu0 0.0
          %4325 = vmatmul.mubr.f32.gmra.mrb[0].mxu0 %v4150
          %v4326 = vpop.f32.mrb[0].mxu0
          %v4327 = vadd.f32 0.0, %v4326
          %v4328 = vpop.f32.mrb[0].mxu0
          %v4329 = vadd.f32 0.0, %v4328
          %4330 = vmatprep.mubr.f32.mxu0 0.0
          %4331 = vmatmul.mubr.f32.gmra.mrb[0].mxu0 %v4153
          %v4332 = vpop.f32.mrb[0].mxu0
          %v4333 = vadd.f32 0.0, %v4332
          %v4334 = vpop.f32.mrb[0].mxu0
          %v4335 = vadd.f32 0.0, %v4334
          %4336 = vmatprep.mubr.f32.mxu0 0.0
          %4337 = vmatmul.mubr.f32.gmra.mrb[0].mxu0 %v4156
          %v4338 = vpop.f32.mrb[0].mxu0
          %v4339 = vadd.f32 0.0, %v4338
          %v4340 = vpop.f32.mrb[0].mxu0
          %v4341 = vadd.f32 0.0, %v4340
          %4342 = vmatprep.mubr.f32.mxu0 0.0
          %4343 = vmatmul.mubr.f32.gmra.mrb[0].mxu0 %v4159
          %v4344 = vpop.f32.mrb[0].mxu0
          %v4345 = vadd.f32 0.0, %v4344
          %v4346 = vpop.f32.mrb[0].mxu0
          %v4347 = vadd.f32 0.0, %v4346
          %4348 = vmatprep.mubr.f32.mxu0 0.0
          %4349 = vmatmul.mubr.f32.gmra.mrb[0].mxu0 %v4162
          %v4350 = vpop.f32.mrb[0].mxu0
          %v4351 = vadd.f32 0.0, %v4350
          %v4352 = vpop.f32.mrb[0].mxu0
          %v4353 = vadd.f32 0.0, %v4352
          %4354 = vmatprep.mubr.f32.mxu0 0.0
          %4355 = vmatmul.mubr.f32.gmra.mrb[0].mxu0 %v4165
          %v4356 = vpop.f32.mrb[0].mxu0
          %v4357 = vadd.f32 0.0, %v4356
          %v4358 = vpop.f32.mrb[0].mxu0
          %v4359 = vadd.f32 0.0, %v4358
          %4360 = vmatprep.mubr.f32.mxu0 0.0
          %4361 = vmatmul.mubr.f32.gmra.mrb[0].mxu0 %v4168
          %v4362 = vpop.f32.mrb[0].mxu0
          %v4363 = vadd.f32 0.0, %v4362
          %v4364 = vpop.f32.mrb[0].mxu0
          %v4365 = vadd.f32 0.0, %v4364
          %4366 = vmatprep.mubr.f32.mxu0 0.0
          %4367 = vmatmul.mubr.f32.gmra.mrb[0].mxu0 %v4171
          %v4368 = vpop.f32.mrb[0].mxu0
          %v4369 = vadd.f32 0.0, %v4368
          %v4370 = vpop.f32.mrb[0].mxu0
          %v4371 = vadd.f32 0.0, %v4370
          %4372 = vmatprep.mubr.f32.mxu0 0.0
          %4373 = vmatmul.mubr.f32.gmra.mrb[0].mxu0 %v4174
          %v4374 = vpop.f32.mrb[0].mxu0
          %v4375 = vadd.f32 0.0, %v4374
          %v4376 = vpop.f32.mrb[0].mxu0
          %v4377 = vadd.f32 0.0, %v4376
          %4378 = vmatprep.mubr.f32.mxu0 0.0
          %4379 = vmatmul.mubr.f32.gmra.mrb[0].mxu0 %v4177
          %v4380 = vpop.f32.mrb[0].mxu0
          %v4381 = vadd.f32 0.0, %v4380
          %v4382 = vpop.f32.mrb[0].mxu0
          %v4383 = vadd.f32 0.0, %v4382
          %4384 = vmatprep.mubr.f32.mxu0 0.0
          %4385 = vmatmul.mubr.f32.gmra.mrb[0].mxu0 %v4180
          %v4386 = vpop.f32.mrb[0].mxu0
          %v4387 = vadd.f32 0.0, %v4386
          %v4388 = vpop.f32.mrb[0].mxu0
          %v4389 = vadd.f32 0.0, %v4388
          %4390 = vmatprep.mubr.f32.mxu0 0.0
          %4391 = vmatmul.mubr.f32.gmra.mrb[0].mxu0 %v4183
          %v4392 = vpop.f32.mrb[0].mxu0
          %v4393 = vadd.f32 0.0, %v4392
          %v4394 = vpop.f32.mrb[0].mxu0
          %v4395 = vadd.f32 0.0, %v4394
          %4396 = vmatprep.mubr.f32.mxu0 0.0
          %4397 = vmatmul.mubr.f32.gmra.mrb[0].mxu0 %v4186
          %v4398 = vpop.f32.mrb[0].mxu0
          %v4399 = vadd.f32 0.0, %v4398
          %v4400 = vpop.f32.mrb[0].mxu0
          %v4401 = vadd.f32 0.0, %v4400
          %4402 = vmatprep.mubr.f32.mxu0 0.0
          %4403 = vmatmul.mubr.f32.gmra.mrb[0].mxu0 %v4189
          %v4404 = vpop.f32.mrb[0].mxu0
          %v4405 = vadd.f32 0.0, %v4404
          %v4406 = vpop.f32.mrb[0].mxu0
          %v4407 = vadd.f32 0.0, %v4406
          %4408 = vmatprep.mubr.f32.mxu0 0.0
          %4409 = vmatmul.mubr.f32.gmra.mrb[0].mxu0 %v4192
          %v4410 = vpop.f32.mrb[0].mxu0
          %v4411 = vadd.f32 0.0, %v4410
          %v4412 = vpop.f32.mrb[0].mxu0
          %v4413 = vadd.f32 0.0, %v4412
          %4414 = vmatprep.mubr.f32.mxu0 0.0
          %4415 = vmatmul.mubr.f32.gmra.mrb[0].mxu0 %v4195
          %v4416 = vpop.f32.mrb[0].mxu0
          %v4417 = vadd.f32 0.0, %v4416
          %v4418 = vpop.f32.mrb[0].mxu0
          %v4419 = vadd.f32 0.0, %v4418
          %4420 = vmatprep.mubr.f32.mxu0 0.0
          %4421 = vmatmul.mubr.f32.gmra.mrb[0].mxu0 %v4198
          %v4422 = vpop.f32.mrb[0].mxu0
          %v4423 = vadd.f32 0.0, %v4422
          %v4424 = vpop.f32.mrb[0].mxu0
          %v4425 = vadd.f32 0.0, %v4424
          %4426 = vmatprep.mubr.f32.mxu0 0.0
          %4427 = vmatmul.mubr.f32.gmra.mrb[0].mxu0 %v4201
          %v4428 = vpop.f32.mrb[0].mxu0
          %v4429 = vadd.f32 0.0, %v4428
          %v4430 = vpop.f32.mrb[0].mxu0
          %v4431 = vadd.f32 0.0, %v4430
          %4432 = vmatprep.mubr.f32.mxu0 0.0
          %4433 = vmatmul.mubr.f32.gmra.mrb[0].mxu0 %v4204
          %v4434 = vpop.f32.mrb[0].mxu0
          %v4435 = vadd.f32 0.0, %v4434
          %v4436 = vpop.f32.mrb[0].mxu0
          %v4437 = vadd.f32 0.0, %v4436
          %4438 = vdwg.mxu0
          %4439 = vst [vmem:[%s863] sm:$0xff] %v4273
          %vm4440 = vcmask 785408
          %4441 = vst.msk [vmem:[%s863 + $0x8] sm:$0xff] %vm4440, %v4275
          %4442 = vst [vmem:[%s863 + $0x10] sm:$0xff] %v4279
          %4443 = vst.msk [vmem:[%s863 + $0x18] sm:$0xff] %vm4440, %v4281
          %4444 = vst [vmem:[%s863 + $0x20] sm:$0xff] %v4285
          %4445 = vst.msk [vmem:[%s863 + $0x28] sm:$0xff] %vm4440, %v4287
          %4446 = vst [vmem:[%s863 + $0x30] sm:$0xff] %v4291
          %4447 = vst.msk [vmem:[%s863 + $0x38] sm:$0xff] %vm4440, %v4293
          %4448 = vst [vmem:[%s863 + $0x40] sm:$0xff] %v4297
          %4449 = vst.msk [vmem:[%s863 + $0x48] sm:$0xff] %vm4440, %v4299
          %4450 = vst [vmem:[%s863 + $0x50] sm:$0xff] %v4303
          %4451 = vst.msk [vmem:[%s863 + $0x58] sm:$0xff] %vm4440, %v4305
          %4452 = vst [vmem:[%s863 + $0x60] sm:$0xff] %v4309
          %4453 = vst.msk [vmem:[%s863 + $0x68] sm:$0xff] %vm4440, %v4311
          %4454 = vst [vmem:[%s863 + $0x70] sm:$0xff] %v4315
          %4455 = vst.msk [vmem:[%s863 + $0x78] sm:$0xff] %vm4440, %v4317
          %4456 = vst [vmem:[%s863 + $0x80] sm:$0xff] %v4321
          %4457 = vst.msk [vmem:[%s863 + $0x88] sm:$0xff] %vm4440, %v4323
          %4458 = vst [vmem:[%s863 + $0x90] sm:$0xff] %v4327
          %4459 = vst.msk [vmem:[%s863 + $0x98] sm:$0xff] %vm4440, %v4329
          %4460 = vst [vmem:[%s863 + $0xa0] sm:$0xff] %v4333
          %4461 = vst.msk [vmem:[%s863 + $0xa8] sm:$0xff] %vm4440, %v4335
          %4462 = vst [vmem:[%s863 + $0xb0] sm:$0xff] %v4339
          %4463 = vst.msk [vmem:[%s863 + $0xb8] sm:$0xff] %vm4440, %v4341
          %4464 = vst [vmem:[%s863 + $0xc0] sm:$0xff] %v4345
          %4465 = vst.msk [vmem:[%s863 + $0xc8] sm:$0xff] %vm4440, %v4347
          %4466 = vst [vmem:[%s863 + $0xd0] sm:$0xff] %v4351
          %4467 = vst.msk [vmem:[%s863 + $0xd8] sm:$0xff] %vm4440, %v4353
          %4468 = vst [vmem:[%s863 + $0xe0] sm:$0xff] %v4357
          %4469 = vst.msk [vmem:[%s863 + $0xe8] sm:$0xff] %vm4440, %v4359
          %4470 = vst [vmem:[%s863 + $0xf0] sm:$0xff] %v4363
          %4471 = vst.msk [vmem:[%s863 + $0xf8] sm:$0xff] %vm4440, %v4365
          %4472 = vst [vmem:[%s863 + $0x100] sm:$0xff] %v4369
          %4473 = vst.msk [vmem:[%s863 + $0x108] sm:$0xff] %vm4440, %v4371
          %4474 = vst [vmem:[%s863 + $0x110] sm:$0xff] %v4375
          %4475 = vst.msk [vmem:[%s863 + $0x118] sm:$0xff] %vm4440, %v4377
          %4476 = vst [vmem:[%s863 + $0x120] sm:$0xff] %v4381
          %4477 = vst.msk [vmem:[%s863 + $0x128] sm:$0xff] %vm4440, %v4383
          %4478 = vst [vmem:[%s863 + $0x130] sm:$0xff] %v4387
          %4479 = vst.msk [vmem:[%s863 + $0x138] sm:$0xff] %vm4440, %v4389
          %4480 = vst [vmem:[%s863 + $0x140] sm:$0xff] %v4393
          %4481 = vst.msk [vmem:[%s863 + $0x148] sm:$0xff] %vm4440, %v4395
          %4482 = vst [vmem:[%s863 + $0x150] sm:$0xff] %v4399
          %4483 = vst.msk [vmem:[%s863 + $0x158] sm:$0xff] %vm4440, %v4401
          %4484 = vst [vmem:[%s863 + $0x160] sm:$0xff] %v4405
          %4485 = vst.msk [vmem:[%s863 + $0x168] sm:$0xff] %vm4440, %v4407
          %4486 = vst [vmem:[%s863 + $0x170] sm:$0xff] %v4411
          %4487 = vst.msk [vmem:[%s863 + $0x178] sm:$0xff] %vm4440, %v4413
          %4488 = vst [vmem:[%s863 + $0x180] sm:$0xff] %v4417
          %4489 = vst.msk [vmem:[%s863 + $0x188] sm:$0xff] %vm4440, %v4419
          %4490 = vst [vmem:[%s863 + $0x190] sm:$0xff] %v4423
          %4491 = vst.msk [vmem:[%s863 + $0x198] sm:$0xff] %vm4440, %v4425
          %4492 = vst [vmem:[%s863 + $0x1a0] sm:$0xff] %v4429
          %4493 = vst.msk [vmem:[%s863 + $0x1a8] sm:$0xff] %vm4440, %v4431
          %4494 = vst [vmem:[%s863 + $0x1b0] sm:$0xff] %v4435
          %4495 = vst.msk [vmem:[%s863 + $0x1b8] sm:$0xff] %vm4440, %v4437
          %v4496 = vlaneseq
          %v4497 = vshrl.u32 %v4496, 7
          %v4498 = vsub.s32 1, %v4497
          %v4499 = vrot.slane %v4045, %v4498
          %v4500 = vmul.f32 %v4046, %v4499
          %v4501 = vmul.f32 %v4047, %v4499
          %v4502 = vmul.f32 %v4048, %v4499
          %v4503 = vmul.f32 %v4049, %v4499
          %v4504 = vmul.f32 %v4050, %v4499
          %v4505 = vmul.f32 %v4051, %v4499
          %v4506 = vmul.f32 %v4052, %v4499
          %v4507 = vmul.f32 %v4053, %v4499
          %v4508 = vmul.f32 %v4054, %v4499
          %v4509 = vmul.f32 %v4055, %v4499
          %v4510 = vmul.f32 %v4056, %v4499
          %v4511 = vmul.f32 %v4057, %v4499
          %v4512 = vmul.f32 %v4058, %v4499
          %v4513 = vmul.f32 %v4059, %v4499
          %v4514 = vmul.f32 %v4060, %v4499
          %v4515 = vmul.f32 %v4061, %v4499
          %v4516 = vmul.f32 %v4062, %v4499
          %v4517 = vmul.f32 %v4063, %v4499
          %v4518 = vmul.f32 %v4064, %v4499
          %v4519 = vmul.f32 %v4065, %v4499
          %v4520 = vmul.f32 %v4066, %v4499
          %v4521 = vmul.f32 %v4067, %v4499
          %v4522 = vmul.f32 %v4068, %v4499
          %v4523 = vmul.f32 %v4069, %v4499
          %v4524 = vmul.f32 %v4070, %v4499
          %v4525 = vmul.f32 %v4071, %v4499
          %v4526 = vmul.f32 %v4072, %v4499
          %v4527 = vmul.f32 %v4073, %v4499
          %v4529 = vsel %vm1547, %v4500, 0
          %v4532 = vsel %vm1547, %v4501, 0
          %v4535 = vsel %vm1547, %v4502, 0
          %v4538 = vsel %vm1547, %v4503, 0
          %v4541 = vsel %vm1547, %v4504, 0
          %v4544 = vsel %vm1547, %v4505, 0
          %v4547 = vsel %vm1547, %v4506, 0
          %v4550 = vsel %vm1547, %v4507, 0
          %v4553 = vsel %vm1547, %v4508, 0
          %v4556 = vsel %vm1547, %v4509, 0
          %v4559 = vsel %vm1547, %v4510, 0
          %v4562 = vsel %vm1547, %v4511, 0
          %v4565 = vsel %vm1547, %v4512, 0
          %v4568 = vsel %vm1547, %v4513, 0
          %v4571 = vsel %vm1547, %v4514, 0
          %v4574 = vsel %vm1547, %v4515, 0
          %v4577 = vsel %vm1547, %v4516, 0
          %v4580 = vsel %vm1547, %v4517, 0
          %v4583 = vsel %vm1547, %v4518, 0
          %v4586 = vsel %vm1547, %v4519, 0
          %v4589 = vsel %vm1547, %v4520, 0
          %v4592 = vsel %vm1547, %v4521, 0
          %v4595 = vsel %vm1547, %v4522, 0
          %v4598 = vsel %vm1547, %v4523, 0
          %v4601 = vsel %vm1547, %v4524, 0
          %v4604 = vsel %vm1547, %v4525, 0
          %v4607 = vsel %vm1547, %v4526, 0
          %v4610 = vsel %vm1547, %v4527, 0
          %4612 = vmatprep.subr.mxu0 %v4075
          %4613 = vmatpush1.msra.mxu0 %v4074
          %4614 = vmatprep.subr.mxu0 %v4077
          %4615 = vmatpush1.msra.mxu0 %v4076
          %4616 = vmatprep.subr.mxu0 %v4079
          %4617 = vmatpush1.msra.mxu0 %v4078
          %4618 = vmatprep.subr.mxu0 %v4081
          %4619 = vmatpush1.msra.mxu0 %v4080
          %4620 = vmatprep.subr.mxu0 %v4083
          %4621 = vmatpush1.msra.mxu0 %v4082
          %4622 = vmatprep.subr.mxu0 %v4085
          %4623 = vmatpush1.msra.mxu0 %v4084
          %4624 = vmatprep.subr.mxu0 %v4087
          %4625 = vmatpush1.msra.mxu0 %v4086
          %4626 = vmatprep.subr.mxu0 %v4089
          %4627 = vmatpush1.msra.mxu0 %v4088
          %4628 = vmatprep.subr.mxu0 0.0
          %4629 = vmatpush1.msra.mxu0 0.0
          %4630 = vmatprep.subr.mxu0 0.0
          %4631 = vmatpush1.msra.mxu0 0.0
          %4632 = vmatprep.subr.mxu0 0.0
          %4633 = vmatpush1.msra.mxu0 0.0
          %4634 = vmatprep.subr.mxu0 0.0
          %4635 = vmatpush1.msra.mxu0 0.0
          %4636 = vmatprep.subr.mxu0 0.0
          %4637 = vmatpush1.msra.mxu0 0.0
          %4638 = vmatprep.subr.mxu0 0.0
          %4639 = vmatpush1.msra.mxu0 0.0
          %4640 = vmatprep.subr.mxu0 0.0
          %4641 = vmatpush1.msra.mxu0 0.0
          %4642 = vmatprep.subr.mxu0 0.0
          %4643 = vmatpush1.msra.mxu0 0.0
          %4644 = vmatprep.subr.mxu0 0.0
          %4645 = vmatpush1.msra.mxu0 0.0
          %4646 = vmatprep.subr.mxu0 0.0
          %4647 = vmatpush1.msra.mxu0 0.0
          %4648 = vmatprep.subr.mxu0 0.0
          %4649 = vmatpush1.msra.mxu0 0.0
          %4650 = vmatprep.subr.mxu0 0.0
          %4651 = vmatpush1.msra.mxu0 0.0
          %4652 = vmatprep.subr.mxu0 0.0
          %4653 = vmatpush1.msra.mxu0 0.0
          %4654 = vmatprep.subr.mxu0 0.0
          %4655 = vmatpush1.msra.mxu0 0.0
          %4656 = vmatprep.subr.mxu0 0.0
          %4657 = vmatpush1.msra.mxu0 0.0
          %4658 = vmatprep.subr.mxu0 0.0
          %4659 = vmatpush1.msra.mxu0 0.0
          %4660 = vmatprep.subr.mxu0 0.0
          %4661 = vmatpush1.msra.mxu0 0.0
          %4662 = vmatprep.subr.mxu0 0.0
          %4663 = vmatpush1.msra.mxu0 0.0
          %4664 = vmatprep.subr.mxu0 0.0
          %4665 = vmatpush1.msra.mxu0 0.0
          %4666 = vmatprep.subr.mxu0 0.0
          %4667 = vmatpush1.msra.mxu0 0.0
          %4668 = vmatprep.subr.mxu0 0.0
          %4669 = vmatpush1.msra.mxu0 0.0
          %4670 = vmatprep.subr.mxu0 0.0
          %4671 = vmatpush1.msra.mxu0 0.0
          %4672 = vmatprep.subr.mxu0 0.0
          %4673 = vmatpush1.msra.mxu0 0.0
          %4674 = vmatprep.subr.mxu0 0.0
          %4675 = vmatpush1.msra.mxu0 0.0
          %4676 = vmatprep.mubr.f32.mxu0 0.0
          %4677 = vmatmul.mubr.f32.gmra.mrb[0].mxu0 %v4529
          %v4678 = vpop.f32.mrb[0].mxu0
          %v4679 = vadd.f32 0.0, %v4678
          %v4680 = vpop.f32.mrb[0].mxu0
          %v4681 = vadd.f32 0.0, %v4680
          %4682 = vmatprep.mubr.f32.mxu0 0.0
          %4683 = vmatmul.mubr.f32.gmra.mrb[0].mxu0 %v4532
          %v4684 = vpop.f32.mrb[0].mxu0
          %v4685 = vadd.f32 0.0, %v4684
          %v4686 = vpop.f32.mrb[0].mxu0
          %v4687 = vadd.f32 0.0, %v4686
          %4688 = vmatprep.mubr.f32.mxu0 0.0
          %4689 = vmatmul.mubr.f32.gmra.mrb[0].mxu0 %v4535
          %v4690 = vpop.f32.mrb[0].mxu0
          %v4691 = vadd.f32 0.0, %v4690
          %v4692 = vpop.f32.mrb[0].mxu0
          %v4693 = vadd.f32 0.0, %v4692
          %4694 = vmatprep.mubr.f32.mxu0 0.0
          %4695 = vmatmul.mubr.f32.gmra.mrb[0].mxu0 %v4538
          %v4696 = vpop.f32.mrb[0].mxu0
          %v4697 = vadd.f32 0.0, %v4696
          %v4698 = vpop.f32.mrb[0].mxu0
          %v4699 = vadd.f32 0.0, %v4698
          %4700 = vmatprep.mubr.f32.mxu0 0.0
          %4701 = vmatmul.mubr.f32.gmra.mrb[0].mxu0 %v4541
          %v4702 = vpop.f32.mrb[0].mxu0
          %v4703 = vadd.f32 0.0, %v4702
          %v4704 = vpop.f32.mrb[0].mxu0
          %v4705 = vadd.f32 0.0, %v4704
          %4706 = vmatprep.mubr.f32.mxu0 0.0
          %4707 = vmatmul.mubr.f32.gmra.mrb[0].mxu0 %v4544
          %v4708 = vpop.f32.mrb[0].mxu0
          %v4709 = vadd.f32 0.0, %v4708
          %v4710 = vpop.f32.mrb[0].mxu0
          %v4711 = vadd.f32 0.0, %v4710
          %4712 = vmatprep.mubr.f32.mxu0 0.0
          %4713 = vmatmul.mubr.f32.gmra.mrb[0].mxu0 %v4547
          %v4714 = vpop.f32.mrb[0].mxu0
          %v4715 = vadd.f32 0.0, %v4714
          %v4716 = vpop.f32.mrb[0].mxu0
          %v4717 = vadd.f32 0.0, %v4716
          %4718 = vmatprep.mubr.f32.mxu0 0.0
          %4719 = vmatmul.mubr.f32.gmra.mrb[0].mxu0 %v4550
          %v4720 = vpop.f32.mrb[0].mxu0
          %v4721 = vadd.f32 0.0, %v4720
          %v4722 = vpop.f32.mrb[0].mxu0
          %v4723 = vadd.f32 0.0, %v4722
          %4724 = vmatprep.mubr.f32.mxu0 0.0
          %4725 = vmatmul.mubr.f32.gmra.mrb[0].mxu0 %v4553
          %v4726 = vpop.f32.mrb[0].mxu0
          %v4727 = vadd.f32 0.0, %v4726
          %v4728 = vpop.f32.mrb[0].mxu0
          %v4729 = vadd.f32 0.0, %v4728
          %4730 = vmatprep.mubr.f32.mxu0 0.0
          %4731 = vmatmul.mubr.f32.gmra.mrb[0].mxu0 %v4556
          %v4732 = vpop.f32.mrb[0].mxu0
          %v4733 = vadd.f32 0.0, %v4732
          %v4734 = vpop.f32.mrb[0].mxu0
          %v4735 = vadd.f32 0.0, %v4734
          %4736 = vmatprep.mubr.f32.mxu0 0.0
          %4737 = vmatmul.mubr.f32.gmra.mrb[0].mxu0 %v4559
          %v4738 = vpop.f32.mrb[0].mxu0
          %v4739 = vadd.f32 0.0, %v4738
          %v4740 = vpop.f32.mrb[0].mxu0
          %v4741 = vadd.f32 0.0, %v4740
          %4742 = vmatprep.mubr.f32.mxu0 0.0
          %4743 = vmatmul.mubr.f32.gmra.mrb[0].mxu0 %v4562
          %v4744 = vpop.f32.mrb[0].mxu0
          %v4745 = vadd.f32 0.0, %v4744
          %v4746 = vpop.f32.mrb[0].mxu0
          %v4747 = vadd.f32 0.0, %v4746
          %4748 = vmatprep.mubr.f32.mxu0 0.0
          %4749 = vmatmul.mubr.f32.gmra.mrb[0].mxu0 %v4565
          %v4750 = vpop.f32.mrb[0].mxu0
          %v4751 = vadd.f32 0.0, %v4750
          %v4752 = vpop.f32.mrb[0].mxu0
          %v4753 = vadd.f32 0.0, %v4752
          %4754 = vmatprep.mubr.f32.mxu0 0.0
          %4755 = vmatmul.mubr.f32.gmra.mrb[0].mxu0 %v4568
          %v4756 = vpop.f32.mrb[0].mxu0
          %v4757 = vadd.f32 0.0, %v4756
          %v4758 = vpop.f32.mrb[0].mxu0
          %v4759 = vadd.f32 0.0, %v4758
          %4760 = vmatprep.mubr.f32.mxu0 0.0
          %4761 = vmatmul.mubr.f32.gmra.mrb[0].mxu0 %v4571
          %v4762 = vpop.f32.mrb[0].mxu0
          %v4763 = vadd.f32 0.0, %v4762
          %v4764 = vpop.f32.mrb[0].mxu0
          %v4765 = vadd.f32 0.0, %v4764
          %4766 = vmatprep.mubr.f32.mxu0 0.0
          %4767 = vmatmul.mubr.f32.gmra.mrb[0].mxu0 %v4574
          %v4768 = vpop.f32.mrb[0].mxu0
          %v4769 = vadd.f32 0.0, %v4768
          %v4770 = vpop.f32.mrb[0].mxu0
          %v4771 = vadd.f32 0.0, %v4770
          %4772 = vmatprep.mubr.f32.mxu0 0.0
          %4773 = vmatmul.mubr.f32.gmra.mrb[0].mxu0 %v4577
          %v4774 = vpop.f32.mrb[0].mxu0
          %v4775 = vadd.f32 0.0, %v4774
          %v4776 = vpop.f32.mrb[0].mxu0
          %v4777 = vadd.f32 0.0, %v4776
          %4778 = vmatprep.mubr.f32.mxu0 0.0
          %4779 = vmatmul.mubr.f32.gmra.mrb[0].mxu0 %v4580
          %v4780 = vpop.f32.mrb[0].mxu0
          %v4781 = vadd.f32 0.0, %v4780
          %v4782 = vpop.f32.mrb[0].mxu0
          %v4783 = vadd.f32 0.0, %v4782
          %4784 = vmatprep.mubr.f32.mxu0 0.0
          %4785 = vmatmul.mubr.f32.gmra.mrb[0].mxu0 %v4583
          %v4786 = vpop.f32.mrb[0].mxu0
          %v4787 = vadd.f32 0.0, %v4786
          %v4788 = vpop.f32.mrb[0].mxu0
          %v4789 = vadd.f32 0.0, %v4788
          %4790 = vmatprep.mubr.f32.mxu0 0.0
          %4791 = vmatmul.mubr.f32.gmra.mrb[0].mxu0 %v4586
          %v4792 = vpop.f32.mrb[0].mxu0
          %v4793 = vadd.f32 0.0, %v4792
          %v4794 = vpop.f32.mrb[0].mxu0
          %v4795 = vadd.f32 0.0, %v4794
          %4796 = vmatprep.mubr.f32.mxu0 0.0
          %4797 = vmatmul.mubr.f32.gmra.mrb[0].mxu0 %v4589
          %v4798 = vpop.f32.mrb[0].mxu0
          %v4799 = vadd.f32 0.0, %v4798
          %v4800 = vpop.f32.mrb[0].mxu0
          %v4801 = vadd.f32 0.0, %v4800
          %4802 = vmatprep.mubr.f32.mxu0 0.0
          %4803 = vmatmul.mubr.f32.gmra.mrb[0].mxu0 %v4592
          %v4804 = vpop.f32.mrb[0].mxu0
          %v4805 = vadd.f32 0.0, %v4804
          %v4806 = vpop.f32.mrb[0].mxu0
          %v4807 = vadd.f32 0.0, %v4806
          %4808 = vmatprep.mubr.f32.mxu0 0.0
          %4809 = vmatmul.mubr.f32.gmra.mrb[0].mxu0 %v4595
          %v4810 = vpop.f32.mrb[0].mxu0
          %v4811 = vadd.f32 0.0, %v4810
          %v4812 = vpop.f32.mrb[0].mxu0
          %v4813 = vadd.f32 0.0, %v4812
          %4814 = vmatprep.mubr.f32.mxu0 0.0
          %4815 = vmatmul.mubr.f32.gmra.mrb[0].mxu0 %v4598
          %v4816 = vpop.f32.mrb[0].mxu0
          %v4817 = vadd.f32 0.0, %v4816
          %v4818 = vpop.f32.mrb[0].mxu0
          %v4819 = vadd.f32 0.0, %v4818
          %4820 = vmatprep.mubr.f32.mxu0 0.0
          %4821 = vmatmul.mubr.f32.gmra.mrb[0].mxu0 %v4601
          %v4822 = vpop.f32.mrb[0].mxu0
          %v4823 = vadd.f32 0.0, %v4822
          %v4824 = vpop.f32.mrb[0].mxu0
          %v4825 = vadd.f32 0.0, %v4824
          %4826 = vmatprep.mubr.f32.mxu0 0.0
          %4827 = vmatmul.mubr.f32.gmra.mrb[0].mxu0 %v4604
          %v4828 = vpop.f32.mrb[0].mxu0
          %v4829 = vadd.f32 0.0, %v4828
          %v4830 = vpop.f32.mrb[0].mxu0
          %v4831 = vadd.f32 0.0, %v4830
          %4832 = vmatprep.mubr.f32.mxu0 0.0
          %4833 = vmatmul.mubr.f32.gmra.mrb[0].mxu0 %v4607
          %v4834 = vpop.f32.mrb[0].mxu0
          %v4835 = vadd.f32 0.0, %v4834
          %v4836 = vpop.f32.mrb[0].mxu0
          %v4837 = vadd.f32 0.0, %v4836
          %4838 = vmatprep.mubr.f32.mxu0 0.0
          %4839 = vmatmul.mubr.f32.gmra.mrb[0].mxu0 %v4610
          %v4840 = vpop.f32.mrb[0].mxu0
          %v4841 = vadd.f32 0.0, %v4840
          %v4842 = vpop.f32.mrb[0].mxu0
          %v4843 = vadd.f32 0.0, %v4842
          %4844 = vdwg.mxu0
          %s4845 = scalar_lea.vmem %s863, 448 [#allocation3]
          %4846 = vst [vmem:[%s4845] sm:$0xff] %v4679
          %4847 = vst.msk [vmem:[%s4845 + $0x8] sm:$0xff] %vm4440, %v4681
          %4848 = vst [vmem:[%s4845 + $0x10] sm:$0xff] %v4685
          %4849 = vst.msk [vmem:[%s4845 + $0x18] sm:$0xff] %vm4440, %v4687
          %4850 = vst [vmem:[%s4845 + $0x20] sm:$0xff] %v4691
          %4851 = vst.msk [vmem:[%s4845 + $0x28] sm:$0xff] %vm4440, %v4693
          %4852 = vst [vmem:[%s4845 + $0x30] sm:$0xff] %v4697
          %4853 = vst.msk [vmem:[%s4845 + $0x38] sm:$0xff] %vm4440, %v4699
          %4854 = vst [vmem:[%s4845 + $0x40] sm:$0xff] %v4703
          %4855 = vst.msk [vmem:[%s4845 + $0x48] sm:$0xff] %vm4440, %v4705
          %4856 = vst [vmem:[%s4845 + $0x50] sm:$0xff] %v4709
          %4857 = vst.msk [vmem:[%s4845 + $0x58] sm:$0xff] %vm4440, %v4711
          %4858 = vst [vmem:[%s4845 + $0x60] sm:$0xff] %v4715
          %4859 = vst.msk [vmem:[%s4845 + $0x68] sm:$0xff] %vm4440, %v4717
          %4860 = vst [vmem:[%s4845 + $0x70] sm:$0xff] %v4721
          %4861 = vst.msk [vmem:[%s4845 + $0x78] sm:$0xff] %vm4440, %v4723
          %4862 = vst [vmem:[%s4845 + $0x80] sm:$0xff] %v4727
          %4863 = vst.msk [vmem:[%s4845 + $0x88] sm:$0xff] %vm4440, %v4729
          %4864 = vst [vmem:[%s4845 + $0x90] sm:$0xff] %v4733
          %4865 = vst.msk [vmem:[%s4845 + $0x98] sm:$0xff] %vm4440, %v4735
          %4866 = vst [vmem:[%s4845 + $0xa0] sm:$0xff] %v4739
          %4867 = vst.msk [vmem:[%s4845 + $0xa8] sm:$0xff] %vm4440, %v4741
          %4868 = vst [vmem:[%s4845 + $0xb0] sm:$0xff] %v4745
          %4869 = vst.msk [vmem:[%s4845 + $0xb8] sm:$0xff] %vm4440, %v4747
          %4870 = vst [vmem:[%s4845 + $0xc0] sm:$0xff] %v4751
          %4871 = vst.msk [vmem:[%s4845 + $0xc8] sm:$0xff] %vm4440, %v4753
          %4872 = vst [vmem:[%s4845 + $0xd0] sm:$0xff] %v4757
          %4873 = vst.msk [vmem:[%s4845 + $0xd8] sm:$0xff] %vm4440, %v4759
          %4874 = vst [vmem:[%s4845 + $0xe0] sm:$0xff] %v4763
          %4875 = vst.msk [vmem:[%s4845 + $0xe8] sm:$0xff] %vm4440, %v4765
          %4876 = vst [vmem:[%s4845 + $0xf0] sm:$0xff] %v4769
          %4877 = vst.msk [vmem:[%s4845 + $0xf8] sm:$0xff] %vm4440, %v4771
          %4878 = vst [vmem:[%s4845 + $0x100] sm:$0xff] %v4775
          %4879 = vst.msk [vmem:[%s4845 + $0x108] sm:$0xff] %vm4440, %v4777
          %4880 = vst [vmem:[%s4845 + $0x110] sm:$0xff] %v4781
          %4881 = vst.msk [vmem:[%s4845 + $0x118] sm:$0xff] %vm4440, %v4783
          %4882 = vst [vmem:[%s4845 + $0x120] sm:$0xff] %v4787
          %4883 = vst.msk [vmem:[%s4845 + $0x128] sm:$0xff] %vm4440, %v4789
          %4884 = vst [vmem:[%s4845 + $0x130] sm:$0xff] %v4793
          %4885 = vst.msk [vmem:[%s4845 + $0x138] sm:$0xff] %vm4440, %v4795
          %4886 = vst [vmem:[%s4845 + $0x140] sm:$0xff] %v4799
          %4887 = vst.msk [vmem:[%s4845 + $0x148] sm:$0xff] %vm4440, %v4801
          %4888 = vst [vmem:[%s4845 + $0x150] sm:$0xff] %v4805
          %4889 = vst.msk [vmem:[%s4845 + $0x158] sm:$0xff] %vm4440, %v4807
          %4890 = vst [vmem:[%s4845 + $0x160] sm:$0xff] %v4811
          %4891 = vst.msk [vmem:[%s4845 + $0x168] sm:$0xff] %vm4440, %v4813
          %4892 = vst [vmem:[%s4845 + $0x170] sm:$0xff] %v4817
          %4893 = vst.msk [vmem:[%s4845 + $0x178] sm:$0xff] %vm4440, %v4819
          %4894 = vst [vmem:[%s4845 + $0x180] sm:$0xff] %v4823
          %4895 = vst.msk [vmem:[%s4845 + $0x188] sm:$0xff] %vm4440, %v4825
          %4896 = vst [vmem:[%s4845 + $0x190] sm:$0xff] %v4829
          %4897 = vst.msk [vmem:[%s4845 + $0x198] sm:$0xff] %vm4440, %v4831
          %4898 = vst [vmem:[%s4845 + $0x1a0] sm:$0xff] %v4835
          %4899 = vst.msk [vmem:[%s4845 + $0x1a8] sm:$0xff] %vm4440, %v4837
          %4900 = vst [vmem:[%s4845 + $0x1b0] sm:$0xff] %v4841
          %4901 = vst.msk [vmem:[%s4845 + $0x1b8] sm:$0xff] %vm4440, %v4843
          %v4902 = vlaneseq
          %v4903 = vshrl.u32 %v4902, 7
          %v4904 = vsub.s32 2, %v4903
          %v4905 = vrot.slane %v4045, %v4904
          %v4906 = vmul.f32 %v4046, %v4905
          %v4907 = vmul.f32 %v4047, %v4905
          %v4908 = vmul.f32 %v4048, %v4905
          %v4909 = vmul.f32 %v4049, %v4905
          %v4910 = vmul.f32 %v4050, %v4905
          %v4911 = vmul.f32 %v4051, %v4905
          %v4912 = vmul.f32 %v4052, %v4905
          %v4913 = vmul.f32 %v4053, %v4905
          %v4914 = vmul.f32 %v4054, %v4905
          %v4915 = vmul.f32 %v4055, %v4905
          %v4916 = vmul.f32 %v4056, %v4905
          %v4917 = vmul.f32 %v4057, %v4905
          %v4918 = vmul.f32 %v4058, %v4905
          %v4919 = vmul.f32 %v4059, %v4905
          %v4920 = vmul.f32 %v4060, %v4905
          %v4921 = vmul.f32 %v4061, %v4905
          %v4922 = vmul.f32 %v4062, %v4905
          %v4923 = vmul.f32 %v4063, %v4905
          %v4924 = vmul.f32 %v4064, %v4905
          %v4925 = vmul.f32 %v4065, %v4905
          %v4926 = vmul.f32 %v4066, %v4905
          %v4927 = vmul.f32 %v4067, %v4905
          %v4928 = vmul.f32 %v4068, %v4905
          %v4929 = vmul.f32 %v4069, %v4905
          %v4930 = vmul.f32 %v4070, %v4905
          %v4931 = vmul.f32 %v4071, %v4905
          %v4932 = vmul.f32 %v4072, %v4905
          %v4933 = vmul.f32 %v4073, %v4905
          %v4935 = vsel %vm1547, %v4906, 0
          %v4938 = vsel %vm1547, %v4907, 0
          %v4941 = vsel %vm1547, %v4908, 0
          %v4944 = vsel %vm1547, %v4909, 0
          %v4947 = vsel %vm1547, %v4910, 0
          %v4950 = vsel %vm1547, %v4911, 0
          %v4953 = vsel %vm1547, %v4912, 0
          %v4956 = vsel %vm1547, %v4913, 0
          %v4959 = vsel %vm1547, %v4914, 0
          %v4962 = vsel %vm1547, %v4915, 0
          %v4965 = vsel %vm1547, %v4916, 0
          %v4968 = vsel %vm1547, %v4917, 0
          %v4971 = vsel %vm1547, %v4918, 0
          %v4974 = vsel %vm1547, %v4919, 0
          %v4977 = vsel %vm1547, %v4920, 0
          %v4980 = vsel %vm1547, %v4921, 0
          %v4983 = vsel %vm1547, %v4922, 0
          %v4986 = vsel %vm1547, %v4923, 0
          %v4989 = vsel %vm1547, %v4924, 0
          %v4992 = vsel %vm1547, %v4925, 0
          %v4995 = vsel %vm1547, %v4926, 0
          %v4998 = vsel %vm1547, %v4927, 0
          %v5001 = vsel %vm1547, %v4928, 0
          %v5004 = vsel %vm1547, %v4929, 0
          %v5007 = vsel %vm1547, %v4930, 0
          %v5010 = vsel %vm1547, %v4931, 0
          %v5013 = vsel %vm1547, %v4932, 0
          %v5016 = vsel %vm1547, %v4933, 0
          %5018 = vmatprep.subr.mxu0 %v4075
          %5019 = vmatpush1.msra.mxu0 %v4074
          %5020 = vmatprep.subr.mxu0 %v4077
          %5021 = vmatpush1.msra.mxu0 %v4076
          %5022 = vmatprep.subr.mxu0 %v4079
          %5023 = vmatpush1.msra.mxu0 %v4078
          %5024 = vmatprep.subr.mxu0 %v4081
          %5025 = vmatpush1.msra.mxu0 %v4080
          %5026 = vmatprep.subr.mxu0 %v4083
          %5027 = vmatpush1.msra.mxu0 %v4082
          %5028 = vmatprep.subr.mxu0 %v4085
          %5029 = vmatpush1.msra.mxu0 %v4084
          %5030 = vmatprep.subr.mxu0 %v4087
          %5031 = vmatpush1.msra.mxu0 %v4086
          %5032 = vmatprep.subr.mxu0 %v4089
          %5033 = vmatpush1.msra.mxu0 %v4088
          %5034 = vmatprep.subr.mxu0 0.0
          %5035 = vmatpush1.msra.mxu0 0.0
          %5036 = vmatprep.subr.mxu0 0.0
          %5037 = vmatpush1.msra.mxu0 0.0
          %5038 = vmatprep.subr.mxu0 0.0
          %5039 = vmatpush1.msra.mxu0 0.0
          %5040 = vmatprep.subr.mxu0 0.0
          %5041 = vmatpush1.msra.mxu0 0.0
          %5042 = vmatprep.subr.mxu0 0.0
          %5043 = vmatpush1.msra.mxu0 0.0
          %5044 = vmatprep.subr.mxu0 0.0
          %5045 = vmatpush1.msra.mxu0 0.0
          %5046 = vmatprep.subr.mxu0 0.0
          %5047 = vmatpush1.msra.mxu0 0.0
          %5048 = vmatprep.subr.mxu0 0.0
          %5049 = vmatpush1.msra.mxu0 0.0
          %5050 = vmatprep.subr.mxu0 0.0
          %5051 = vmatpush1.msra.mxu0 0.0
          %5052 = vmatprep.subr.mxu0 0.0
          %5053 = vmatpush1.msra.mxu0 0.0
          %5054 = vmatprep.subr.mxu0 0.0
          %5055 = vmatpush1.msra.mxu0 0.0
          %5056 = vmatprep.subr.mxu0 0.0
          %5057 = vmatpush1.msra.mxu0 0.0
          %5058 = vmatprep.subr.mxu0 0.0
          %5059 = vmatpush1.msra.mxu0 0.0
          %5060 = vmatprep.subr.mxu0 0.0
          %5061 = vmatpush1.msra.mxu0 0.0
          %5062 = vmatprep.subr.mxu0 0.0
          %5063 = vmatpush1.msra.mxu0 0.0
          %5064 = vmatprep.subr.mxu0 0.0
          %5065 = vmatpush1.msra.mxu0 0.0
          %5066 = vmatprep.subr.mxu0 0.0
          %5067 = vmatpush1.msra.mxu0 0.0
          %5068 = vmatprep.subr.mxu0 0.0
          %5069 = vmatpush1.msra.mxu0 0.0
          %5070 = vmatprep.subr.mxu0 0.0
          %5071 = vmatpush1.msra.mxu0 0.0
          %5072 = vmatprep.subr.mxu0 0.0
          %5073 = vmatpush1.msra.mxu0 0.0
          %5074 = vmatprep.subr.mxu0 0.0
          %5075 = vmatpush1.msra.mxu0 0.0
          %5076 = vmatprep.subr.mxu0 0.0
          %5077 = vmatpush1.msra.mxu0 0.0
          %5078 = vmatprep.subr.mxu0 0.0
          %5079 = vmatpush1.msra.mxu0 0.0
          %5080 = vmatprep.subr.mxu0 0.0
          %5081 = vmatpush1.msra.mxu0 0.0
          %5082 = vmatprep.mubr.f32.mxu0 0.0
          %5083 = vmatmul.mubr.f32.gmra.mrb[0].mxu0 %v4935
          %v5084 = vpop.f32.mrb[0].mxu0
          %v5085 = vadd.f32 0.0, %v5084
          %v5086 = vpop.f32.mrb[0].mxu0
          %v5087 = vadd.f32 0.0, %v5086
          %5088 = vmatprep.mubr.f32.mxu0 0.0
          %5089 = vmatmul.mubr.f32.gmra.mrb[0].mxu0 %v4938
          %v5090 = vpop.f32.mrb[0].mxu0
          %v5091 = vadd.f32 0.0, %v5090
          %v5092 = vpop.f32.mrb[0].mxu0
          %v5093 = vadd.f32 0.0, %v5092
          %5094 = vmatprep.mubr.f32.mxu0 0.0
          %5095 = vmatmul.mubr.f32.gmra.mrb[0].mxu0 %v4941
          %v5096 = vpop.f32.mrb[0].mxu0
          %v5097 = vadd.f32 0.0, %v5096
          %v5098 = vpop.f32.mrb[0].mxu0
          %v5099 = vadd.f32 0.0, %v5098
          %5100 = vmatprep.mubr.f32.mxu0 0.0
          %5101 = vmatmul.mubr.f32.gmra.mrb[0].mxu0 %v4944
          %v5102 = vpop.f32.mrb[0].mxu0
          %v5103 = vadd.f32 0.0, %v5102
          %v5104 = vpop.f32.mrb[0].mxu0
          %v5105 = vadd.f32 0.0, %v5104
          %5106 = vmatprep.mubr.f32.mxu0 0.0
          %5107 = vmatmul.mubr.f32.gmra.mrb[0].mxu0 %v4947
          %v5108 = vpop.f32.mrb[0].mxu0
          %v5109 = vadd.f32 0.0, %v5108
          %v5110 = vpop.f32.mrb[0].mxu0
          %v5111 = vadd.f32 0.0, %v5110
          %5112 = vmatprep.mubr.f32.mxu0 0.0
          %5113 = vmatmul.mubr.f32.gmra.mrb[0].mxu0 %v4950
          %v5114 = vpop.f32.mrb[0].mxu0
          %v5115 = vadd.f32 0.0, %v5114
          %v5116 = vpop.f32.mrb[0].mxu0
          %v5117 = vadd.f32 0.0, %v5116
          %5118 = vmatprep.mubr.f32.mxu0 0.0
          %5119 = vmatmul.mubr.f32.gmra.mrb[0].mxu0 %v4953
          %v5120 = vpop.f32.mrb[0].mxu0
          %v5121 = vadd.f32 0.0, %v5120
          %v5122 = vpop.f32.mrb[0].mxu0
          %v5123 = vadd.f32 0.0, %v5122
          %5124 = vmatprep.mubr.f32.mxu0 0.0
          %5125 = vmatmul.mubr.f32.gmra.mrb[0].mxu0 %v4956
          %v5126 = vpop.f32.mrb[0].mxu0
          %v5127 = vadd.f32 0.0, %v5126
          %v5128 = vpop.f32.mrb[0].mxu0
          %v5129 = vadd.f32 0.0, %v5128
          %5130 = vmatprep.mubr.f32.mxu0 0.0
          %5131 = vmatmul.mubr.f32.gmra.mrb[0].mxu0 %v4959
          %v5132 = vpop.f32.mrb[0].mxu0
          %v5133 = vadd.f32 0.0, %v5132
          %v5134 = vpop.f32.mrb[0].mxu0
          %v5135 = vadd.f32 0.0, %v5134
          %5136 = vmatprep.mubr.f32.mxu0 0.0
          %5137 = vmatmul.mubr.f32.gmra.mrb[0].mxu0 %v4962
          %v5138 = vpop.f32.mrb[0].mxu0
          %v5139 = vadd.f32 0.0, %v5138
          %v5140 = vpop.f32.mrb[0].mxu0
          %v5141 = vadd.f32 0.0, %v5140
          %5142 = vmatprep.mubr.f32.mxu0 0.0
          %5143 = vmatmul.mubr.f32.gmra.mrb[0].mxu0 %v4965
          %v5144 = vpop.f32.mrb[0].mxu0
          %v5145 = vadd.f32 0.0, %v5144
          %v5146 = vpop.f32.mrb[0].mxu0
          %v5147 = vadd.f32 0.0, %v5146
          %5148 = vmatprep.mubr.f32.mxu0 0.0
          %5149 = vmatmul.mubr.f32.gmra.mrb[0].mxu0 %v4968
          %v5150 = vpop.f32.mrb[0].mxu0
          %v5151 = vadd.f32 0.0, %v5150
          %v5152 = vpop.f32.mrb[0].mxu0
          %v5153 = vadd.f32 0.0, %v5152
          %5154 = vmatprep.mubr.f32.mxu0 0.0
          %5155 = vmatmul.mubr.f32.gmra.mrb[0].mxu0 %v4971
          %v5156 = vpop.f32.mrb[0].mxu0
          %v5157 = vadd.f32 0.0, %v5156
          %v5158 = vpop.f32.mrb[0].mxu0
          %v5159 = vadd.f32 0.0, %v5158
          %5160 = vmatprep.mubr.f32.mxu0 0.0
          %5161 = vmatmul.mubr.f32.gmra.mrb[0].mxu0 %v4974
          %v5162 = vpop.f32.mrb[0].mxu0
          %v5163 = vadd.f32 0.0, %v5162
          %v5164 = vpop.f32.mrb[0].mxu0
          %v5165 = vadd.f32 0.0, %v5164
          %5166 = vmatprep.mubr.f32.mxu0 0.0
          %5167 = vmatmul.mubr.f32.gmra.mrb[0].mxu0 %v4977
          %v5168 = vpop.f32.mrb[0].mxu0
          %v5169 = vadd.f32 0.0, %v5168
          %v5170 = vpop.f32.mrb[0].mxu0
          %v5171 = vadd.f32 0.0, %v5170
          %5172 = vmatprep.mubr.f32.mxu0 0.0
          %5173 = vmatmul.mubr.f32.gmra.mrb[0].mxu0 %v4980
          %v5174 = vpop.f32.mrb[0].mxu0
          %v5175 = vadd.f32 0.0, %v5174
          %v5176 = vpop.f32.mrb[0].mxu0
          %v5177 = vadd.f32 0.0, %v5176
          %5178 = vmatprep.mubr.f32.mxu0 0.0
          %5179 = vmatmul.mubr.f32.gmra.mrb[0].mxu0 %v4983
          %v5180 = vpop.f32.mrb[0].mxu0
          %v5181 = vadd.f32 0.0, %v5180
          %v5182 = vpop.f32.mrb[0].mxu0
          %v5183 = vadd.f32 0.0, %v5182
          %5184 = vmatprep.mubr.f32.mxu0 0.0
          %5185 = vmatmul.mubr.f32.gmra.mrb[0].mxu0 %v4986
          %v5186 = vpop.f32.mrb[0].mxu0
          %v5187 = vadd.f32 0.0, %v5186
          %v5188 = vpop.f32.mrb[0].mxu0
          %v5189 = vadd.f32 0.0, %v5188
          %5190 = vmatprep.mubr.f32.mxu0 0.0
          %5191 = vmatmul.mubr.f32.gmra.mrb[0].mxu0 %v4989
          %v5192 = vpop.f32.mrb[0].mxu0
          %v5193 = vadd.f32 0.0, %v5192
          %v5194 = vpop.f32.mrb[0].mxu0
          %v5195 = vadd.f32 0.0, %v5194
          %5196 = vmatprep.mubr.f32.mxu0 0.0
          %5197 = vmatmul.mubr.f32.gmra.mrb[0].mxu0 %v4992
          %v5198 = vpop.f32.mrb[0].mxu0
          %v5199 = vadd.f32 0.0, %v5198
          %v5200 = vpop.f32.mrb[0].mxu0
          %v5201 = vadd.f32 0.0, %v5200
          %5202 = vmatprep.mubr.f32.mxu0 0.0
          %5203 = vmatmul.mubr.f32.gmra.mrb[0].mxu0 %v4995
          %v5204 = vpop.f32.mrb[0].mxu0
          %v5205 = vadd.f32 0.0, %v5204
          %v5206 = vpop.f32.mrb[0].mxu0
          %v5207 = vadd.f32 0.0, %v5206
          %5208 = vmatprep.mubr.f32.mxu0 0.0
          %5209 = vmatmul.mubr.f32.gmra.mrb[0].mxu0 %v4998
          %v5210 = vpop.f32.mrb[0].mxu0
          %v5211 = vadd.f32 0.0, %v5210
          %v5212 = vpop.f32.mrb[0].mxu0
          %v5213 = vadd.f32 0.0, %v5212
          %5214 = vmatprep.mubr.f32.mxu0 0.0
          %5215 = vmatmul.mubr.f32.gmra.mrb[0].mxu0 %v5001
          %v5216 = vpop.f32.mrb[0].mxu0
          %v5217 = vadd.f32 0.0, %v5216
          %v5218 = vpop.f32.mrb[0].mxu0
          %v5219 = vadd.f32 0.0, %v5218
          %5220 = vmatprep.mubr.f32.mxu0 0.0
          %5221 = vmatmul.mubr.f32.gmra.mrb[0].mxu0 %v5004
          %v5222 = vpop.f32.mrb[0].mxu0
          %v5223 = vadd.f32 0.0, %v5222
          %v5224 = vpop.f32.mrb[0].mxu0
          %v5225 = vadd.f32 0.0, %v5224
          %5226 = vmatprep.mubr.f32.mxu0 0.0
          %5227 = vmatmul.mubr.f32.gmra.mrb[0].mxu0 %v5007
          %v5228 = vpop.f32.mrb[0].mxu0
          %v5229 = vadd.f32 0.0, %v5228
          %v5230 = vpop.f32.mrb[0].mxu0
          %v5231 = vadd.f32 0.0, %v5230
          %5232 = vmatprep.mubr.f32.mxu0 0.0
          %5233 = vmatmul.mubr.f32.gmra.mrb[0].mxu0 %v5010
          %v5234 = vpop.f32.mrb[0].mxu0
          %v5235 = vadd.f32 0.0, %v5234
          %v5236 = vpop.f32.mrb[0].mxu0
          %v5237 = vadd.f32 0.0, %v5236
          %5238 = vmatprep.mubr.f32.mxu0 0.0
          %5239 = vmatmul.mubr.f32.gmra.mrb[0].mxu0 %v5013
          %v5240 = vpop.f32.mrb[0].mxu0
          %v5241 = vadd.f32 0.0, %v5240
          %v5242 = vpop.f32.mrb[0].mxu0
          %v5243 = vadd.f32 0.0, %v5242
          %5244 = vmatprep.mubr.f32.mxu0 0.0
          %5245 = vmatmul.mubr.f32.gmra.mrb[0].mxu0 %v5016
          %v5246 = vpop.f32.mrb[0].mxu0
          %v5247 = vadd.f32 0.0, %v5246
          %v5248 = vpop.f32.mrb[0].mxu0
          %v5249 = vadd.f32 0.0, %v5248
          %5250 = vdwg.mxu0
          %s5251 = scalar_lea.vmem %s863, 896 [#allocation3]
          %5252 = vst [vmem:[%s5251] sm:$0xff] %v5085
          %5253 = vst.msk [vmem:[%s5251 + $0x8] sm:$0xff] %vm4440, %v5087
          %5254 = vst [vmem:[%s5251 + $0x10] sm:$0xff] %v5091
          %5255 = vst.msk [vmem:[%s5251 + $0x18] sm:$0xff] %vm4440, %v5093
          %5256 = vst [vmem:[%s5251 + $0x20] sm:$0xff] %v5097
          %5257 = vst.msk [vmem:[%s5251 + $0x28] sm:$0xff] %vm4440, %v5099
          %5258 = vst [vmem:[%s5251 + $0x30] sm:$0xff] %v5103
          %5259 = vst.msk [vmem:[%s5251 + $0x38] sm:$0xff] %vm4440, %v5105
          %5260 = vst [vmem:[%s5251 + $0x40] sm:$0xff] %v5109
          %5261 = vst.msk [vmem:[%s5251 + $0x48] sm:$0xff] %vm4440, %v5111
          %5262 = vst [vmem:[%s5251 + $0x50] sm:$0xff] %v5115
          %5263 = vst.msk [vmem:[%s5251 + $0x58] sm:$0xff] %vm4440, %v5117
          %5264 = vst [vmem:[%s5251 + $0x60] sm:$0xff] %v5121
          %5265 = vst.msk [vmem:[%s5251 + $0x68] sm:$0xff] %vm4440, %v5123
          %5266 = vst [vmem:[%s5251 + $0x70] sm:$0xff] %v5127
          %5267 = vst.msk [vmem:[%s5251 + $0x78] sm:$0xff] %vm4440, %v5129
          %5268 = vst [vmem:[%s5251 + $0x80] sm:$0xff] %v5133
          %5269 = vst.msk [vmem:[%s5251 + $0x88] sm:$0xff] %vm4440, %v5135
          %5270 = vst [vmem:[%s5251 + $0x90] sm:$0xff] %v5139
          %5271 = vst.msk [vmem:[%s5251 + $0x98] sm:$0xff] %vm4440, %v5141
          %5272 = vst [vmem:[%s5251 + $0xa0] sm:$0xff] %v5145
          %5273 = vst.msk [vmem:[%s5251 + $0xa8] sm:$0xff] %vm4440, %v5147
          %5274 = vst [vmem:[%s5251 + $0xb0] sm:$0xff] %v5151
          %5275 = vst.msk [vmem:[%s5251 + $0xb8] sm:$0xff] %vm4440, %v5153
          %5276 = vst [vmem:[%s5251 + $0xc0] sm:$0xff] %v5157
          %5277 = vst.msk [vmem:[%s5251 + $0xc8] sm:$0xff] %vm4440, %v5159
          %5278 = vst [vmem:[%s5251 + $0xd0] sm:$0xff] %v5163
          %5279 = vst.msk [vmem:[%s5251 + $0xd8] sm:$0xff] %vm4440, %v5165
          %5280 = vst [vmem:[%s5251 + $0xe0] sm:$0xff] %v5169
          %5281 = vst.msk [vmem:[%s5251 + $0xe8] sm:$0xff] %vm4440, %v5171
          %5282 = vst [vmem:[%s5251 + $0xf0] sm:$0xff] %v5175
          %5283 = vst.msk [vmem:[%s5251 + $0xf8] sm:$0xff] %vm4440, %v5177
          %5284 = vst [vmem:[%s5251 + $0x100] sm:$0xff] %v5181
          %5285 = vst.msk [vmem:[%s5251 + $0x108] sm:$0xff] %vm4440, %v5183
          %5286 = vst [vmem:[%s5251 + $0x110] sm:$0xff] %v5187
          %5287 = vst.msk [vmem:[%s5251 + $0x118] sm:$0xff] %vm4440, %v5189
          %5288 = vst [vmem:[%s5251 + $0x120] sm:$0xff] %v5193
          %5289 = vst.msk [vmem:[%s5251 + $0x128] sm:$0xff] %vm4440, %v5195
          %5290 = vst [vmem:[%s5251 + $0x130] sm:$0xff] %v5199
          %5291 = vst.msk [vmem:[%s5251 + $0x138] sm:$0xff] %vm4440, %v5201
          %5292 = vst [vmem:[%s5251 + $0x140] sm:$0xff] %v5205
          %5293 = vst.msk [vmem:[%s5251 + $0x148] sm:$0xff] %vm4440, %v5207
          %5294 = vst [vmem:[%s5251 + $0x150] sm:$0xff] %v5211
          %5295 = vst.msk [vmem:[%s5251 + $0x158] sm:$0xff] %vm4440, %v5213
          %5296 = vst [vmem:[%s5251 + $0x160] sm:$0xff] %v5217
          %5297 = vst.msk [vmem:[%s5251 + $0x168] sm:$0xff] %vm4440, %v5219
          %5298 = vst [vmem:[%s5251 + $0x170] sm:$0xff] %v5223
          %5299 = vst.msk [vmem:[%s5251 + $0x178] sm:$0xff] %vm4440, %v5225
          %5300 = vst [vmem:[%s5251 + $0x180] sm:$0xff] %v5229
          %5301 = vst.msk [vmem:[%s5251 + $0x188] sm:$0xff] %vm4440, %v5231
          %5302 = vst [vmem:[%s5251 + $0x190] sm:$0xff] %v5235
          %5303 = vst.msk [vmem:[%s5251 + $0x198] sm:$0xff] %vm4440, %v5237
          %5304 = vst [vmem:[%s5251 + $0x1a0] sm:$0xff] %v5241
          %5305 = vst.msk [vmem:[%s5251 + $0x1a8] sm:$0xff] %vm4440, %v5243
          %5306 = vst [vmem:[%s5251 + $0x1b0] sm:$0xff] %v5247
          %5307 = vst.msk [vmem:[%s5251 + $0x1b8] sm:$0xff] %vm4440, %v5249
        $region120: #{vit_none_forward.1} parent=111 // pred_fallthru
          _
        %s5308 = sand.u32 %s605, 1
        %s5309 = scalar_lea.sflag [#allocation4], %s5308
        %s5310 = sand.u32 %s605, 1
        %s5311 = smul.addr %s5310, 1344
        %s5312 = scalar_lea.vmem [#allocation3], %s5311
        // Predicated region
        $region121: #{vit_none_forward.1} parent=111 // pred_check
          %p5313 = pneg %p615
        $region122: #{vit_none_forward.1} parent=111 // pred_check_branch
          %5315 = sbr.rel (%p5313) target = $region124
        $region123: #{vit_none_forward.1} parent=111 // pred_region
          %s5317 = ssub.s32 21504, 21504
          %5318 = vsyncadd %s5309, %s5317
          %s5319 = smul.addr %s41, 168
          %s5320 = smul.addr %s5319, 128
          %s5321 = scalar_lea.hbm %s23, %s5320
          %s5322 = sshll.u32 %s5312, 4
          %s5323 = int_to_ptr.vmem [resolvable:$true] %s5322
          %5328 = dma.vmem_to_hbm [thread:$0]  %s5323, 21504, %s5321, %s5309, 256, 256, 16
        $region124: #{vit_none_forward.1} parent=111 // pred_fallthru
          _
      $region112: #{vit_none_forward.1} parent=5 // pred_fallthru
        _
      %p5329 = scmp.le.s32.totalorder 2, %s32
      // Predicated region
      $region125: #{vit_none_forward.1} parent=5 // pred_check
        %p5330 = pneg %p5329
      $region126: #{vit_none_forward.1} parent=5 // pred_check_branch
        %5332 = sbr.rel (%p5330) target = $region128
      $region127: #{vit_none_forward.1} parent=5 // pred_region
        %s5333 = ssub.s32 %s32, 2
        // Predicated region
        $region129: #{vit_none_forward.1} parent=127 // pred_check
          %p5334 = pneg %p621
        $region130: #{vit_none_forward.1} parent=127 // pred_check_branch
          %5336 = sbr.rel (%p5334) target = $region132
        $region131: #{vit_none_forward.1} parent=127 // pred_region
          %s5337 = sand.u32 %s606, 1
          %s5338 = scalar_lea.sflag [#allocation4], %s5337
          %s5339 = sand.u32 %s606, 1
          %s5340 = smul.addr %s5339, 1344
          %s5341 = scalar_lea.vmem [#allocation3], %s5340
          %5342 = dma.done %s5338, 21504
        $region132: #{vit_none_forward.1} parent=127 // pred_fallthru
          _
      $region128: #{vit_none_forward.1} parent=5 // pred_fallthru
        _
    $region6: #{vit_none_forward.1} parent=1 // loop_footer
      %s36 = sadd.s32 1, %s32
    $region7: #{vit_none_forward.1} parent=1 // loop_footer_branch
      %31 = sbr.rel target = $region3
    $region8: #{vit_none_forward.1} parent=1 // loop_exit
      _
    %5343 = vsyncpa [#allocation4], 1
    %s5344 = scalar_lea.sflag [#allocation4], 1
    %5345 = vsyncpa %s5344, 1

</llo_original>
